<compile_context>
chip_gen: v7x
topology: tpu7x:2x2x1
jax: 0.10.0
libtpu: 0.0.40
codegen_flags: <defaults>
</compile_context>

<pallas_src>
import math

import jax
import jax.numpy as jnp
from jax.experimental import pallas as pl
from jax.experimental.pallas import tpu as pltpu


LANE = 128  # TPU lane width; only weight *output* dims are padded to this.


def _round_up(x, m):
    return ((x + m - 1) // m) * m


# ----------------------------------------------------------------------------
# Fused kernel: TB samples per grid step.
#   children [H, TB, D] bf16, state [TB, D] bf16  ->  out [TB, Dp] f32
# ----------------------------------------------------------------------------
def _synth_kernel(ch_ref, st_ref,
                  wp_c_ref, wp_s_ref, bp_ref,
                  wa_c_ref, wa_s_ref, ba_ref,
                  out_ref):
    H = ch_ref.shape[0]

    st = st_ref[...]                                   # [TB, D] bf16
    wp_c = wp_c_ref[...]                               # [1, D]  f32
    wp_s = wp_s_ref[...]                               # [1, D]  f32
    bp = bp_ref[0]                                     # scalar  f32 (SMEM)

    # State contribution is shared by all heads of a sample: compute once.
    # prioritize state half: VPU mul + lane reduce (no N=1 MXU matmul).
    logit_s = jnp.sum(st.astype(jnp.float32) * wp_s,
                      axis=-1, keepdims=True) + bp      # [TB, 1] f32
    # assemble state half: ReLU distributes over the concat.
    asm_s = (jnp.dot(jnp.maximum(st, 0), wa_s_ref[...],
                     preferred_element_type=jnp.float32)
             + ba_ref[...])                             # [TB, Dp] f32

    # Per-head work, statically unrolled (H is small):
    #   out[b] = (sum_h e_h[b] * asm_h[b]) / (sum_h e_h[b])
    num = None
    den = None
    for h in range(H):
        ch_h = ch_ref[h]                                # [TB, D] bf16
        logit_h = jnp.sum(ch_h.astype(jnp.float32) * wp_c,
                          axis=-1, keepdims=True) + logit_s   # [TB, 1]
        # tanh bounds logits to [-1, 1] -> no max-subtraction needed.
        e_h = jnp.exp(jnp.tanh(logit_h))                # [TB, 1] f32 (EUP)
        asm_h = (jnp.dot(jnp.maximum(ch_h, 0), wa_c_ref[...],
                         preferred_element_type=jnp.float32)
                 + asm_s)                               # [TB, Dp] f32 (MXU)
        term = e_h * asm_h
        num = term if num is None else num + term
        den = e_h if den is None else den + e_h

    out_ref[...] = num * pl.reciprocal(den, approx=True)   # [TB, Dp] f32


# ----------------------------------------------------------------------------
# One-time parameter preprocessing: split the 2D-input Linears into their
# children / state halves, transpose to [in, out], pad only the OUTPUT dim of
# the assemble weights to 128 lanes, cast matmul weights to bf16.  The
# prioritize weights stay as f32 rows (VPU path).
# ----------------------------------------------------------------------------
def preprocess_params(params, dimensions):
    D = dimensions
    Dp = max(LANE, _round_up(D, LANE))

    def pad_cols(x, cols):
        return jnp.pad(x, ((0, 0), (0, cols - x.shape[1])))

    Wp, bp = params["Wp"], params["bp"]    # [1, 2D], [1]
    Wa, ba = params["Wa"], params["ba"]    # [D, 2D], [D]

    return dict(
        wp_c=Wp[:, :D].astype(jnp.float32),                       # [1, D]
        wp_s=Wp[:, D:].astype(jnp.float32),                       # [1, D]
        bp=bp.astype(jnp.float32),                                # [1]
        wa_c=pad_cols(Wa[:, :D].T, Dp).astype(jnp.bfloat16),      # [D, Dp]
        wa_s=pad_cols(Wa[:, D:].T, Dp).astype(jnp.bfloat16),      # [D, Dp]
        ba=pad_cols(ba.reshape(1, D), Dp).astype(jnp.float32),    # [1, Dp]
    )


# ----------------------------------------------------------------------------
# Wrapper: batched Synthesizer forward.
#   old_state    [B, D]
#   child_states [B, H, D]
#   returns      [B, D]   (per-sample this is the PyTorch forward's [D])
# ----------------------------------------------------------------------------
def synthesizer_forward(pre, old_state, child_states, block_b=256):
    B, H, D = child_states.shape
    Dp = pre["wa_c"].shape[1]

    # Batch tile: multiple of 16 (bf16 sublane packing), capped at block_b.
    TB = min(block_b, _round_up(B, 16))
    Bp = _round_up(B, TB)

    # H-leading, batch-padded, bf16 activations.  Transpose + pad + cast fuse
    # into a single XLA op per input; D is NOT lane-padded (no 4x HBM blowup).
    # Zero-padded samples yield finite garbage rows (sliced off below).
    ch = jnp.pad(jnp.transpose(child_states, (1, 0, 2)),
                 ((0, 0), (0, Bp - B), (0, 0))).astype(jnp.bfloat16)  # [H,Bp,D]
    st = jnp.pad(old_state,
                 ((0, Bp - B), (0, 0))).astype(jnp.bfloat16)          # [Bp,D]

    const = lambda i: (0, 0)  # weights: same block every step -> DMA'd once
    out = pl.pallas_call(
        _synth_kernel,
        out_shape=jax.ShapeDtypeStruct((Bp, Dp), jnp.float32),
        grid=(Bp // TB,),
        in_specs=[
            pl.BlockSpec((H, TB, D), lambda i: (0, i, 0)),        # children
            pl.BlockSpec((TB, D), lambda i: (i, 0)),              # state
            pl.BlockSpec((1, D), const),                          # wp_c row
            pl.BlockSpec((1, D), const),                          # wp_s row
            pl.BlockSpec(memory_space=pltpu.MemorySpace.SMEM),    # bp scalar
            pl.BlockSpec((D, Dp), const),                         # wa_c
            pl.BlockSpec((D, Dp), const),                         # wa_s
            pl.BlockSpec((1, Dp), const),                         # ba
        ],
        out_specs=pl.BlockSpec((TB, Dp), lambda i: (i, 0)),
        compiler_params=pltpu.CompilerParams(
            dimension_semantics=("parallel",)),
    )(ch, st, pre["wp_c"], pre["wp_s"], pre["bp"],
      pre["wa_c"], pre["wa_s"], pre["ba"])

    return out[:B, :D]


# ----------------------------------------------------------------------------
# Deterministic PyTorch-Linear-style init and a pure-JAX reference.
# ----------------------------------------------------------------------------
def init_params(key, dimensions):
    D = dimensions

    def linear(k, fan_in, fan_out):
        k1, k2 = jax.random.split(k)
        bound = 1.0 / math.sqrt(fan_in)
        W = jax.random.uniform(k1, (fan_out, fan_in), jnp.float32, -bound, bound)
        b = jax.random.uniform(k2, (fan_out,), jnp.float32, -bound, bound)
        return W, b

    k1, k2 = jax.random.split(key)
    Wp, bp = linear(k1, 2 * D, 1)   # Synthesizer.prioritize
    Wa, ba = linear(k2, 2 * D, D)   # Synthesizer.assemble[1]
    return dict(Wp=Wp, bp=bp, Wa=Wa, ba=ba)


def _ref_synthesizer(params, old_state, child_states):
    """Faithful per-sample reference (mirrors the PyTorch code, f32)."""
    H, D = child_states.shape
    ds = jnp.concatenate(
        [child_states, jnp.broadcast_to(old_state, (H, D))], axis=1)
    w = jax.nn.softmax(jnp.tanh(ds @ params["Wp"].T + params["bp"]), axis=0)
    asm = jnp.maximum(ds, 0.0) @ params["Wa"].T + params["ba"]
    return (w.T @ asm)[0]


if __name__ == "__main__":
    D, H, B = 32, 4, 512   # dimensions, heads, batch (2 grid steps of 256)

    key = jax.random.PRNGKey(0)
    kp, kc, ks = jax.random.split(key, 3)
    params = init_params(kp, D)
    child_states = jax.random.normal(kc, (B, H, D), jnp.float32)
    old_state = jax.random.normal(ks, (B, D), jnp.float32)

    pre = preprocess_params(params, D)          # one-time weight prep
    fwd = jax.jit(synthesizer_forward)
    out = jax.block_until_ready(fwd(pre, old_state, child_states))

    ref = jax.vmap(_ref_synthesizer, in_axes=(None, 0, 0))(
        params, old_state, child_states)

    assert out.shape == (B, D), out.shape
    assert bool(jnp.all(jnp.isfinite(out)))
    max_err = float(jnp.max(jnp.abs(out - ref)))
    # bf16-streamed activations + bf16 MXU inputs (f32 accumulation) + approx
    # reciprocal on the softmax denominator -> small, bounded numeric delta.
    assert bool(jnp.allclose(out, ref, atol=2e-2, rtol=2e-2)), max_err
    print("KERNEL_OK")
</pallas_src>

<mosaic_0001>
module attributes {stable_mosaic.version = 11 : i64} {
  func.func @_synth_kernel(%arg0: i32, %arg1: memref<4x256x32xbf16, #tpu.memory_space<vmem>>, %arg2: memref<256x32xbf16, #tpu.memory_space<vmem>>, %arg3: memref<1x32xf32, #tpu.memory_space<vmem>>, %arg4: memref<1x32xf32, #tpu.memory_space<vmem>>, %arg5: memref<1xf32, #tpu.memory_space<smem>>, %arg6: memref<32x128xbf16, #tpu.memory_space<vmem>>, %arg7: memref<32x128xbf16, #tpu.memory_space<vmem>>, %arg8: memref<1x128xf32, #tpu.memory_space<vmem>>, %arg9: memref<256x128xf32, #tpu.memory_space<vmem>>) attributes {dimension_semantics = [#tpu.dimension_semantics<parallel>], iteration_bounds = array<i64: 2>, scalar_prefetch = 0 : i64, scratch_operands = 0 : i64, tpu.core_type = #tpu.core_type<tc>, window_params = [{transform_indices = @transform_0, window_bounds = array<i64: 4, 256, 32>}, {transform_indices = @transform_1, window_bounds = array<i64: 256, 32>}, {pipeline_mode = #tpu.pipeline_mode<synchronous>, transform_indices = @transform_2, window_bounds = array<i64: 1, 32>}, {pipeline_mode = #tpu.pipeline_mode<synchronous>, transform_indices = @transform_3, window_bounds = array<i64: 1, 32>}, {transform_indices = @transform_4, window_bounds = array<i64: 1>}, {pipeline_mode = #tpu.pipeline_mode<synchronous>, transform_indices = @transform_5, window_bounds = array<i64: 32, 128>}, {pipeline_mode = #tpu.pipeline_mode<synchronous>, transform_indices = @transform_6, window_bounds = array<i64: 32, 128>}, {pipeline_mode = #tpu.pipeline_mode<synchronous>, transform_indices = @transform_7, window_bounds = array<i64: 1, 128>}, {transform_indices = @transform_8, window_bounds = array<i64: 256, 128>}]} {
    %c0 = arith.constant 0 : index
    %c0_0 = arith.constant 0 : index
    %0 = vector.load %arg2[%c0, %c0_0] : memref<256x32xbf16, #tpu.memory_space<vmem>>, vector<256x32xbf16>
    %c0_1 = arith.constant 0 : index
    %c0_2 = arith.constant 0 : index
    %1 = vector.load %arg3[%c0_1, %c0_2] : memref<1x32xf32, #tpu.memory_space<vmem>>, vector<1x32xf32>
    %c0_3 = arith.constant 0 : index
    %c0_4 = arith.constant 0 : index
    %2 = vector.load %arg4[%c0_3, %c0_4] : memref<1x32xf32, #tpu.memory_space<vmem>>, vector<1x32xf32>
    %c0_5 = arith.constant 0 : index
    %3 = memref.load %arg5[%c0_5] : memref<1xf32, #tpu.memory_space<smem>>
    %4 = arith.extf %0 : vector<256x32xbf16> to vector<256x32xf32>
    %5 = vector.broadcast %2 : vector<1x32xf32> to vector<256x32xf32>
    %6 = arith.mulf %4, %5 : vector<256x32xf32>
    %cst = arith.constant dense<0.000000e+00> : vector<256xf32>
    %7 = vector.multi_reduction <add>, %6, %cst [1] : vector<256x32xf32> to vector<256xf32>
    %8 = vector.shape_cast %7 : vector<256xf32> to vector<256x1xf32>
    %9 = vector.broadcast %3 : f32 to vector<256x1xf32>
    %10 = arith.addf %8, %9 : vector<256x1xf32>
    %cst_6 = arith.constant 0.000000e+00 : bf16
    %11 = vector.broadcast %cst_6 : bf16 to vector<256x32xbf16>
    %12 = arith.maximumf %0, %11 : vector<256x32xbf16>
    %c0_7 = arith.constant 0 : index
    %c0_8 = arith.constant 0 : index
    %13 = vector.load %arg7[%c0_7, %c0_8] : memref<32x128xbf16, #tpu.memory_space<vmem>>, vector<32x128xbf16>
    %cst_9 = arith.constant dense<0.000000e+00> : vector<256x128xf32>
    %14 = tpu.matmul %12, %13, %cst_9 {dimension_numbers = #tpu.dot_dimension_numbers<[1], [0], [0], [1], [0, 0, 1, 1], [], []>} : vector<256x32xbf16>, vector<32x128xbf16>, vector<256x128xf32> -> vector<256x128xf32>
    %c0_10 = arith.constant 0 : index
    %c0_11 = arith.constant 0 : index
    %15 = vector.load %arg8[%c0_10, %c0_11] : memref<1x128xf32, #tpu.memory_space<vmem>>, vector<1x128xf32>
    %16 = vector.broadcast %15 : vector<1x128xf32> to vector<256x128xf32>
    %17 = arith.addf %14, %16 : vector<256x128xf32>
    %c0_12 = arith.constant 0 : index
    %c0_13 = arith.constant 0 : index
    %c0_14 = arith.constant 0 : index
    %18 = vector.load %arg1[%c0_12, %c0_13, %c0_14] : memref<4x256x32xbf16, #tpu.memory_space<vmem>>, vector<1x256x32xbf16>
    %19 = vector.shape_cast %18 : vector<1x256x32xbf16> to vector<256x32xbf16>
    %20 = arith.extf %19 : vector<256x32xbf16> to vector<256x32xf32>
    %21 = vector.broadcast %1 : vector<1x32xf32> to vector<256x32xf32>
    %22 = arith.mulf %20, %21 : vector<256x32xf32>
    %cst_15 = arith.constant dense<0.000000e+00> : vector<256xf32>
    %23 = vector.multi_reduction <add>, %22, %cst_15 [1] : vector<256x32xf32> to vector<256xf32>
    %24 = vector.shape_cast %23 : vector<256xf32> to vector<256x1xf32>
    %25 = arith.addf %24, %10 : vector<256x1xf32>
    %26 = math.tanh %25 : vector<256x1xf32>
    %27 = math.exp %26 : vector<256x1xf32>
    %cst_16 = arith.constant 0.000000e+00 : bf16
    %28 = vector.broadcast %cst_16 : bf16 to vector<256x32xbf16>
    %29 = arith.maximumf %19, %28 : vector<256x32xbf16>
    %c0_17 = arith.constant 0 : index
    %c0_18 = arith.constant 0 : index
    %30 = vector.load %arg6[%c0_17, %c0_18] : memref<32x128xbf16, #tpu.memory_space<vmem>>, vector<32x128xbf16>
    %cst_19 = arith.constant dense<0.000000e+00> : vector<256x128xf32>
    %31 = tpu.matmul %29, %30, %cst_19 {dimension_numbers = #tpu.dot_dimension_numbers<[1], [0], [0], [1], [0, 0, 1, 1], [], []>} : vector<256x32xbf16>, vector<32x128xbf16>, vector<256x128xf32> -> vector<256x128xf32>
    %32 = arith.addf %31, %17 : vector<256x128xf32>
    %33 = vector.broadcast %27 : vector<256x1xf32> to vector<256x128xf32>
    %34 = arith.mulf %33, %32 : vector<256x128xf32>
    %c1 = arith.constant 1 : index
    %c0_20 = arith.constant 0 : index
    %c0_21 = arith.constant 0 : index
    %35 = vector.load %arg1[%c1, %c0_20, %c0_21] : memref<4x256x32xbf16, #tpu.memory_space<vmem>>, vector<1x256x32xbf16>
    %36 = vector.shape_cast %35 : vector<1x256x32xbf16> to vector<256x32xbf16>
    %37 = arith.extf %36 : vector<256x32xbf16> to vector<256x32xf32>
    %38 = vector.broadcast %1 : vector<1x32xf32> to vector<256x32xf32>
    %39 = arith.mulf %37, %38 : vector<256x32xf32>
    %cst_22 = arith.constant dense<0.000000e+00> : vector<256xf32>
    %40 = vector.multi_reduction <add>, %39, %cst_22 [1] : vector<256x32xf32> to vector<256xf32>
    %41 = vector.shape_cast %40 : vector<256xf32> to vector<256x1xf32>
    %42 = arith.addf %41, %10 : vector<256x1xf32>
    %43 = math.tanh %42 : vector<256x1xf32>
    %44 = math.exp %43 : vector<256x1xf32>
    %cst_23 = arith.constant 0.000000e+00 : bf16
    %45 = vector.broadcast %cst_23 : bf16 to vector<256x32xbf16>
    %46 = arith.maximumf %36, %45 : vector<256x32xbf16>
    %c0_24 = arith.constant 0 : index
    %c0_25 = arith.constant 0 : index
    %47 = vector.load %arg6[%c0_24, %c0_25] : memref<32x128xbf16, #tpu.memory_space<vmem>>, vector<32x128xbf16>
    %cst_26 = arith.constant dense<0.000000e+00> : vector<256x128xf32>
    %48 = tpu.matmul %46, %47, %cst_26 {dimension_numbers = #tpu.dot_dimension_numbers<[1], [0], [0], [1], [0, 0, 1, 1], [], []>} : vector<256x32xbf16>, vector<32x128xbf16>, vector<256x128xf32> -> vector<256x128xf32>
    %49 = arith.addf %48, %17 : vector<256x128xf32>
    %50 = vector.broadcast %44 : vector<256x1xf32> to vector<256x128xf32>
    %51 = arith.mulf %50, %49 : vector<256x128xf32>
    %52 = arith.addf %34, %51 : vector<256x128xf32>
    %53 = arith.addf %27, %44 : vector<256x1xf32>
    %c2 = arith.constant 2 : index
    %c0_27 = arith.constant 0 : index
    %c0_28 = arith.constant 0 : index
    %54 = vector.load %arg1[%c2, %c0_27, %c0_28] : memref<4x256x32xbf16, #tpu.memory_space<vmem>>, vector<1x256x32xbf16>
    %55 = vector.shape_cast %54 : vector<1x256x32xbf16> to vector<256x32xbf16>
    %56 = arith.extf %55 : vector<256x32xbf16> to vector<256x32xf32>
    %57 = vector.broadcast %1 : vector<1x32xf32> to vector<256x32xf32>
    %58 = arith.mulf %56, %57 : vector<256x32xf32>
    %cst_29 = arith.constant dense<0.000000e+00> : vector<256xf32>
    %59 = vector.multi_reduction <add>, %58, %cst_29 [1] : vector<256x32xf32> to vector<256xf32>
    %60 = vector.shape_cast %59 : vector<256xf32> to vector<256x1xf32>
    %61 = arith.addf %60, %10 : vector<256x1xf32>
    %62 = math.tanh %61 : vector<256x1xf32>
    %63 = math.exp %62 : vector<256x1xf32>
    %cst_30 = arith.constant 0.000000e+00 : bf16
    %64 = vector.broadcast %cst_30 : bf16 to vector<256x32xbf16>
    %65 = arith.maximumf %55, %64 : vector<256x32xbf16>
    %c0_31 = arith.constant 0 : index
    %c0_32 = arith.constant 0 : index
    %66 = vector.load %arg6[%c0_31, %c0_32] : memref<32x128xbf16, #tpu.memory_space<vmem>>, vector<32x128xbf16>
    %cst_33 = arith.constant dense<0.000000e+00> : vector<256x128xf32>
    %67 = tpu.matmul %65, %66, %cst_33 {dimension_numbers = #tpu.dot_dimension_numbers<[1], [0], [0], [1], [0, 0, 1, 1], [], []>} : vector<256x32xbf16>, vector<32x128xbf16>, vector<256x128xf32> -> vector<256x128xf32>
    %68 = arith.addf %67, %17 : vector<256x128xf32>
    %69 = vector.broadcast %63 : vector<256x1xf32> to vector<256x128xf32>
    %70 = arith.mulf %69, %68 : vector<256x128xf32>
    %71 = arith.addf %52, %70 : vector<256x128xf32>
    %72 = arith.addf %53, %63 : vector<256x1xf32>
    %c3 = arith.constant 3 : index
    %c0_34 = arith.constant 0 : index
    %c0_35 = arith.constant 0 : index
    %73 = vector.load %arg1[%c3, %c0_34, %c0_35] : memref<4x256x32xbf16, #tpu.memory_space<vmem>>, vector<1x256x32xbf16>
    %74 = vector.shape_cast %73 : vector<1x256x32xbf16> to vector<256x32xbf16>
    %75 = arith.extf %74 : vector<256x32xbf16> to vector<256x32xf32>
    %76 = vector.broadcast %1 : vector<1x32xf32> to vector<256x32xf32>
    %77 = arith.mulf %75, %76 : vector<256x32xf32>
    %cst_36 = arith.constant dense<0.000000e+00> : vector<256xf32>
    %78 = vector.multi_reduction <add>, %77, %cst_36 [1] : vector<256x32xf32> to vector<256xf32>
    %79 = vector.shape_cast %78 : vector<256xf32> to vector<256x1xf32>
    %80 = arith.addf %79, %10 : vector<256x1xf32>
    %81 = math.tanh %80 : vector<256x1xf32>
    %82 = math.exp %81 : vector<256x1xf32>
    %cst_37 = arith.constant 0.000000e+00 : bf16
    %83 = vector.broadcast %cst_37 : bf16 to vector<256x32xbf16>
    %84 = arith.maximumf %74, %83 : vector<256x32xbf16>
    %c0_38 = arith.constant 0 : index
    %c0_39 = arith.constant 0 : index
    %85 = vector.load %arg6[%c0_38, %c0_39] : memref<32x128xbf16, #tpu.memory_space<vmem>>, vector<32x128xbf16>
    %cst_40 = arith.constant dense<0.000000e+00> : vector<256x128xf32>
    %86 = tpu.matmul %84, %85, %cst_40 {dimension_numbers = #tpu.dot_dimension_numbers<[1], [0], [0], [1], [0, 0, 1, 1], [], []>} : vector<256x32xbf16>, vector<32x128xbf16>, vector<256x128xf32> -> vector<256x128xf32>
    %87 = arith.addf %86, %17 : vector<256x128xf32>
    %88 = vector.broadcast %82 : vector<256x1xf32> to vector<256x128xf32>
    %89 = arith.mulf %88, %87 : vector<256x128xf32>
    %90 = arith.addf %71, %89 : vector<256x128xf32>
    %91 = arith.addf %72, %82 : vector<256x1xf32>
    %92 = tpu.reciprocal %91 {approx = true} : vector<256x1xf32> -> vector<256x1xf32>
    %93 = vector.broadcast %92 : vector<256x1xf32> to vector<256x128xf32>
    %94 = arith.mulf %90, %93 : vector<256x128xf32>
    %c0_41 = arith.constant 0 : index
    %c0_42 = arith.constant 0 : index
    %95 = vector.load %arg9[%c0_41, %c0_42] : memref<256x128xf32, #tpu.memory_space<vmem>>, vector<256x128xf32>
    tpu.vector_store %arg9[%c0_41, %c0_42], %94 {strides = array<i32>} : memref<256x128xf32, #tpu.memory_space<vmem>>, vector<256x128xf32>,
    return
  }
  func.func @transform_0(%arg0: i32) -> (i32, i32, i32) {
    %c0_i32 = arith.constant 0 : i32
    %c0_i32_0 = arith.constant 0 : i32
    %c0_i32_1 = arith.constant 0 : i32
    return %c0_i32, %arg0, %c0_i32_0 : i32, i32, i32
  }
  func.func @transform_1(%arg0: i32) -> (i32, i32) {
    %c0_i32 = arith.constant 0 : i32
    %c0_i32_0 = arith.constant 0 : i32
    return %arg0, %c0_i32 : i32, i32
  }
  func.func @transform_2(%arg0: i32) -> (i32, i32) {
    %c0_i32 = arith.constant 0 : i32
    %c0_i32_0 = arith.constant 0 : i32
    %c0_i32_1 = arith.constant 0 : i32
    return %c0_i32, %c0_i32_0 : i32, i32
  }
  func.func @transform_3(%arg0: i32) -> (i32, i32) {
    %c0_i32 = arith.constant 0 : i32
    %c0_i32_0 = arith.constant 0 : i32
    %c0_i32_1 = arith.constant 0 : i32
    return %c0_i32, %c0_i32_0 : i32, i32
  }
  func.func @transform_4(%arg0: i32) -> i32 {
    %c0_i32 = arith.constant 0 : i32
    %c0_i32_0 = arith.constant 0 : i32
    return %c0_i32 : i32
  }
  func.func @transform_5(%arg0: i32) -> (i32, i32) {
    %c0_i32 = arith.constant 0 : i32
    %c0_i32_0 = arith.constant 0 : i32
    %c0_i32_1 = arith.constant 0 : i32
    return %c0_i32, %c0_i32_0 : i32, i32
  }
  func.func @transform_6(%arg0: i32) -> (i32, i32) {
    %c0_i32 = arith.constant 0 : i32
    %c0_i32_0 = arith.constant 0 : i32
    %c0_i32_1 = arith.constant 0 : i32
    return %c0_i32, %c0_i32_0 : i32, i32
  }
  func.func @transform_7(%arg0: i32) -> (i32, i32) {
    %c0_i32 = arith.constant 0 : i32
    %c0_i32_0 = arith.constant 0 : i32
    %c0_i32_1 = arith.constant 0 : i32
    return %c0_i32, %c0_i32_0 : i32, i32
  }
  func.func @transform_8(%arg0: i32) -> (i32, i32) {
    %c0_i32 = arith.constant 0 : i32
    %c0_i32_0 = arith.constant 0 : i32
    return %arg0, %c0_i32 : i32, i32
  }
}

</mosaic_0001>

<llo_original>
// kernel: synthesizer_forward.1
$region0: #{synthesizer_forward.1}
  #allocation0 [shape = 'u32[]', space=smem, size = 0x4, offset = 0x4, fixed_abs, tag = 'smem constant byte address 0x4 - core index']
  #allocation1 [shape = 'u32[144,128]{1,0:T(1,128)}', space=vmem, size = 0x12000, scoped, tag = 'internal scratch']
  #allocation2 [shape = 'f32[1]{0:T(128)S(6)}', space=smem, size = 0x200, scoped, tag = 'scoped memory for synthesizer_forward.1']
  %s0 = inlined_call_operand.vmem [shape: bf16[4,512,32], index: 0, kind: input, shape index: {}]
  %s1 = inlined_call_operand.vmem [shape: bf16[512,32], index: 1, kind: input, shape index: {}]
  %s2 = inlined_call_operand.vmem [shape: f32[1,32], index: 2, kind: input, shape index: {}]
  %s3 = inlined_call_operand.vmem [shape: f32[1,32], index: 3, kind: input, shape index: {}]
  %s4 = inlined_call_operand.<no memory space> [shape: f32[1], index: 4, kind: input, shape index: {}]
  %s5 = inlined_call_operand.vmem [shape: bf16[32,128], index: 5, kind: input, shape index: {}]
  %s6 = inlined_call_operand.vmem [shape: bf16[32,128], index: 6, kind: input, shape index: {}]
  %s7 = inlined_call_operand.vmem [shape: f32[1,128], index: 7, kind: input, shape index: {}]
  %s8 = inlined_call_operand.vmem [shape: f32[512,128], index: 8, kind: output, shape index: {}]
  %s9 = sld [smem:[#allocation0]]
  $region106: #{synthesizer_forward.1} parent=0
    _
  %s11 = ssub.s32 1, %s9
  %s12 = scalar_select 0, %s11, %s9
  %13 = sst [smem:[#allocation2]] %s4
  $region1: #{synthesizer_forward.1} parent=0
    #allocation3 [shape = 'u8[524288]{0}', space=vmem, size = 0x80000, scoped, tag = 'input window, operand 0']
    loop: start=0, step=1, limit=4
    $region2: #{synthesizer_forward.1} parent=1 // loop_pre_header
      _
    $region3: #{synthesizer_forward.1} parent=1 // loop_header
      %s15 = sphi 0, %s19
      %p16 = scmp.ge.s32.totalorder %s15, 4
      %s25 = sphi 0, %s27
      %s28 = sphi 0, %s25
      %s29 = sphi 0, %s28
      %s45 = sphi 0, %s29
      %s51 = sphi 0, %s53
      %s54 = sphi 0, %s51
      %s55 = sphi 0, %s54
      %s71 = sphi 0, %s55
      %s75 = sphi 0, %s75
      %s77 = sphi 0, %s75
      %s78 = sphi 0, %s77
      %s92 = sphi 0, %s78
      %s96 = sphi 0, %s96
      %s98 = sphi 0, %s96
      %s99 = sphi 0, %s98
      %s113 = sphi 0, %s99
      %s117 = sphi 0, %s117
      %s119 = sphi 0, %s117
      %s120 = sphi 0, %s119
      %s134 = sphi 0, %s120
      %s138 = sphi 0, %s138
      %s140 = sphi 0, %s138
      %s141 = sphi 0, %s140
      %s155 = sphi 0, %s141
      %s159 = sphi 0, %s159
      %s161 = sphi 0, %s159
      %s162 = sphi 0, %s161
      %s176 = sphi 0, %s162
      %s180 = sphi 0, %s180
      %s182 = sphi 0, %s180
      %s183 = sphi 0, %s182
      %s197 = sphi 0, %s183
      %s203 = sphi 0, %s205
      %s206 = sphi 0, %s203
      %s207 = sphi 0, %s206
      %s223 = sphi 0, %s207
    $region4: #{synthesizer_forward.1} parent=1 // loop_header_branch
      %18 = sbr.rel (%p16) target = $region8
    $region5: #{synthesizer_forward.1} parent=1 // loop_body
      %s20 = ssub.s32 %s15, 1
      %s21 = ssub.s32 %s15, 2
      %s22 = sadd.s32 %s15, 1
      %s23 = ssub.s32 %s15, %s22
      %p24 = scmp.eq.s32.totalorder %s23, 0
      %s26 = sadd.s32 %s25, 1
      %s27 = scalar_select %p24, %s25, %s26
      %p30 = pneg %p24
      %p31 = scmp.eq.s32.totalorder %s15, 1
      %p32 = por %p30, %p31
      %p33 = scmp.ne.s32.totalorder %s25, %s28
      %p34 = scmp.eq.s32.totalorder %s15, 0
      %p35 = por %p33, %p34
      %p36 = scmp.ne.s32.totalorder %s25, %s28
      %p37 = scmp.eq.s32.totalorder %s20, 1
      %p38 = por %p36, %p37
      %p39 = scmp.ne.s32.totalorder %s28, %s29
      %p40 = scmp.eq.s32.totalorder %s20, 0
      %p41 = por %p39, %p40
      %p42 = scmp.ne.s32.totalorder %s28, %s29
      %p43 = scmp.eq.s32.totalorder %s21, 1
      %p44 = por %p42, %p43
      %p46 = scmp.ne.s32.totalorder %s29, %s45
      %p47 = scmp.eq.s32.totalorder %s21, 0
      %p48 = por %p46, %p47
      %s49 = ssub.s32 %s15, %s22
      %p50 = scmp.eq.s32.totalorder %s49, 0
      %s52 = sadd.s32 %s51, 1
      %s53 = scalar_select %p50, %s51, %s52
      %p56 = pneg %p50
      %p57 = scmp.eq.s32.totalorder %s15, 1
      %p58 = por %p56, %p57
      %p59 = scmp.ne.s32.totalorder %s51, %s54
      %p60 = scmp.eq.s32.totalorder %s15, 0
      %p61 = por %p59, %p60
      %p62 = scmp.ne.s32.totalorder %s51, %s54
      %p63 = scmp.eq.s32.totalorder %s20, 1
      %p64 = por %p62, %p63
      %p65 = scmp.ne.s32.totalorder %s54, %s55
      %p66 = scmp.eq.s32.totalorder %s20, 0
      %p67 = por %p65, %p66
      %p68 = scmp.ne.s32.totalorder %s54, %s55
      %p69 = scmp.eq.s32.totalorder %s21, 1
      %p70 = por %p68, %p69
      %p72 = scmp.ne.s32.totalorder %s55, %s71
      %p73 = scmp.eq.s32.totalorder %s21, 0
      %p74 = por %p72, %p73
      %s76 = sadd.s32 %s75, 1
      %p79 = scmp.eq.s32.totalorder %s15, 1
      %p80 = scmp.ne.s32.totalorder %s75, %s77
      %p81 = scmp.eq.s32.totalorder %s15, 0
      %p82 = por %p80, %p81
      %p83 = scmp.ne.s32.totalorder %s75, %s77
      %p84 = scmp.eq.s32.totalorder %s20, 1
      %p85 = por %p83, %p84
      %p86 = scmp.ne.s32.totalorder %s77, %s78
      %p87 = scmp.eq.s32.totalorder %s20, 0
      %p88 = por %p86, %p87
      %p89 = scmp.ne.s32.totalorder %s77, %s78
      %p90 = scmp.eq.s32.totalorder %s21, 1
      %p91 = por %p89, %p90
      %p93 = scmp.ne.s32.totalorder %s78, %s92
      %p94 = scmp.eq.s32.totalorder %s21, 0
      %p95 = por %p93, %p94
      %s97 = sadd.s32 %s96, 1
      %p100 = scmp.eq.s32.totalorder %s15, 1
      %p101 = scmp.ne.s32.totalorder %s96, %s98
      %p102 = scmp.eq.s32.totalorder %s15, 0
      %p103 = por %p101, %p102
      %p104 = scmp.ne.s32.totalorder %s96, %s98
      %p105 = scmp.eq.s32.totalorder %s20, 1
      %p106 = por %p104, %p105
      %p107 = scmp.ne.s32.totalorder %s98, %s99
      %p108 = scmp.eq.s32.totalorder %s20, 0
      %p109 = por %p107, %p108
      %p110 = scmp.ne.s32.totalorder %s98, %s99
      %p111 = scmp.eq.s32.totalorder %s21, 1
      %p112 = por %p110, %p111
      %p114 = scmp.ne.s32.totalorder %s99, %s113
      %p115 = scmp.eq.s32.totalorder %s21, 0
      %p116 = por %p114, %p115
      %s118 = sadd.s32 %s117, 1
      %p121 = scmp.eq.s32.totalorder %s15, 1
      %p122 = scmp.ne.s32.totalorder %s117, %s119
      %p123 = scmp.eq.s32.totalorder %s15, 0
      %p124 = por %p122, %p123
      %p125 = scmp.ne.s32.totalorder %s117, %s119
      %p126 = scmp.eq.s32.totalorder %s20, 1
      %p127 = por %p125, %p126
      %p128 = scmp.ne.s32.totalorder %s119, %s120
      %p129 = scmp.eq.s32.totalorder %s20, 0
      %p130 = por %p128, %p129
      %p131 = scmp.ne.s32.totalorder %s119, %s120
      %p132 = scmp.eq.s32.totalorder %s21, 1
      %p133 = por %p131, %p132
      %p135 = scmp.ne.s32.totalorder %s120, %s134
      %p136 = scmp.eq.s32.totalorder %s21, 0
      %p137 = por %p135, %p136
      %s139 = sadd.s32 %s138, 1
      %p142 = scmp.eq.s32.totalorder %s15, 1
      %p143 = scmp.ne.s32.totalorder %s138, %s140
      %p144 = scmp.eq.s32.totalorder %s15, 0
      %p145 = por %p143, %p144
      %p146 = scmp.ne.s32.totalorder %s138, %s140
      %p147 = scmp.eq.s32.totalorder %s20, 1
      %p148 = por %p146, %p147
      %p149 = scmp.ne.s32.totalorder %s140, %s141
      %p150 = scmp.eq.s32.totalorder %s20, 0
      %p151 = por %p149, %p150
      %p152 = scmp.ne.s32.totalorder %s140, %s141
      %p153 = scmp.eq.s32.totalorder %s21, 1
      %p154 = por %p152, %p153
      %p156 = scmp.ne.s32.totalorder %s141, %s155
      %p157 = scmp.eq.s32.totalorder %s21, 0
      %p158 = por %p156, %p157
      %s160 = sadd.s32 %s159, 1
      %p163 = scmp.eq.s32.totalorder %s15, 1
      %p164 = scmp.ne.s32.totalorder %s159, %s161
      %p165 = scmp.eq.s32.totalorder %s15, 0
      %p166 = por %p164, %p165
      %p167 = scmp.ne.s32.totalorder %s159, %s161
      %p168 = scmp.eq.s32.totalorder %s20, 1
      %p169 = por %p167, %p168
      %p170 = scmp.ne.s32.totalorder %s161, %s162
      %p171 = scmp.eq.s32.totalorder %s20, 0
      %p172 = por %p170, %p171
      %p173 = scmp.ne.s32.totalorder %s161, %s162
      %p174 = scmp.eq.s32.totalorder %s21, 1
      %p175 = por %p173, %p174
      %p177 = scmp.ne.s32.totalorder %s162, %s176
      %p178 = scmp.eq.s32.totalorder %s21, 0
      %p179 = por %p177, %p178
      %s181 = sadd.s32 %s180, 1
      %p184 = scmp.eq.s32.totalorder %s15, 1
      %p185 = scmp.ne.s32.totalorder %s180, %s182
      %p186 = scmp.eq.s32.totalorder %s15, 0
      %p187 = por %p185, %p186
      %p188 = scmp.ne.s32.totalorder %s180, %s182
      %p189 = scmp.eq.s32.totalorder %s20, 1
      %p190 = por %p188, %p189
      %p191 = scmp.ne.s32.totalorder %s182, %s183
      %p192 = scmp.eq.s32.totalorder %s20, 0
      %p193 = por %p191, %p192
      %p194 = scmp.ne.s32.totalorder %s182, %s183
      %p195 = scmp.eq.s32.totalorder %s21, 1
      %p196 = por %p194, %p195
      %p198 = scmp.ne.s32.totalorder %s183, %s197
      %p199 = scmp.eq.s32.totalorder %s21, 0
      %p200 = por %p198, %p199
      %s201 = ssub.s32 %s15, %s22
      %p202 = scmp.eq.s32.totalorder %s201, 0
      %s204 = sadd.s32 %s203, 1
      %s205 = scalar_select %p202, %s203, %s204
      %p208 = pneg %p202
      %p209 = scmp.eq.s32.totalorder %s15, 1
      %p210 = por %p208, %p209
      %p211 = scmp.ne.s32.totalorder %s203, %s206
      %p212 = scmp.eq.s32.totalorder %s15, 0
      %p213 = por %p211, %p212
      %p214 = scmp.ne.s32.totalorder %s203, %s206
      %p215 = scmp.eq.s32.totalorder %s20, 1
      %p216 = por %p214, %p215
      %p217 = scmp.ne.s32.totalorder %s206, %s207
      %p218 = scmp.eq.s32.totalorder %s20, 0
      %p219 = por %p217, %p218
      %p220 = scmp.ne.s32.totalorder %s206, %s207
      %p221 = scmp.eq.s32.totalorder %s21, 1
      %p222 = por %p220, %p221
      %p224 = scmp.ne.s32.totalorder %s207, %s223
      %p225 = scmp.eq.s32.totalorder %s21, 0
      %p226 = por %p224, %p225
      %p227 = scmp.le.s32.totalorder 1, %s15
      %p228 = scmp.lt.s32.totalorder %s15, 3
      %p229 = pnand %p227, %p228
      %p230 = pneg %p229
      // Predicated region
      $region9: #{synthesizer_forward.1} parent=5 // pred_check
        _
      $region10: #{synthesizer_forward.1} parent=5 // pred_check_branch
        %232 = sbr.rel (%p229) target = $region12
      $region11: #{synthesizer_forward.1} parent=5 // pred_region
        %s233 = ssub.s32 %s15, 1
        // Predicated region
        $region13: #{synthesizer_forward.1} parent=11 // pred_check
          %p234 = pneg %p88
        $region14: #{synthesizer_forward.1} parent=11 // pred_check_branch
          %236 = sbr.rel (%p234) target = $region16
        $region15: #{synthesizer_forward.1} parent=11 // pred_region
          _
        $region16: #{synthesizer_forward.1} parent=11 // pred_fallthru
          _
        // Predicated region
        $region17: #{synthesizer_forward.1} parent=11 // pred_check
          %p237 = pneg %p109
        $region18: #{synthesizer_forward.1} parent=11 // pred_check_branch
          %239 = sbr.rel (%p237) target = $region20
        $region19: #{synthesizer_forward.1} parent=11 // pred_region
          _
        $region20: #{synthesizer_forward.1} parent=11 // pred_fallthru
          _
        // Predicated region
        $region21: #{synthesizer_forward.1} parent=11 // pred_check
          %p240 = pneg %p130
        $region22: #{synthesizer_forward.1} parent=11 // pred_check_branch
          %242 = sbr.rel (%p240) target = $region24
        $region23: #{synthesizer_forward.1} parent=11 // pred_region
          _
        $region24: #{synthesizer_forward.1} parent=11 // pred_fallthru
          _
        // Predicated region
        $region25: #{synthesizer_forward.1} parent=11 // pred_check
          %p243 = pneg %p151
        $region26: #{synthesizer_forward.1} parent=11 // pred_check_branch
          %245 = sbr.rel (%p243) target = $region28
        $region27: #{synthesizer_forward.1} parent=11 // pred_region
          _
        $region28: #{synthesizer_forward.1} parent=11 // pred_fallthru
          _
        // Predicated region
        $region29: #{synthesizer_forward.1} parent=11 // pred_check
          %p246 = pneg %p172
        $region30: #{synthesizer_forward.1} parent=11 // pred_check_branch
          %248 = sbr.rel (%p246) target = $region32
        $region31: #{synthesizer_forward.1} parent=11 // pred_region
          _
        $region32: #{synthesizer_forward.1} parent=11 // pred_fallthru
          _
        // Predicated region
        $region33: #{synthesizer_forward.1} parent=11 // pred_check
          %p249 = pneg %p193
        $region34: #{synthesizer_forward.1} parent=11 // pred_check_branch
          %251 = sbr.rel (%p249) target = $region36
        $region35: #{synthesizer_forward.1} parent=11 // pred_region
          _
        $region36: #{synthesizer_forward.1} parent=11 // pred_fallthru
          _
      $region12: #{synthesizer_forward.1} parent=5 // pred_fallthru
        _
      %p252 = scmp.lt.s32.totalorder %s15, 2
      // Predicated region
      $region37: #{synthesizer_forward.1} parent=5 // pred_check
        %p253 = pneg %p252
      $region38: #{synthesizer_forward.1} parent=5 // pred_check_branch
        %255 = sbr.rel (%p253) target = $region40
      $region39: #{synthesizer_forward.1} parent=5 // pred_region
        // Predicated region
        $region41: #{synthesizer_forward.1} parent=39 // pred_check
          %p256 = pneg %p35
        $region42: #{synthesizer_forward.1} parent=39 // pred_check_branch
          %258 = sbr.rel (%p256) target = $region44
        $region43: #{synthesizer_forward.1} parent=39 // pred_region
          %s259 = sand.u32 %s25, 1
          %s260 = sand.u32 %s25, 1
          %s261 = smul.addr %s260, 512
          %s262 = scalar_lea.vmem [#allocation3], %s261
          %s263 = smul.u32 32, %s15
          %s264 = smul.addr %s263, 4
          %s265 = scalar_lea.vmem %s0, %s264
          // Predicated region
          $region45: #{synthesizer_forward.1} parent=43 // pred_check
            _
          $region46: #{synthesizer_forward.1} parent=43 // pred_check_branch
            %267 = sbr.rel (0) target = $region48
          $region47: #{synthesizer_forward.1} parent=43 // pred_region
            // Predicated region
            $region49: #{synthesizer_forward.1} parent=47 // pred_check
              _
            $region50: #{synthesizer_forward.1} parent=47 // pred_check_branch
              %269 = sbr.rel target = $region52
            $region51: #{synthesizer_forward.1} parent=47 // pred_region
              // Predicated region
              $region64: #{synthesizer_forward.1} parent=51 // pred_check
                _
              $region65: #{synthesizer_forward.1} parent=51 // pred_check_branch
                %538 = sbr.rel (0) target = $region67
              $region66: #{synthesizer_forward.1} parent=51 // pred_region
                loop: start=0, step=1, limit=1
                $region68: #{synthesizer_forward.1} parent=66 // loop_pre_header
                  _
                $region69: #{synthesizer_forward.1} parent=66 // loop_header
                  %s540 = sphi 0, %s544
                  %p541 = scmp.ge.s32.totalorder %s540, 1
                  %s545 = sphi %s265, %s265
                  %s546 = sphi %s262, %s262
                $region70: #{synthesizer_forward.1} parent=66 // loop_header_branch
                  %543 = sbr.rel (%p541) target = $region74
                $region71: #{synthesizer_forward.1} parent=66 // loop_body
                  _
                $region72: #{synthesizer_forward.1} parent=66 // loop_footer
                  %s544 = sadd.s32 1, %s540
                $region73: #{synthesizer_forward.1} parent=66 // loop_footer_branch
                  %539 = sbr.rel target = $region69
                $region74: #{synthesizer_forward.1} parent=66 // loop_exit
                  _
                loop: start=0, step=1, limit=1
                $region75: #{synthesizer_forward.1} parent=66 // loop_pre_header
                  _
                $region76: #{synthesizer_forward.1} parent=66 // loop_header
                  %s549 = sphi 0, %s553
                  %p550 = scmp.ge.s32.totalorder %s549, 1
                  %s554 = sphi %s265, %s265
                  %s555 = sphi %s262, %s262
                $region77: #{synthesizer_forward.1} parent=66 // loop_header_branch
                  %552 = sbr.rel (%p550) target = $region81
                $region78: #{synthesizer_forward.1} parent=66 // loop_body
                  %v556 = vld [vmem:[%s554] sm:$0xf]
                  %557 = vst [vmem:[%s555] sm:$0xf] %v556
                  %v558 = vld [vmem:[%s554 + $0x4] sm:$0xf]
                  %559 = vst [vmem:[%s555 + $0x4] sm:$0xf] %v558
                  %v560 = vld [vmem:[%s554 + $0x8] sm:$0xf]
                  %561 = vst [vmem:[%s555 + $0x8] sm:$0xf] %v560
                  %v562 = vld [vmem:[%s554 + $0xc] sm:$0xf]
                  %563 = vst [vmem:[%s555 + $0xc] sm:$0xf] %v562
                  %v564 = vld [vmem:[%s554 + $0x10] sm:$0xf]
                  %565 = vst [vmem:[%s555 + $0x10] sm:$0xf] %v564
                  %v566 = vld [vmem:[%s554 + $0x14] sm:$0xf]
                  %567 = vst [vmem:[%s555 + $0x14] sm:$0xf] %v566
                  %v568 = vld [vmem:[%s554 + $0x18] sm:$0xf]
                  %569 = vst [vmem:[%s555 + $0x18] sm:$0xf] %v568
                  %v570 = vld [vmem:[%s554 + $0x1c] sm:$0xf]
                  %571 = vst [vmem:[%s555 + $0x1c] sm:$0xf] %v570
                  %v572 = vld [vmem:[%s554 + $0x20] sm:$0xf]
                  %573 = vst [vmem:[%s555 + $0x20] sm:$0xf] %v572
                  %v574 = vld [vmem:[%s554 + $0x24] sm:$0xf]
                  %575 = vst [vmem:[%s555 + $0x24] sm:$0xf] %v574
                  %v576 = vld [vmem:[%s554 + $0x28] sm:$0xf]
                  %577 = vst [vmem:[%s555 + $0x28] sm:$0xf] %v576
                  %v578 = vld [vmem:[%s554 + $0x2c] sm:$0xf]
                  %579 = vst [vmem:[%s555 + $0x2c] sm:$0xf] %v578
                  %v580 = vld [vmem:[%s554 + $0x30] sm:$0xf]
                  %581 = vst [vmem:[%s555 + $0x30] sm:$0xf] %v580
                  %v582 = vld [vmem:[%s554 + $0x34] sm:$0xf]
                  %583 = vst [vmem:[%s555 + $0x34] sm:$0xf] %v582
                  %v584 = vld [vmem:[%s554 + $0x38] sm:$0xf]
                  %585 = vst [vmem:[%s555 + $0x38] sm:$0xf] %v584
                  %v586 = vld [vmem:[%s554 + $0x3c] sm:$0xf]
                  %587 = vst [vmem:[%s555 + $0x3c] sm:$0xf] %v586
                  %v588 = vld [vmem:[%s554 + $0x40] sm:$0xf]
                  %589 = vst [vmem:[%s555 + $0x40] sm:$0xf] %v588
                  %v590 = vld [vmem:[%s554 + $0x44] sm:$0xf]
                  %591 = vst [vmem:[%s555 + $0x44] sm:$0xf] %v590
                  %v592 = vld [vmem:[%s554 + $0x48] sm:$0xf]
                  %593 = vst [vmem:[%s555 + $0x48] sm:$0xf] %v592
                  %v594 = vld [vmem:[%s554 + $0x4c] sm:$0xf]
                  %595 = vst [vmem:[%s555 + $0x4c] sm:$0xf] %v594
                  %v596 = vld [vmem:[%s554 + $0x50] sm:$0xf]
                  %597 = vst [vmem:[%s555 + $0x50] sm:$0xf] %v596
                  %v598 = vld [vmem:[%s554 + $0x54] sm:$0xf]
                  %599 = vst [vmem:[%s555 + $0x54] sm:$0xf] %v598
                  %v600 = vld [vmem:[%s554 + $0x58] sm:$0xf]
                  %601 = vst [vmem:[%s555 + $0x58] sm:$0xf] %v600
                  %v602 = vld [vmem:[%s554 + $0x5c] sm:$0xf]
                  %603 = vst [vmem:[%s555 + $0x5c] sm:$0xf] %v602
                  %v604 = vld [vmem:[%s554 + $0x60] sm:$0xf]
                  %605 = vst [vmem:[%s555 + $0x60] sm:$0xf] %v604
                  %v606 = vld [vmem:[%s554 + $0x64] sm:$0xf]
                  %607 = vst [vmem:[%s555 + $0x64] sm:$0xf] %v606
                  %v608 = vld [vmem:[%s554 + $0x68] sm:$0xf]
                  %609 = vst [vmem:[%s555 + $0x68] sm:$0xf] %v608
                  %v610 = vld [vmem:[%s554 + $0x6c] sm:$0xf]
                  %611 = vst [vmem:[%s555 + $0x6c] sm:$0xf] %v610
                  %v612 = vld [vmem:[%s554 + $0x70] sm:$0xf]
                  %613 = vst [vmem:[%s555 + $0x70] sm:$0xf] %v612
                  %v614 = vld [vmem:[%s554 + $0x74] sm:$0xf]
                  %615 = vst [vmem:[%s555 + $0x74] sm:$0xf] %v614
                  %v616 = vld [vmem:[%s554 + $0x78] sm:$0xf]
                  %617 = vst [vmem:[%s555 + $0x78] sm:$0xf] %v616
                  %v618 = vld [vmem:[%s554 + $0x7c] sm:$0xf]
                  %619 = vst [vmem:[%s555 + $0x7c] sm:$0xf] %v618
                  %v620 = vld [vmem:[%s554 + $0x100] sm:$0xf]
                  %621 = vst [vmem:[%s555 + $0x80] sm:$0xf] %v620
                  %v622 = vld [vmem:[%s554 + $0x104] sm:$0xf]
                  %623 = vst [vmem:[%s555 + $0x84] sm:$0xf] %v622
                  %v624 = vld [vmem:[%s554 + $0x108] sm:$0xf]
                  %625 = vst [vmem:[%s555 + $0x88] sm:$0xf] %v624
                  %v626 = vld [vmem:[%s554 + $0x10c] sm:$0xf]
                  %627 = vst [vmem:[%s555 + $0x8c] sm:$0xf] %v626
                  %v628 = vld [vmem:[%s554 + $0x110] sm:$0xf]
                  %629 = vst [vmem:[%s555 + $0x90] sm:$0xf] %v628
                  %v630 = vld [vmem:[%s554 + $0x114] sm:$0xf]
                  %631 = vst [vmem:[%s555 + $0x94] sm:$0xf] %v630
                  %v632 = vld [vmem:[%s554 + $0x118] sm:$0xf]
                  %633 = vst [vmem:[%s555 + $0x98] sm:$0xf] %v632
                  %v634 = vld [vmem:[%s554 + $0x11c] sm:$0xf]
                  %635 = vst [vmem:[%s555 + $0x9c] sm:$0xf] %v634
                  %v636 = vld [vmem:[%s554 + $0x120] sm:$0xf]
                  %637 = vst [vmem:[%s555 + $0xa0] sm:$0xf] %v636
                  %v638 = vld [vmem:[%s554 + $0x124] sm:$0xf]
                  %639 = vst [vmem:[%s555 + $0xa4] sm:$0xf] %v638
                  %v640 = vld [vmem:[%s554 + $0x128] sm:$0xf]
                  %641 = vst [vmem:[%s555 + $0xa8] sm:$0xf] %v640
                  %v642 = vld [vmem:[%s554 + $0x12c] sm:$0xf]
                  %643 = vst [vmem:[%s555 + $0xac] sm:$0xf] %v642
                  %v644 = vld [vmem:[%s554 + $0x130] sm:$0xf]
                  %645 = vst [vmem:[%s555 + $0xb0] sm:$0xf] %v644
                  %v646 = vld [vmem:[%s554 + $0x134] sm:$0xf]
                  %647 = vst [vmem:[%s555 + $0xb4] sm:$0xf] %v646
                  %v648 = vld [vmem:[%s554 + $0x138] sm:$0xf]
                  %649 = vst [vmem:[%s555 + $0xb8] sm:$0xf] %v648
                  %v650 = vld [vmem:[%s554 + $0x13c] sm:$0xf]
                  %651 = vst [vmem:[%s555 + $0xbc] sm:$0xf] %v650
                  %v652 = vld [vmem:[%s554 + $0x140] sm:$0xf]
                  %653 = vst [vmem:[%s555 + $0xc0] sm:$0xf] %v652
                  %v654 = vld [vmem:[%s554 + $0x144] sm:$0xf]
                  %655 = vst [vmem:[%s555 + $0xc4] sm:$0xf] %v654
                  %v656 = vld [vmem:[%s554 + $0x148] sm:$0xf]
                  %657 = vst [vmem:[%s555 + $0xc8] sm:$0xf] %v656
                  %v658 = vld [vmem:[%s554 + $0x14c] sm:$0xf]
                  %659 = vst [vmem:[%s555 + $0xcc] sm:$0xf] %v658
                  %v660 = vld [vmem:[%s554 + $0x150] sm:$0xf]
                  %661 = vst [vmem:[%s555 + $0xd0] sm:$0xf] %v660
                  %v662 = vld [vmem:[%s554 + $0x154] sm:$0xf]
                  %663 = vst [vmem:[%s555 + $0xd4] sm:$0xf] %v662
                  %v664 = vld [vmem:[%s554 + $0x158] sm:$0xf]
                  %665 = vst [vmem:[%s555 + $0xd8] sm:$0xf] %v664
                  %v666 = vld [vmem:[%s554 + $0x15c] sm:$0xf]
                  %667 = vst [vmem:[%s555 + $0xdc] sm:$0xf] %v666
                  %v668 = vld [vmem:[%s554 + $0x160] sm:$0xf]
                  %669 = vst [vmem:[%s555 + $0xe0] sm:$0xf] %v668
                  %v670 = vld [vmem:[%s554 + $0x164] sm:$0xf]
                  %671 = vst [vmem:[%s555 + $0xe4] sm:$0xf] %v670
                  %v672 = vld [vmem:[%s554 + $0x168] sm:$0xf]
                  %673 = vst [vmem:[%s555 + $0xe8] sm:$0xf] %v672
                  %v674 = vld [vmem:[%s554 + $0x16c] sm:$0xf]
                  %675 = vst [vmem:[%s555 + $0xec] sm:$0xf] %v674
                  %v676 = vld [vmem:[%s554 + $0x170] sm:$0xf]
                  %677 = vst [vmem:[%s555 + $0xf0] sm:$0xf] %v676
                  %v678 = vld [vmem:[%s554 + $0x174] sm:$0xf]
                  %679 = vst [vmem:[%s555 + $0xf4] sm:$0xf] %v678
                  %v680 = vld [vmem:[%s554 + $0x178] sm:$0xf]
                  %681 = vst [vmem:[%s555 + $0xf8] sm:$0xf] %v680
                  %v682 = vld [vmem:[%s554 + $0x17c] sm:$0xf]
                  %683 = vst [vmem:[%s555 + $0xfc] sm:$0xf] %v682
                  %v684 = vld [vmem:[%s554 + $0x200] sm:$0xf]
                  %685 = vst [vmem:[%s555 + $0x100] sm:$0xf] %v684
                  %v686 = vld [vmem:[%s554 + $0x204] sm:$0xf]
                  %687 = vst [vmem:[%s555 + $0x104] sm:$0xf] %v686
                  %v688 = vld [vmem:[%s554 + $0x208] sm:$0xf]
                  %689 = vst [vmem:[%s555 + $0x108] sm:$0xf] %v688
                  %v690 = vld [vmem:[%s554 + $0x20c] sm:$0xf]
                  %691 = vst [vmem:[%s555 + $0x10c] sm:$0xf] %v690
                  %v692 = vld [vmem:[%s554 + $0x210] sm:$0xf]
                  %693 = vst [vmem:[%s555 + $0x110] sm:$0xf] %v692
                  %v694 = vld [vmem:[%s554 + $0x214] sm:$0xf]
                  %695 = vst [vmem:[%s555 + $0x114] sm:$0xf] %v694
                  %v696 = vld [vmem:[%s554 + $0x218] sm:$0xf]
                  %697 = vst [vmem:[%s555 + $0x118] sm:$0xf] %v696
                  %v698 = vld [vmem:[%s554 + $0x21c] sm:$0xf]
                  %699 = vst [vmem:[%s555 + $0x11c] sm:$0xf] %v698
                  %v700 = vld [vmem:[%s554 + $0x220] sm:$0xf]
                  %701 = vst [vmem:[%s555 + $0x120] sm:$0xf] %v700
                  %v702 = vld [vmem:[%s554 + $0x224] sm:$0xf]
                  %703 = vst [vmem:[%s555 + $0x124] sm:$0xf] %v702
                  %v704 = vld [vmem:[%s554 + $0x228] sm:$0xf]
                  %705 = vst [vmem:[%s555 + $0x128] sm:$0xf] %v704
                  %v706 = vld [vmem:[%s554 + $0x22c] sm:$0xf]
                  %707 = vst [vmem:[%s555 + $0x12c] sm:$0xf] %v706
                  %v708 = vld [vmem:[%s554 + $0x230] sm:$0xf]
                  %709 = vst [vmem:[%s555 + $0x130] sm:$0xf] %v708
                  %v710 = vld [vmem:[%s554 + $0x234] sm:$0xf]
                  %711 = vst [vmem:[%s555 + $0x134] sm:$0xf] %v710
                  %v712 = vld [vmem:[%s554 + $0x238] sm:$0xf]
                  %713 = vst [vmem:[%s555 + $0x138] sm:$0xf] %v712
                  %v714 = vld [vmem:[%s554 + $0x23c] sm:$0xf]
                  %715 = vst [vmem:[%s555 + $0x13c] sm:$0xf] %v714
                  %v716 = vld [vmem:[%s554 + $0x240] sm:$0xf]
                  %717 = vst [vmem:[%s555 + $0x140] sm:$0xf] %v716
                  %v718 = vld [vmem:[%s554 + $0x244] sm:$0xf]
                  %719 = vst [vmem:[%s555 + $0x144] sm:$0xf] %v718
                  %v720 = vld [vmem:[%s554 + $0x248] sm:$0xf]
                  %721 = vst [vmem:[%s555 + $0x148] sm:$0xf] %v720
                  %v722 = vld [vmem:[%s554 + $0x24c] sm:$0xf]
                  %723 = vst [vmem:[%s555 + $0x14c] sm:$0xf] %v722
                  %v724 = vld [vmem:[%s554 + $0x250] sm:$0xf]
                  %725 = vst [vmem:[%s555 + $0x150] sm:$0xf] %v724
                  %v726 = vld [vmem:[%s554 + $0x254] sm:$0xf]
                  %727 = vst [vmem:[%s555 + $0x154] sm:$0xf] %v726
                  %v728 = vld [vmem:[%s554 + $0x258] sm:$0xf]
                  %729 = vst [vmem:[%s555 + $0x158] sm:$0xf] %v728
                  %v730 = vld [vmem:[%s554 + $0x25c] sm:$0xf]
                  %731 = vst [vmem:[%s555 + $0x15c] sm:$0xf] %v730
                  %v732 = vld [vmem:[%s554 + $0x260] sm:$0xf]
                  %733 = vst [vmem:[%s555 + $0x160] sm:$0xf] %v732
                  %v734 = vld [vmem:[%s554 + $0x264] sm:$0xf]
                  %735 = vst [vmem:[%s555 + $0x164] sm:$0xf] %v734
                  %v736 = vld [vmem:[%s554 + $0x268] sm:$0xf]
                  %737 = vst [vmem:[%s555 + $0x168] sm:$0xf] %v736
                  %v738 = vld [vmem:[%s554 + $0x26c] sm:$0xf]
                  %739 = vst [vmem:[%s555 + $0x16c] sm:$0xf] %v738
                  %v740 = vld [vmem:[%s554 + $0x270] sm:$0xf]
                  %741 = vst [vmem:[%s555 + $0x170] sm:$0xf] %v740
                  %v742 = vld [vmem:[%s554 + $0x274] sm:$0xf]
                  %743 = vst [vmem:[%s555 + $0x174] sm:$0xf] %v742
                  %v744 = vld [vmem:[%s554 + $0x278] sm:$0xf]
                  %745 = vst [vmem:[%s555 + $0x178] sm:$0xf] %v744
                  %v746 = vld [vmem:[%s554 + $0x27c] sm:$0xf]
                  %747 = vst [vmem:[%s555 + $0x17c] sm:$0xf] %v746
                  %v748 = vld [vmem:[%s554 + $0x300] sm:$0xf]
                  %749 = vst [vmem:[%s555 + $0x180] sm:$0xf] %v748
                  %v750 = vld [vmem:[%s554 + $0x304] sm:$0xf]
                  %751 = vst [vmem:[%s555 + $0x184] sm:$0xf] %v750
                  %v752 = vld [vmem:[%s554 + $0x308] sm:$0xf]
                  %753 = vst [vmem:[%s555 + $0x188] sm:$0xf] %v752
                  %v754 = vld [vmem:[%s554 + $0x30c] sm:$0xf]
                  %755 = vst [vmem:[%s555 + $0x18c] sm:$0xf] %v754
                  %v756 = vld [vmem:[%s554 + $0x310] sm:$0xf]
                  %757 = vst [vmem:[%s555 + $0x190] sm:$0xf] %v756
                  %v758 = vld [vmem:[%s554 + $0x314] sm:$0xf]
                  %759 = vst [vmem:[%s555 + $0x194] sm:$0xf] %v758
                  %v760 = vld [vmem:[%s554 + $0x318] sm:$0xf]
                  %761 = vst [vmem:[%s555 + $0x198] sm:$0xf] %v760
                  %v762 = vld [vmem:[%s554 + $0x31c] sm:$0xf]
                  %763 = vst [vmem:[%s555 + $0x19c] sm:$0xf] %v762
                  %v764 = vld [vmem:[%s554 + $0x320] sm:$0xf]
                  %765 = vst [vmem:[%s555 + $0x1a0] sm:$0xf] %v764
                  %v766 = vld [vmem:[%s554 + $0x324] sm:$0xf]
                  %767 = vst [vmem:[%s555 + $0x1a4] sm:$0xf] %v766
                  %v768 = vld [vmem:[%s554 + $0x328] sm:$0xf]
                  %769 = vst [vmem:[%s555 + $0x1a8] sm:$0xf] %v768
                  %v770 = vld [vmem:[%s554 + $0x32c] sm:$0xf]
                  %771 = vst [vmem:[%s555 + $0x1ac] sm:$0xf] %v770
                  %v772 = vld [vmem:[%s554 + $0x330] sm:$0xf]
                  %773 = vst [vmem:[%s555 + $0x1b0] sm:$0xf] %v772
                  %v774 = vld [vmem:[%s554 + $0x334] sm:$0xf]
                  %775 = vst [vmem:[%s555 + $0x1b4] sm:$0xf] %v774
                  %v776 = vld [vmem:[%s554 + $0x338] sm:$0xf]
                  %777 = vst [vmem:[%s555 + $0x1b8] sm:$0xf] %v776
                  %v778 = vld [vmem:[%s554 + $0x33c] sm:$0xf]
                  %779 = vst [vmem:[%s555 + $0x1bc] sm:$0xf] %v778
                  %v780 = vld [vmem:[%s554 + $0x340] sm:$0xf]
                  %781 = vst [vmem:[%s555 + $0x1c0] sm:$0xf] %v780
                  %v782 = vld [vmem:[%s554 + $0x344] sm:$0xf]
                  %783 = vst [vmem:[%s555 + $0x1c4] sm:$0xf] %v782
                  %v784 = vld [vmem:[%s554 + $0x348] sm:$0xf]
                  %785 = vst [vmem:[%s555 + $0x1c8] sm:$0xf] %v784
                  %v786 = vld [vmem:[%s554 + $0x34c] sm:$0xf]
                  %787 = vst [vmem:[%s555 + $0x1cc] sm:$0xf] %v786
                  %v788 = vld [vmem:[%s554 + $0x350] sm:$0xf]
                  %789 = vst [vmem:[%s555 + $0x1d0] sm:$0xf] %v788
                  %v790 = vld [vmem:[%s554 + $0x354] sm:$0xf]
                  %791 = vst [vmem:[%s555 + $0x1d4] sm:$0xf] %v790
                  %v792 = vld [vmem:[%s554 + $0x358] sm:$0xf]
                  %793 = vst [vmem:[%s555 + $0x1d8] sm:$0xf] %v792
                  %v794 = vld [vmem:[%s554 + $0x35c] sm:$0xf]
                  %795 = vst [vmem:[%s555 + $0x1dc] sm:$0xf] %v794
                  %v796 = vld [vmem:[%s554 + $0x360] sm:$0xf]
                  %797 = vst [vmem:[%s555 + $0x1e0] sm:$0xf] %v796
                  %v798 = vld [vmem:[%s554 + $0x364] sm:$0xf]
                  %799 = vst [vmem:[%s555 + $0x1e4] sm:$0xf] %v798
                  %v800 = vld [vmem:[%s554 + $0x368] sm:$0xf]
                  %801 = vst [vmem:[%s555 + $0x1e8] sm:$0xf] %v800
                  %v802 = vld [vmem:[%s554 + $0x36c] sm:$0xf]
                  %803 = vst [vmem:[%s555 + $0x1ec] sm:$0xf] %v802
                  %v804 = vld [vmem:[%s554 + $0x370] sm:$0xf]
                  %805 = vst [vmem:[%s555 + $0x1f0] sm:$0xf] %v804
                  %v806 = vld [vmem:[%s554 + $0x374] sm:$0xf]
                  %807 = vst [vmem:[%s555 + $0x1f4] sm:$0xf] %v806
                  %v808 = vld [vmem:[%s554 + $0x378] sm:$0xf]
                  %809 = vst [vmem:[%s555 + $0x1f8] sm:$0xf] %v808
                  %v810 = vld [vmem:[%s554 + $0x37c] sm:$0xf]
                  %811 = vst [vmem:[%s555 + $0x1fc] sm:$0xf] %v810
                $region79: #{synthesizer_forward.1} parent=66 // loop_footer
                  %s553 = sadd.s32 1, %s549
                $region80: #{synthesizer_forward.1} parent=66 // loop_footer_branch
                  %548 = sbr.rel target = $region76
                $region81: #{synthesizer_forward.1} parent=66 // loop_exit
                  _
              $region67: #{synthesizer_forward.1} parent=51 // pred_fallthru
                _
            $region52: #{synthesizer_forward.1} parent=47 // pred_fallthru
              _
            // Predicated region
            $region53: #{synthesizer_forward.1} parent=47 // pred_check
              _
            $region54: #{synthesizer_forward.1} parent=47 // pred_check_branch
              %271 = sbr.rel (0) target = $region56
            $region55: #{synthesizer_forward.1} parent=47 // pred_region
              loop: start=0, step=1, limit=1
              $region57: #{synthesizer_forward.1} parent=55 // loop_pre_header
                _
              $region58: #{synthesizer_forward.1} parent=55 // loop_header
                %s274 = sphi 0, %s278
                %p275 = scmp.ge.s32.totalorder %s274, 1
                %s279 = sphi %s265, %s265
                %s280 = sphi %s262, %s262
              $region59: #{synthesizer_forward.1} parent=55 // loop_header_branch
                %277 = sbr.rel (%p275) target = $region63
              $region60: #{synthesizer_forward.1} parent=55 // loop_body
                %v281 = vld [vmem:[%s279] sm:$0xf]
                %282 = vst [vmem:[%s280] sm:$0xf] %v281
                %v283 = vld [vmem:[%s279 + $0x4] sm:$0xf]
                %284 = vst [vmem:[%s280 + $0x4] sm:$0xf] %v283
                %v285 = vld [vmem:[%s279 + $0x8] sm:$0xf]
                %286 = vst [vmem:[%s280 + $0x8] sm:$0xf] %v285
                %v287 = vld [vmem:[%s279 + $0xc] sm:$0xf]
                %288 = vst [vmem:[%s280 + $0xc] sm:$0xf] %v287
                %v289 = vld [vmem:[%s279 + $0x10] sm:$0xf]
                %290 = vst [vmem:[%s280 + $0x10] sm:$0xf] %v289
                %v291 = vld [vmem:[%s279 + $0x14] sm:$0xf]
                %292 = vst [vmem:[%s280 + $0x14] sm:$0xf] %v291
                %v293 = vld [vmem:[%s279 + $0x18] sm:$0xf]
                %294 = vst [vmem:[%s280 + $0x18] sm:$0xf] %v293
                %v295 = vld [vmem:[%s279 + $0x1c] sm:$0xf]
                %296 = vst [vmem:[%s280 + $0x1c] sm:$0xf] %v295
                %v297 = vld [vmem:[%s279 + $0x20] sm:$0xf]
                %298 = vst [vmem:[%s280 + $0x20] sm:$0xf] %v297
                %v299 = vld [vmem:[%s279 + $0x24] sm:$0xf]
                %300 = vst [vmem:[%s280 + $0x24] sm:$0xf] %v299
                %v301 = vld [vmem:[%s279 + $0x28] sm:$0xf]
                %302 = vst [vmem:[%s280 + $0x28] sm:$0xf] %v301
                %v303 = vld [vmem:[%s279 + $0x2c] sm:$0xf]
                %304 = vst [vmem:[%s280 + $0x2c] sm:$0xf] %v303
                %v305 = vld [vmem:[%s279 + $0x30] sm:$0xf]
                %306 = vst [vmem:[%s280 + $0x30] sm:$0xf] %v305
                %v307 = vld [vmem:[%s279 + $0x34] sm:$0xf]
                %308 = vst [vmem:[%s280 + $0x34] sm:$0xf] %v307
                %v309 = vld [vmem:[%s279 + $0x38] sm:$0xf]
                %310 = vst [vmem:[%s280 + $0x38] sm:$0xf] %v309
                %v311 = vld [vmem:[%s279 + $0x3c] sm:$0xf]
                %312 = vst [vmem:[%s280 + $0x3c] sm:$0xf] %v311
                %v313 = vld [vmem:[%s279 + $0x40] sm:$0xf]
                %314 = vst [vmem:[%s280 + $0x40] sm:$0xf] %v313
                %v315 = vld [vmem:[%s279 + $0x44] sm:$0xf]
                %316 = vst [vmem:[%s280 + $0x44] sm:$0xf] %v315
                %v317 = vld [vmem:[%s279 + $0x48] sm:$0xf]
                %318 = vst [vmem:[%s280 + $0x48] sm:$0xf] %v317
                %v319 = vld [vmem:[%s279 + $0x4c] sm:$0xf]
                %320 = vst [vmem:[%s280 + $0x4c] sm:$0xf] %v319
                %v321 = vld [vmem:[%s279 + $0x50] sm:$0xf]
                %322 = vst [vmem:[%s280 + $0x50] sm:$0xf] %v321
                %v323 = vld [vmem:[%s279 + $0x54] sm:$0xf]
                %324 = vst [vmem:[%s280 + $0x54] sm:$0xf] %v323
                %v325 = vld [vmem:[%s279 + $0x58] sm:$0xf]
                %326 = vst [vmem:[%s280 + $0x58] sm:$0xf] %v325
                %v327 = vld [vmem:[%s279 + $0x5c] sm:$0xf]
                %328 = vst [vmem:[%s280 + $0x5c] sm:$0xf] %v327
                %v329 = vld [vmem:[%s279 + $0x60] sm:$0xf]
                %330 = vst [vmem:[%s280 + $0x60] sm:$0xf] %v329
                %v331 = vld [vmem:[%s279 + $0x64] sm:$0xf]
                %332 = vst [vmem:[%s280 + $0x64] sm:$0xf] %v331
                %v333 = vld [vmem:[%s279 + $0x68] sm:$0xf]
                %334 = vst [vmem:[%s280 + $0x68] sm:$0xf] %v333
                %v335 = vld [vmem:[%s279 + $0x6c] sm:$0xf]
                %336 = vst [vmem:[%s280 + $0x6c] sm:$0xf] %v335
                %v337 = vld [vmem:[%s279 + $0x70] sm:$0xf]
                %338 = vst [vmem:[%s280 + $0x70] sm:$0xf] %v337
                %v339 = vld [vmem:[%s279 + $0x74] sm:$0xf]
                %340 = vst [vmem:[%s280 + $0x74] sm:$0xf] %v339
                %v341 = vld [vmem:[%s279 + $0x78] sm:$0xf]
                %342 = vst [vmem:[%s280 + $0x78] sm:$0xf] %v341
                %v343 = vld [vmem:[%s279 + $0x7c] sm:$0xf]
                %344 = vst [vmem:[%s280 + $0x7c] sm:$0xf] %v343
                %v345 = vld [vmem:[%s279 + $0x100] sm:$0xf]
                %346 = vst [vmem:[%s280 + $0x80] sm:$0xf] %v345
                %v347 = vld [vmem:[%s279 + $0x104] sm:$0xf]
                %348 = vst [vmem:[%s280 + $0x84] sm:$0xf] %v347
                %v349 = vld [vmem:[%s279 + $0x108] sm:$0xf]
                %350 = vst [vmem:[%s280 + $0x88] sm:$0xf] %v349
                %v351 = vld [vmem:[%s279 + $0x10c] sm:$0xf]
                %352 = vst [vmem:[%s280 + $0x8c] sm:$0xf] %v351
                %v353 = vld [vmem:[%s279 + $0x110] sm:$0xf]
                %354 = vst [vmem:[%s280 + $0x90] sm:$0xf] %v353
                %v355 = vld [vmem:[%s279 + $0x114] sm:$0xf]
                %356 = vst [vmem:[%s280 + $0x94] sm:$0xf] %v355
                %v357 = vld [vmem:[%s279 + $0x118] sm:$0xf]
                %358 = vst [vmem:[%s280 + $0x98] sm:$0xf] %v357
                %v359 = vld [vmem:[%s279 + $0x11c] sm:$0xf]
                %360 = vst [vmem:[%s280 + $0x9c] sm:$0xf] %v359
                %v361 = vld [vmem:[%s279 + $0x120] sm:$0xf]
                %362 = vst [vmem:[%s280 + $0xa0] sm:$0xf] %v361
                %v363 = vld [vmem:[%s279 + $0x124] sm:$0xf]
                %364 = vst [vmem:[%s280 + $0xa4] sm:$0xf] %v363
                %v365 = vld [vmem:[%s279 + $0x128] sm:$0xf]
                %366 = vst [vmem:[%s280 + $0xa8] sm:$0xf] %v365
                %v367 = vld [vmem:[%s279 + $0x12c] sm:$0xf]
                %368 = vst [vmem:[%s280 + $0xac] sm:$0xf] %v367
                %v369 = vld [vmem:[%s279 + $0x130] sm:$0xf]
                %370 = vst [vmem:[%s280 + $0xb0] sm:$0xf] %v369
                %v371 = vld [vmem:[%s279 + $0x134] sm:$0xf]
                %372 = vst [vmem:[%s280 + $0xb4] sm:$0xf] %v371
                %v373 = vld [vmem:[%s279 + $0x138] sm:$0xf]
                %374 = vst [vmem:[%s280 + $0xb8] sm:$0xf] %v373
                %v375 = vld [vmem:[%s279 + $0x13c] sm:$0xf]
                %376 = vst [vmem:[%s280 + $0xbc] sm:$0xf] %v375
                %v377 = vld [vmem:[%s279 + $0x140] sm:$0xf]
                %378 = vst [vmem:[%s280 + $0xc0] sm:$0xf] %v377
                %v379 = vld [vmem:[%s279 + $0x144] sm:$0xf]
                %380 = vst [vmem:[%s280 + $0xc4] sm:$0xf] %v379
                %v381 = vld [vmem:[%s279 + $0x148] sm:$0xf]
                %382 = vst [vmem:[%s280 + $0xc8] sm:$0xf] %v381
                %v383 = vld [vmem:[%s279 + $0x14c] sm:$0xf]
                %384 = vst [vmem:[%s280 + $0xcc] sm:$0xf] %v383
                %v385 = vld [vmem:[%s279 + $0x150] sm:$0xf]
                %386 = vst [vmem:[%s280 + $0xd0] sm:$0xf] %v385
                %v387 = vld [vmem:[%s279 + $0x154] sm:$0xf]
                %388 = vst [vmem:[%s280 + $0xd4] sm:$0xf] %v387
                %v389 = vld [vmem:[%s279 + $0x158] sm:$0xf]
                %390 = vst [vmem:[%s280 + $0xd8] sm:$0xf] %v389
                %v391 = vld [vmem:[%s279 + $0x15c] sm:$0xf]
                %392 = vst [vmem:[%s280 + $0xdc] sm:$0xf] %v391
                %v393 = vld [vmem:[%s279 + $0x160] sm:$0xf]
                %394 = vst [vmem:[%s280 + $0xe0] sm:$0xf] %v393
                %v395 = vld [vmem:[%s279 + $0x164] sm:$0xf]
                %396 = vst [vmem:[%s280 + $0xe4] sm:$0xf] %v395
                %v397 = vld [vmem:[%s279 + $0x168] sm:$0xf]
                %398 = vst [vmem:[%s280 + $0xe8] sm:$0xf] %v397
                %v399 = vld [vmem:[%s279 + $0x16c] sm:$0xf]
                %400 = vst [vmem:[%s280 + $0xec] sm:$0xf] %v399
                %v401 = vld [vmem:[%s279 + $0x170] sm:$0xf]
                %402 = vst [vmem:[%s280 + $0xf0] sm:$0xf] %v401
                %v403 = vld [vmem:[%s279 + $0x174] sm:$0xf]
                %404 = vst [vmem:[%s280 + $0xf4] sm:$0xf] %v403
                %v405 = vld [vmem:[%s279 + $0x178] sm:$0xf]
                %406 = vst [vmem:[%s280 + $0xf8] sm:$0xf] %v405
                %v407 = vld [vmem:[%s279 + $0x17c] sm:$0xf]
                %408 = vst [vmem:[%s280 + $0xfc] sm:$0xf] %v407
                %v409 = vld [vmem:[%s279 + $0x200] sm:$0xf]
                %410 = vst [vmem:[%s280 + $0x100] sm:$0xf] %v409
                %v411 = vld [vmem:[%s279 + $0x204] sm:$0xf]
                %412 = vst [vmem:[%s280 + $0x104] sm:$0xf] %v411
                %v413 = vld [vmem:[%s279 + $0x208] sm:$0xf]
                %414 = vst [vmem:[%s280 + $0x108] sm:$0xf] %v413
                %v415 = vld [vmem:[%s279 + $0x20c] sm:$0xf]
                %416 = vst [vmem:[%s280 + $0x10c] sm:$0xf] %v415
                %v417 = vld [vmem:[%s279 + $0x210] sm:$0xf]
                %418 = vst [vmem:[%s280 + $0x110] sm:$0xf] %v417
                %v419 = vld [vmem:[%s279 + $0x214] sm:$0xf]
                %420 = vst [vmem:[%s280 + $0x114] sm:$0xf] %v419
                %v421 = vld [vmem:[%s279 + $0x218] sm:$0xf]
                %422 = vst [vmem:[%s280 + $0x118] sm:$0xf] %v421
                %v423 = vld [vmem:[%s279 + $0x21c] sm:$0xf]
                %424 = vst [vmem:[%s280 + $0x11c] sm:$0xf] %v423
                %v425 = vld [vmem:[%s279 + $0x220] sm:$0xf]
                %426 = vst [vmem:[%s280 + $0x120] sm:$0xf] %v425
                %v427 = vld [vmem:[%s279 + $0x224] sm:$0xf]
                %428 = vst [vmem:[%s280 + $0x124] sm:$0xf] %v427
                %v429 = vld [vmem:[%s279 + $0x228] sm:$0xf]
                %430 = vst [vmem:[%s280 + $0x128] sm:$0xf] %v429
                %v431 = vld [vmem:[%s279 + $0x22c] sm:$0xf]
                %432 = vst [vmem:[%s280 + $0x12c] sm:$0xf] %v431
                %v433 = vld [vmem:[%s279 + $0x230] sm:$0xf]
                %434 = vst [vmem:[%s280 + $0x130] sm:$0xf] %v433
                %v435 = vld [vmem:[%s279 + $0x234] sm:$0xf]
                %436 = vst [vmem:[%s280 + $0x134] sm:$0xf] %v435
                %v437 = vld [vmem:[%s279 + $0x238] sm:$0xf]
                %438 = vst [vmem:[%s280 + $0x138] sm:$0xf] %v437
                %v439 = vld [vmem:[%s279 + $0x23c] sm:$0xf]
                %440 = vst [vmem:[%s280 + $0x13c] sm:$0xf] %v439
                %v441 = vld [vmem:[%s279 + $0x240] sm:$0xf]
                %442 = vst [vmem:[%s280 + $0x140] sm:$0xf] %v441
                %v443 = vld [vmem:[%s279 + $0x244] sm:$0xf]
                %444 = vst [vmem:[%s280 + $0x144] sm:$0xf] %v443
                %v445 = vld [vmem:[%s279 + $0x248] sm:$0xf]
                %446 = vst [vmem:[%s280 + $0x148] sm:$0xf] %v445
                %v447 = vld [vmem:[%s279 + $0x24c] sm:$0xf]
                %448 = vst [vmem:[%s280 + $0x14c] sm:$0xf] %v447
                %v449 = vld [vmem:[%s279 + $0x250] sm:$0xf]
                %450 = vst [vmem:[%s280 + $0x150] sm:$0xf] %v449
                %v451 = vld [vmem:[%s279 + $0x254] sm:$0xf]
                %452 = vst [vmem:[%s280 + $0x154] sm:$0xf] %v451
                %v453 = vld [vmem:[%s279 + $0x258] sm:$0xf]
                %454 = vst [vmem:[%s280 + $0x158] sm:$0xf] %v453
                %v455 = vld [vmem:[%s279 + $0x25c] sm:$0xf]
                %456 = vst [vmem:[%s280 + $0x15c] sm:$0xf] %v455
                %v457 = vld [vmem:[%s279 + $0x260] sm:$0xf]
                %458 = vst [vmem:[%s280 + $0x160] sm:$0xf] %v457
                %v459 = vld [vmem:[%s279 + $0x264] sm:$0xf]
                %460 = vst [vmem:[%s280 + $0x164] sm:$0xf] %v459
                %v461 = vld [vmem:[%s279 + $0x268] sm:$0xf]
                %462 = vst [vmem:[%s280 + $0x168] sm:$0xf] %v461
                %v463 = vld [vmem:[%s279 + $0x26c] sm:$0xf]
                %464 = vst [vmem:[%s280 + $0x16c] sm:$0xf] %v463
                %v465 = vld [vmem:[%s279 + $0x270] sm:$0xf]
                %466 = vst [vmem:[%s280 + $0x170] sm:$0xf] %v465
                %v467 = vld [vmem:[%s279 + $0x274] sm:$0xf]
                %468 = vst [vmem:[%s280 + $0x174] sm:$0xf] %v467
                %v469 = vld [vmem:[%s279 + $0x278] sm:$0xf]
                %470 = vst [vmem:[%s280 + $0x178] sm:$0xf] %v469
                %v471 = vld [vmem:[%s279 + $0x27c] sm:$0xf]
                %472 = vst [vmem:[%s280 + $0x17c] sm:$0xf] %v471
                %v473 = vld [vmem:[%s279 + $0x300] sm:$0xf]
                %474 = vst [vmem:[%s280 + $0x180] sm:$0xf] %v473
                %v475 = vld [vmem:[%s279 + $0x304] sm:$0xf]
                %476 = vst [vmem:[%s280 + $0x184] sm:$0xf] %v475
                %v477 = vld [vmem:[%s279 + $0x308] sm:$0xf]
                %478 = vst [vmem:[%s280 + $0x188] sm:$0xf] %v477
                %v479 = vld [vmem:[%s279 + $0x30c] sm:$0xf]
                %480 = vst [vmem:[%s280 + $0x18c] sm:$0xf] %v479
                %v481 = vld [vmem:[%s279 + $0x310] sm:$0xf]
                %482 = vst [vmem:[%s280 + $0x190] sm:$0xf] %v481
                %v483 = vld [vmem:[%s279 + $0x314] sm:$0xf]
                %484 = vst [vmem:[%s280 + $0x194] sm:$0xf] %v483
                %v485 = vld [vmem:[%s279 + $0x318] sm:$0xf]
                %486 = vst [vmem:[%s280 + $0x198] sm:$0xf] %v485
                %v487 = vld [vmem:[%s279 + $0x31c] sm:$0xf]
                %488 = vst [vmem:[%s280 + $0x19c] sm:$0xf] %v487
                %v489 = vld [vmem:[%s279 + $0x320] sm:$0xf]
                %490 = vst [vmem:[%s280 + $0x1a0] sm:$0xf] %v489
                %v491 = vld [vmem:[%s279 + $0x324] sm:$0xf]
                %492 = vst [vmem:[%s280 + $0x1a4] sm:$0xf] %v491
                %v493 = vld [vmem:[%s279 + $0x328] sm:$0xf]
                %494 = vst [vmem:[%s280 + $0x1a8] sm:$0xf] %v493
                %v495 = vld [vmem:[%s279 + $0x32c] sm:$0xf]
                %496 = vst [vmem:[%s280 + $0x1ac] sm:$0xf] %v495
                %v497 = vld [vmem:[%s279 + $0x330] sm:$0xf]
                %498 = vst [vmem:[%s280 + $0x1b0] sm:$0xf] %v497
                %v499 = vld [vmem:[%s279 + $0x334] sm:$0xf]
                %500 = vst [vmem:[%s280 + $0x1b4] sm:$0xf] %v499
                %v501 = vld [vmem:[%s279 + $0x338] sm:$0xf]
                %502 = vst [vmem:[%s280 + $0x1b8] sm:$0xf] %v501
                %v503 = vld [vmem:[%s279 + $0x33c] sm:$0xf]
                %504 = vst [vmem:[%s280 + $0x1bc] sm:$0xf] %v503
                %v505 = vld [vmem:[%s279 + $0x340] sm:$0xf]
                %506 = vst [vmem:[%s280 + $0x1c0] sm:$0xf] %v505
                %v507 = vld [vmem:[%s279 + $0x344] sm:$0xf]
                %508 = vst [vmem:[%s280 + $0x1c4] sm:$0xf] %v507
                %v509 = vld [vmem:[%s279 + $0x348] sm:$0xf]
                %510 = vst [vmem:[%s280 + $0x1c8] sm:$0xf] %v509
                %v511 = vld [vmem:[%s279 + $0x34c] sm:$0xf]
                %512 = vst [vmem:[%s280 + $0x1cc] sm:$0xf] %v511
                %v513 = vld [vmem:[%s279 + $0x350] sm:$0xf]
                %514 = vst [vmem:[%s280 + $0x1d0] sm:$0xf] %v513
                %v515 = vld [vmem:[%s279 + $0x354] sm:$0xf]
                %516 = vst [vmem:[%s280 + $0x1d4] sm:$0xf] %v515
                %v517 = vld [vmem:[%s279 + $0x358] sm:$0xf]
                %518 = vst [vmem:[%s280 + $0x1d8] sm:$0xf] %v517
                %v519 = vld [vmem:[%s279 + $0x35c] sm:$0xf]
                %520 = vst [vmem:[%s280 + $0x1dc] sm:$0xf] %v519
                %v521 = vld [vmem:[%s279 + $0x360] sm:$0xf]
                %522 = vst [vmem:[%s280 + $0x1e0] sm:$0xf] %v521
                %v523 = vld [vmem:[%s279 + $0x364] sm:$0xf]
                %524 = vst [vmem:[%s280 + $0x1e4] sm:$0xf] %v523
                %v525 = vld [vmem:[%s279 + $0x368] sm:$0xf]
                %526 = vst [vmem:[%s280 + $0x1e8] sm:$0xf] %v525
                %v527 = vld [vmem:[%s279 + $0x36c] sm:$0xf]
                %528 = vst [vmem:[%s280 + $0x1ec] sm:$0xf] %v527
                %v529 = vld [vmem:[%s279 + $0x370] sm:$0xf]
                %530 = vst [vmem:[%s280 + $0x1f0] sm:$0xf] %v529
                %v531 = vld [vmem:[%s279 + $0x374] sm:$0xf]
                %532 = vst [vmem:[%s280 + $0x1f4] sm:$0xf] %v531
                %v533 = vld [vmem:[%s279 + $0x378] sm:$0xf]
                %534 = vst [vmem:[%s280 + $0x1f8] sm:$0xf] %v533
                %v535 = vld [vmem:[%s279 + $0x37c] sm:$0xf]
                %536 = vst [vmem:[%s280 + $0x1fc] sm:$0xf] %v535
              $region61: #{synthesizer_forward.1} parent=55 // loop_footer
                %s278 = sadd.s32 1, %s274
              $region62: #{synthesizer_forward.1} parent=55 // loop_footer_branch
                %273 = sbr.rel target = $region58
              $region63: #{synthesizer_forward.1} parent=55 // loop_exit
                _
            $region56: #{synthesizer_forward.1} parent=47 // pred_fallthru
              _
          $region48: #{synthesizer_forward.1} parent=43 // pred_fallthru
            _
          %812 = vnop
        $region44: #{synthesizer_forward.1} parent=39 // pred_fallthru
          _
        // Predicated region
        $region82: #{synthesizer_forward.1} parent=39 // pred_check
          %p813 = pneg %p61
        $region83: #{synthesizer_forward.1} parent=39 // pred_check_branch
          %815 = sbr.rel (%p813) target = $region85
        $region84: #{synthesizer_forward.1} parent=39 // pred_region
          %s816 = smul.u32 32, %s15
          %p817 = scmp.lt.s32.totalorder %s816, 63
          %s818 = scalar_select %p817, %s816, 63
          %s819 = smul.addr %s818, 4
          %s820 = scalar_lea.vmem %s1, %s819
          %s821 = smul.u32 32, %s15
        $region85: #{synthesizer_forward.1} parent=39 // pred_fallthru
          _
      $region40: #{synthesizer_forward.1} parent=5 // pred_fallthru
        _
      %p822 = scmp.le.s32.totalorder 1, %s15
      %p823 = scmp.lt.s32.totalorder %s15, 3
      %p824 = pnand %p822, %p823
      %p825 = pneg %p824
      // Predicated region
      $region86: #{synthesizer_forward.1} parent=5 // pred_check
        _
      $region87: #{synthesizer_forward.1} parent=5 // pred_check_branch
        %827 = sbr.rel (%p824) target = $region89
      $region88: #{synthesizer_forward.1} parent=5 // pred_region
        %s828 = ssub.s32 %s15, 1
        %s829 = sand.u32 %s28, 1
        %s830 = sand.u32 %s28, 1
        %s831 = smul.addr %s830, 512
        %s832 = scalar_lea.vmem [#allocation3], %s831
        // Predicated region
        $region90: #{synthesizer_forward.1} parent=88 // pred_check
          %p833 = pneg %p41
        $region91: #{synthesizer_forward.1} parent=88 // pred_check_branch
          %835 = sbr.rel (%p833) target = $region93
        $region92: #{synthesizer_forward.1} parent=88 // pred_region
          _
        $region93: #{synthesizer_forward.1} parent=88 // pred_fallthru
          _
        %s836 = sand.u32 %s28, 1
        %s837 = sand.u32 %s28, 1
        %s838 = smul.addr %s837, 512
        %s839 = scalar_lea.vmem [#allocation3], %s838
        %p840 = pneg %p41
        %p841 = pneg %p38
        %s842 = smul.u32 32, %s20
        %p843 = scmp.lt.s32.totalorder %s842, 63
        %s844 = scalar_select %p843, %s842, 63
        %s845 = smul.addr %s844, 4
        %s846 = scalar_lea.vmem %s1, %s845
        %p847 = pneg %p67
        %p848 = pneg %p64
        %p849 = pneg %p88
        %p850 = pneg %p85
        %p851 = pneg %p109
        %p852 = pneg %p106
        %p853 = pneg %p130
        %p854 = pneg %p127
        %p855 = pneg %p151
        %p856 = pneg %p148
        %p857 = pneg %p172
        %p858 = pneg %p169
        %p859 = pneg %p193
        %p860 = pneg %p190
        %p861 = pneg %p219
        %p862 = pneg %p216
        %s863 = smul.u32 32, %s20
        %p864 = scmp.lt.s32.totalorder %s863, 63
        %s865 = scalar_select %p864, %s863, 63
        %s866 = smul.addr %s865, 8
        %s867 = scalar_lea.vmem %s8, %s866
        %s868 = smul.u32 32, %s20
        %s869 = smul.u32 32, %s20
        %p870 = scmp.lt.s32.totalorder %s869, 63
        %s871 = scalar_select %p870, %s869, 63
        %s872 = smul.addr %s871, 4
        %s873 = scalar_lea.vmem %s1, %s872
        %s874 = smul.u32 32, %s20
        %s875 = smul.u32 32, %s20
        %p876 = scmp.lt.s32.totalorder %s875, 63
        %s877 = scalar_select %p876, %s875, 63
        %s878 = smul.addr %s877, 8
        %s879 = scalar_lea.vmem %s8, %s878
        %s880 = smul.u32 32, %s20
        %v882 = vld [vmem:[%s873] sm:$0xf]
        %v883 = vld [vmem:[%s873 + $0x4] sm:$0xf]
        %v884 = vld [vmem:[%s873 + $0x8] sm:$0xf]
        %v885 = vld [vmem:[%s873 + $0xc] sm:$0xf]
        %v886 = vld [vmem:[%s873 + $0x10] sm:$0xf]
        %v887 = vld [vmem:[%s873 + $0x14] sm:$0xf]
        %v888 = vld [vmem:[%s873 + $0x18] sm:$0xf]
        %v889 = vld [vmem:[%s873 + $0x1c] sm:$0xf]
        %v890 = vld [vmem:[%s873 + $0x20] sm:$0xf]
        %v891 = vld [vmem:[%s873 + $0x24] sm:$0xf]
        %v892 = vld [vmem:[%s873 + $0x28] sm:$0xf]
        %v893 = vld [vmem:[%s873 + $0x2c] sm:$0xf]
        %v894 = vld [vmem:[%s873 + $0x30] sm:$0xf]
        %v895 = vld [vmem:[%s873 + $0x34] sm:$0xf]
        %v896 = vld [vmem:[%s873 + $0x38] sm:$0xf]
        %v897 = vld [vmem:[%s873 + $0x3c] sm:$0xf]
        %v898 = vld [vmem:[%s873 + $0x40] sm:$0xf]
        %v899 = vld [vmem:[%s873 + $0x44] sm:$0xf]
        %v900 = vld [vmem:[%s873 + $0x48] sm:$0xf]
        %v901 = vld [vmem:[%s873 + $0x4c] sm:$0xf]
        %v902 = vld [vmem:[%s873 + $0x50] sm:$0xf]
        %v903 = vld [vmem:[%s873 + $0x54] sm:$0xf]
        %v904 = vld [vmem:[%s873 + $0x58] sm:$0xf]
        %v905 = vld [vmem:[%s873 + $0x5c] sm:$0xf]
        %v906 = vld [vmem:[%s873 + $0x60] sm:$0xf]
        %v907 = vld [vmem:[%s873 + $0x64] sm:$0xf]
        %v908 = vld [vmem:[%s873 + $0x68] sm:$0xf]
        %v909 = vld [vmem:[%s873 + $0x6c] sm:$0xf]
        %v910 = vld [vmem:[%s873 + $0x70] sm:$0xf]
        %v911 = vld [vmem:[%s873 + $0x74] sm:$0xf]
        %v912 = vld [vmem:[%s873 + $0x78] sm:$0xf]
        %v913 = vld [vmem:[%s873 + $0x7c] sm:$0xf]
        %v914 = vld [vmem:[%s2] sm:$0x1]
        %v915 = vld [vmem:[%s3] sm:$0x1]
        %s916 = sld [smem:[#allocation2]]
        %v917 = vunpack.c.l.bf16 %v882
        %v918 = vunpack.c.l.bf16 %v883
        %v919 = vunpack.c.l.bf16 %v884
        %v920 = vunpack.c.l.bf16 %v885
        %v921 = vunpack.c.l.bf16 %v886
        %v922 = vunpack.c.l.bf16 %v887
        %v923 = vunpack.c.l.bf16 %v888
        %v924 = vunpack.c.l.bf16 %v889
        %v925 = vunpack.c.l.bf16 %v890
        %v926 = vunpack.c.l.bf16 %v891
        %v927 = vunpack.c.l.bf16 %v892
        %v928 = vunpack.c.l.bf16 %v893
        %v929 = vunpack.c.l.bf16 %v894
        %v930 = vunpack.c.l.bf16 %v895
        %v931 = vunpack.c.l.bf16 %v896
        %v932 = vunpack.c.l.bf16 %v897
        %v933 = vunpack.c.l.bf16 %v898
        %v934 = vunpack.c.l.bf16 %v899
        %v935 = vunpack.c.l.bf16 %v900
        %v936 = vunpack.c.l.bf16 %v901
        %v937 = vunpack.c.l.bf16 %v902
        %v938 = vunpack.c.l.bf16 %v903
        %v939 = vunpack.c.l.bf16 %v904
        %v940 = vunpack.c.l.bf16 %v905
        %v941 = vunpack.c.l.bf16 %v906
        %v942 = vunpack.c.l.bf16 %v907
        %v943 = vunpack.c.l.bf16 %v908
        %v944 = vunpack.c.l.bf16 %v909
        %v945 = vunpack.c.l.bf16 %v910
        %v946 = vunpack.c.l.bf16 %v911
        %v947 = vunpack.c.l.bf16 %v912
        %v948 = vunpack.c.l.bf16 %v913
        %v950 = vlaneseq
        %v951 = vshrl.u32 %v950, 7
        %v952 = vsub.s32 0, %v951
        %v953 = vrot.slane %v915, %v952
        %v955 = vmul.f32 %v917, %v953
        %v956 = vmul.f32 %v918, %v953
        %v957 = vmul.f32 %v919, %v953
        %v958 = vmul.f32 %v920, %v953
        %v959 = vmul.f32 %v921, %v953
        %v960 = vmul.f32 %v922, %v953
        %v961 = vmul.f32 %v923, %v953
        %v962 = vmul.f32 %v924, %v953
        %v963 = vmul.f32 %v925, %v953
        %v964 = vmul.f32 %v926, %v953
        %v965 = vmul.f32 %v927, %v953
        %v966 = vmul.f32 %v928, %v953
        %v967 = vmul.f32 %v929, %v953
        %v968 = vmul.f32 %v930, %v953
        %v969 = vmul.f32 %v931, %v953
        %v970 = vmul.f32 %v932, %v953
        %v971 = vmul.f32 %v933, %v953
        %v972 = vmul.f32 %v934, %v953
        %v973 = vmul.f32 %v935, %v953
        %v974 = vmul.f32 %v936, %v953
        %v975 = vmul.f32 %v937, %v953
        %v976 = vmul.f32 %v938, %v953
        %v977 = vmul.f32 %v939, %v953
        %v978 = vmul.f32 %v940, %v953
        %v979 = vmul.f32 %v941, %v953
        %v980 = vmul.f32 %v942, %v953
        %v981 = vmul.f32 %v943, %v953
        %v982 = vmul.f32 %v944, %v953
        %v983 = vmul.f32 %v945, %v953
        %v984 = vmul.f32 %v946, %v953
        %v985 = vmul.f32 %v947, %v953
        %v986 = vmul.f32 %v948, %v953
        %vm987 = vcmask 261120
        %v988 = vsel %vm987, %v955, 0.0
        %989 = vadd.xlane.f32.xlu0 %v988
        %v990 = vpop.xlane.xlu0 %989
        %v991 = vsel %vm987, %v956, 0.0
        %992 = vadd.xlane.f32.xlu0 %v991
        %v993 = vpop.xlane.xlu0 %992
        %v994 = vsel %vm987, %v957, 0.0
        %995 = vadd.xlane.f32.xlu0 %v994
        %v996 = vpop.xlane.xlu0 %995
        %v997 = vsel %vm987, %v958, 0.0
        %998 = vadd.xlane.f32.xlu0 %v997
        %v999 = vpop.xlane.xlu0 %998
        %v1000 = vsel %vm987, %v959, 0.0
        %1001 = vadd.xlane.f32.xlu0 %v1000
        %v1002 = vpop.xlane.xlu0 %1001
        %v1003 = vsel %vm987, %v960, 0.0
        %1004 = vadd.xlane.f32.xlu0 %v1003
        %v1005 = vpop.xlane.xlu0 %1004
        %v1006 = vsel %vm987, %v961, 0.0
        %1007 = vadd.xlane.f32.xlu0 %v1006
        %v1008 = vpop.xlane.xlu0 %1007
        %v1009 = vsel %vm987, %v962, 0.0
        %1010 = vadd.xlane.f32.xlu0 %v1009
        %v1011 = vpop.xlane.xlu0 %1010
        %v1012 = vsel %vm987, %v963, 0.0
        %1013 = vadd.xlane.f32.xlu0 %v1012
        %v1014 = vpop.xlane.xlu0 %1013
        %v1015 = vsel %vm987, %v964, 0.0
        %1016 = vadd.xlane.f32.xlu0 %v1015
        %v1017 = vpop.xlane.xlu0 %1016
        %v1018 = vsel %vm987, %v965, 0.0
        %1019 = vadd.xlane.f32.xlu0 %v1018
        %v1020 = vpop.xlane.xlu0 %1019
        %v1021 = vsel %vm987, %v966, 0.0
        %1022 = vadd.xlane.f32.xlu0 %v1021
        %v1023 = vpop.xlane.xlu0 %1022
        %v1024 = vsel %vm987, %v967, 0.0
        %1025 = vadd.xlane.f32.xlu0 %v1024
        %v1026 = vpop.xlane.xlu0 %1025
        %v1027 = vsel %vm987, %v968, 0.0
        %1028 = vadd.xlane.f32.xlu0 %v1027
        %v1029 = vpop.xlane.xlu0 %1028
        %v1030 = vsel %vm987, %v969, 0.0
        %1031 = vadd.xlane.f32.xlu0 %v1030
        %v1032 = vpop.xlane.xlu0 %1031
        %v1033 = vsel %vm987, %v970, 0.0
        %1034 = vadd.xlane.f32.xlu0 %v1033
        %v1035 = vpop.xlane.xlu0 %1034
        %v1036 = vsel %vm987, %v971, 0.0
        %1037 = vadd.xlane.f32.xlu0 %v1036
        %v1038 = vpop.xlane.xlu0 %1037
        %v1039 = vsel %vm987, %v972, 0.0
        %1040 = vadd.xlane.f32.xlu0 %v1039
        %v1041 = vpop.xlane.xlu0 %1040
        %v1042 = vsel %vm987, %v973, 0.0
        %1043 = vadd.xlane.f32.xlu0 %v1042
        %v1044 = vpop.xlane.xlu0 %1043
        %v1045 = vsel %vm987, %v974, 0.0
        %1046 = vadd.xlane.f32.xlu0 %v1045
        %v1047 = vpop.xlane.xlu0 %1046
        %v1048 = vsel %vm987, %v975, 0.0
        %1049 = vadd.xlane.f32.xlu0 %v1048
        %v1050 = vpop.xlane.xlu0 %1049
        %v1051 = vsel %vm987, %v976, 0.0
        %1052 = vadd.xlane.f32.xlu0 %v1051
        %v1053 = vpop.xlane.xlu0 %1052
        %v1054 = vsel %vm987, %v977, 0.0
        %1055 = vadd.xlane.f32.xlu0 %v1054
        %v1056 = vpop.xlane.xlu0 %1055
        %v1057 = vsel %vm987, %v978, 0.0
        %1058 = vadd.xlane.f32.xlu0 %v1057
        %v1059 = vpop.xlane.xlu0 %1058
        %v1060 = vsel %vm987, %v979, 0.0
        %1061 = vadd.xlane.f32.xlu0 %v1060
        %v1062 = vpop.xlane.xlu0 %1061
        %v1063 = vsel %vm987, %v980, 0.0
        %1064 = vadd.xlane.f32.xlu0 %v1063
        %v1065 = vpop.xlane.xlu0 %1064
        %v1066 = vsel %vm987, %v981, 0.0
        %1067 = vadd.xlane.f32.xlu0 %v1066
        %v1068 = vpop.xlane.xlu0 %1067
        %v1069 = vsel %vm987, %v982, 0.0
        %1070 = vadd.xlane.f32.xlu0 %v1069
        %v1071 = vpop.xlane.xlu0 %1070
        %v1072 = vsel %vm987, %v983, 0.0
        %1073 = vadd.xlane.f32.xlu0 %v1072
        %v1074 = vpop.xlane.xlu0 %1073
        %v1075 = vsel %vm987, %v984, 0.0
        %1076 = vadd.xlane.f32.xlu0 %v1075
        %v1077 = vpop.xlane.xlu0 %1076
        %v1078 = vsel %vm987, %v985, 0.0
        %1079 = vadd.xlane.f32.xlu0 %v1078
        %v1080 = vpop.xlane.xlu0 %1079
        %v1081 = vsel %vm987, %v986, 0.0
        %1082 = vadd.xlane.f32.xlu0 %v1081
        %v1083 = vpop.xlane.xlu0 %1082
        %v1084 = vstv %s916
        %v1085 = vadd.f32 %v990, %v1084
        %v1086 = vadd.f32 %v993, %v1084
        %v1087 = vadd.f32 %v996, %v1084
        %v1088 = vadd.f32 %v999, %v1084
        %v1089 = vadd.f32 %v1002, %v1084
        %v1090 = vadd.f32 %v1005, %v1084
        %v1091 = vadd.f32 %v1008, %v1084
        %v1092 = vadd.f32 %v1011, %v1084
        %v1093 = vadd.f32 %v1014, %v1084
        %v1094 = vadd.f32 %v1017, %v1084
        %v1095 = vadd.f32 %v1020, %v1084
        %v1096 = vadd.f32 %v1023, %v1084
        %v1097 = vadd.f32 %v1026, %v1084
        %v1098 = vadd.f32 %v1029, %v1084
        %v1099 = vadd.f32 %v1032, %v1084
        %v1100 = vadd.f32 %v1035, %v1084
        %v1101 = vadd.f32 %v1038, %v1084
        %v1102 = vadd.f32 %v1041, %v1084
        %v1103 = vadd.f32 %v1044, %v1084
        %v1104 = vadd.f32 %v1047, %v1084
        %v1105 = vadd.f32 %v1050, %v1084
        %v1106 = vadd.f32 %v1053, %v1084
        %v1107 = vadd.f32 %v1056, %v1084
        %v1108 = vadd.f32 %v1059, %v1084
        %v1109 = vadd.f32 %v1062, %v1084
        %v1110 = vadd.f32 %v1065, %v1084
        %v1111 = vadd.f32 %v1068, %v1084
        %v1112 = vadd.f32 %v1071, %v1084
        %v1113 = vadd.f32 %v1074, %v1084
        %v1114 = vadd.f32 %v1077, %v1084
        %v1115 = vadd.f32 %v1080, %v1084
        %v1116 = vadd.f32 %v1083, %v1084
        %v1117 = vmax.bf16 %v882, 0
        %v1118 = vmax.bf16 %v883, 0
        %v1119 = vmax.bf16 %v884, 0
        %v1120 = vmax.bf16 %v885, 0
        %v1121 = vmax.bf16 %v886, 0
        %v1122 = vmax.bf16 %v887, 0
        %v1123 = vmax.bf16 %v888, 0
        %v1124 = vmax.bf16 %v889, 0
        %v1125 = vmax.bf16 %v890, 0
        %v1126 = vmax.bf16 %v891, 0
        %v1127 = vmax.bf16 %v892, 0
        %v1128 = vmax.bf16 %v893, 0
        %v1129 = vmax.bf16 %v894, 0
        %v1130 = vmax.bf16 %v895, 0
        %v1131 = vmax.bf16 %v896, 0
        %v1132 = vmax.bf16 %v897, 0
        %v1133 = vmax.bf16 %v898, 0
        %v1134 = vmax.bf16 %v899, 0
        %v1135 = vmax.bf16 %v900, 0
        %v1136 = vmax.bf16 %v901, 0
        %v1137 = vmax.bf16 %v902, 0
        %v1138 = vmax.bf16 %v903, 0
        %v1139 = vmax.bf16 %v904, 0
        %v1140 = vmax.bf16 %v905, 0
        %v1141 = vmax.bf16 %v906, 0
        %v1142 = vmax.bf16 %v907, 0
        %v1143 = vmax.bf16 %v908, 0
        %v1144 = vmax.bf16 %v909, 0
        %v1145 = vmax.bf16 %v910, 0
        %v1146 = vmax.bf16 %v911, 0
        %v1147 = vmax.bf16 %v912, 0
        %v1148 = vmax.bf16 %v913, 0
        %v1149 = vld [vmem:[%s6] sm:$0xf]
        %v1150 = vld [vmem:[%s6 + $0x4] sm:$0xf]
        %v1151 = vld [vmem:[%s6 + $0x8] sm:$0xf]
        %v1152 = vld [vmem:[%s6 + $0xc] sm:$0xf]
        %v1153 = vld [vmem:[%s7] sm:$0x1]
        %v1155 = vlaneseq
        %v1156 = vshrl.u32 %v1155, 7
        %v1157 = vsub.s32 0, %v1156
        %v1158 = vrot.slane %v1153, %v1157
        %v1192 = vunpack.c.l.b16 %v1117
        %v1193 = vunpack.c.l.b16 %v1118
        %v1194 = vunpack.c.l.b16 %v1119
        %v1195 = vunpack.c.l.b16 %v1120
        %v1196 = vunpack.c.l.b16 %v1121
        %v1197 = vunpack.c.l.b16 %v1122
        %v1198 = vunpack.c.l.b16 %v1123
        %v1199 = vunpack.c.l.b16 %v1124
        %v1200 = vunpack.c.l.b16 %v1125
        %v1201 = vunpack.c.l.b16 %v1126
        %v1202 = vunpack.c.l.b16 %v1127
        %v1203 = vunpack.c.l.b16 %v1128
        %v1204 = vunpack.c.l.b16 %v1129
        %v1205 = vunpack.c.l.b16 %v1130
        %v1206 = vunpack.c.l.b16 %v1131
        %v1207 = vunpack.c.l.b16 %v1132
        %v1208 = vunpack.c.l.b16 %v1133
        %v1209 = vunpack.c.l.b16 %v1134
        %v1210 = vunpack.c.l.b16 %v1135
        %v1211 = vunpack.c.l.b16 %v1136
        %v1212 = vunpack.c.l.b16 %v1137
        %v1213 = vunpack.c.l.b16 %v1138
        %v1214 = vunpack.c.l.b16 %v1139
        %v1215 = vunpack.c.l.b16 %v1140
        %v1216 = vunpack.c.l.b16 %v1141
        %v1217 = vunpack.c.l.b16 %v1142
        %v1218 = vunpack.c.l.b16 %v1143
        %v1219 = vunpack.c.l.b16 %v1144
        %v1220 = vunpack.c.l.b16 %v1145
        %v1221 = vunpack.c.l.b16 %v1146
        %v1222 = vunpack.c.l.b16 %v1147
        %v1223 = vunpack.c.l.b16 %v1148
        %v1224 = vpack.c.b16 %v1193, %v1192
        %v1225 = vpack.c.b16 %v1195, %v1194
        %v1226 = vpack.c.b16 %v1197, %v1196
        %v1227 = vpack.c.b16 %v1199, %v1198
        %v1228 = vpack.c.b16 %v1201, %v1200
        %v1229 = vpack.c.b16 %v1203, %v1202
        %v1230 = vpack.c.b16 %v1205, %v1204
        %v1231 = vpack.c.b16 %v1207, %v1206
        %v1232 = vpack.c.b16 %v1209, %v1208
        %v1233 = vpack.c.b16 %v1211, %v1210
        %v1234 = vpack.c.b16 %v1213, %v1212
        %v1235 = vpack.c.b16 %v1215, %v1214
        %v1236 = vpack.c.b16 %v1217, %v1216
        %v1237 = vpack.c.b16 %v1219, %v1218
        %v1238 = vpack.c.b16 %v1221, %v1220
        %v1239 = vpack.c.b16 %v1223, %v1222
        %v1244 = vunpack.c.l.b16 %v1149
        %v1245 = vunpack.c.l.b16 %v1150
        %v1246 = vunpack.c.l.b16 %v1151
        %v1247 = vunpack.c.l.b16 %v1152
        %v1248 = vpack.c.b16 %v1245, %v1244
        %v1249 = vpack.c.b16 %v1247, %v1246
        %v1253 = vsel %vm987, %v1224, 0
        %v1256 = vsel %vm987, %v1225, 0
        %v1259 = vsel %vm987, %v1226, 0
        %v1262 = vsel %vm987, %v1227, 0
        %v1265 = vsel %vm987, %v1228, 0
        %v1268 = vsel %vm987, %v1229, 0
        %v1271 = vsel %vm987, %v1230, 0
        %v1274 = vsel %vm987, %v1231, 0
        %v1277 = vsel %vm987, %v1232, 0
        %v1280 = vsel %vm987, %v1233, 0
        %v1283 = vsel %vm987, %v1234, 0
        %v1286 = vsel %vm987, %v1235, 0
        %v1289 = vsel %vm987, %v1236, 0
        %v1292 = vsel %vm987, %v1237, 0
        %v1295 = vsel %vm987, %v1238, 0
        %v1298 = vsel %vm987, %v1239, 0
        %1300 = vmatprep.subr.bf16.mxu0 0
        %1301 = vmatpush1.bf16.msra.mxu0 %v1248
        %1302 = vmatprep.subr.bf16.mxu0 0
        %1303 = vmatpush1.bf16.msra.mxu0 %v1249
        %1304 = vmatprep.subr.bf16.mxu0 0
        %1305 = vmatpush1.bf16.msra.mxu0 0
        %1306 = vmatprep.subr.bf16.mxu0 0
        %1307 = vmatpush1.bf16.msra.mxu0 0
        %1308 = vmatprep.subr.bf16.mxu0 0
        %1309 = vmatpush1.bf16.msra.mxu0 0
        %1310 = vmatprep.subr.bf16.mxu0 0
        %1311 = vmatpush1.bf16.msra.mxu0 0
        %1312 = vmatprep.subr.bf16.mxu0 0
        %1313 = vmatpush1.bf16.msra.mxu0 0
        %1314 = vmatprep.subr.bf16.mxu0 0
        %1315 = vmatpush1.bf16.msra.mxu0 0
        %1316 = vmatprep.subr.bf16.mxu0 0
        %1317 = vmatpush1.bf16.msra.mxu0 0
        %1318 = vmatprep.subr.bf16.mxu0 0
        %1319 = vmatpush1.bf16.msra.mxu0 0
        %1320 = vmatprep.subr.bf16.mxu0 0
        %1321 = vmatpush1.bf16.msra.mxu0 0
        %1322 = vmatprep.subr.bf16.mxu0 0
        %1323 = vmatpush1.bf16.msra.mxu0 0
        %1324 = vmatprep.subr.bf16.mxu0 0
        %1325 = vmatpush1.bf16.msra.mxu0 0
        %1326 = vmatprep.subr.bf16.mxu0 0
        %1327 = vmatpush1.bf16.msra.mxu0 0
        %1328 = vmatprep.subr.bf16.mxu0 0
        %1329 = vmatpush1.bf16.msra.mxu0 0
        %1330 = vmatprep.subr.bf16.mxu0 0
        %1331 = vmatpush1.bf16.msra.mxu0 0
        %1332 = vmatprep.mubr.bf16.mxu0 0
        %1333 = vmatmul.mubr.bf16.gmra.mrb[0].mxu0 %v1253
        %v1334 = vpop.f32.mrb[0].mxu0
        %v1335 = vadd.f32 %v1158, %v1334
        %v1336 = vpop.f32.mrb[0].mxu0
        %v1337 = vpop.f32.mrb[0].mxu0
        %v1338 = vadd.f32 %v1158, %v1337
        %v1339 = vpop.f32.mrb[0].mxu0
        %1340 = vmatprep.mubr.bf16.mxu0 0
        %1341 = vmatmul.mubr.bf16.gmra.mrb[0].mxu0 %v1256
        %v1342 = vpop.f32.mrb[0].mxu0
        %v1343 = vadd.f32 %v1158, %v1342
        %v1344 = vpop.f32.mrb[0].mxu0
        %v1345 = vpop.f32.mrb[0].mxu0
        %v1346 = vadd.f32 %v1158, %v1345
        %v1347 = vpop.f32.mrb[0].mxu0
        %1348 = vmatprep.mubr.bf16.mxu0 0
        %1349 = vmatmul.mubr.bf16.gmra.mrb[0].mxu0 %v1259
        %v1350 = vpop.f32.mrb[0].mxu0
        %v1351 = vadd.f32 %v1158, %v1350
        %v1352 = vpop.f32.mrb[0].mxu0
        %v1353 = vpop.f32.mrb[0].mxu0
        %v1354 = vadd.f32 %v1158, %v1353
        %v1355 = vpop.f32.mrb[0].mxu0
        %1356 = vmatprep.mubr.bf16.mxu0 0
        %1357 = vmatmul.mubr.bf16.gmra.mrb[0].mxu0 %v1262
        %v1358 = vpop.f32.mrb[0].mxu0
        %v1359 = vadd.f32 %v1158, %v1358
        %v1360 = vpop.f32.mrb[0].mxu0
        %v1361 = vpop.f32.mrb[0].mxu0
        %v1362 = vadd.f32 %v1158, %v1361
        %v1363 = vpop.f32.mrb[0].mxu0
        %1364 = vmatprep.mubr.bf16.mxu0 0
        %1365 = vmatmul.mubr.bf16.gmra.mrb[0].mxu0 %v1265
        %v1366 = vpop.f32.mrb[0].mxu0
        %v1367 = vadd.f32 %v1158, %v1366
        %v1368 = vpop.f32.mrb[0].mxu0
        %v1369 = vpop.f32.mrb[0].mxu0
        %v1370 = vadd.f32 %v1158, %v1369
        %v1371 = vpop.f32.mrb[0].mxu0
        %1372 = vmatprep.mubr.bf16.mxu0 0
        %1373 = vmatmul.mubr.bf16.gmra.mrb[0].mxu0 %v1268
        %v1374 = vpop.f32.mrb[0].mxu0
        %v1375 = vadd.f32 %v1158, %v1374
        %v1376 = vpop.f32.mrb[0].mxu0
        %v1377 = vpop.f32.mrb[0].mxu0
        %v1378 = vadd.f32 %v1158, %v1377
        %v1379 = vpop.f32.mrb[0].mxu0
        %1380 = vmatprep.mubr.bf16.mxu0 0
        %1381 = vmatmul.mubr.bf16.gmra.mrb[0].mxu0 %v1271
        %v1382 = vpop.f32.mrb[0].mxu0
        %v1383 = vadd.f32 %v1158, %v1382
        %v1384 = vpop.f32.mrb[0].mxu0
        %v1385 = vpop.f32.mrb[0].mxu0
        %v1386 = vadd.f32 %v1158, %v1385
        %v1387 = vpop.f32.mrb[0].mxu0
        %1388 = vmatprep.mubr.bf16.mxu0 0
        %1389 = vmatmul.mubr.bf16.gmra.mrb[0].mxu0 %v1274
        %v1390 = vpop.f32.mrb[0].mxu0
        %v1391 = vadd.f32 %v1158, %v1390
        %v1392 = vpop.f32.mrb[0].mxu0
        %v1393 = vpop.f32.mrb[0].mxu0
        %v1394 = vadd.f32 %v1158, %v1393
        %v1395 = vpop.f32.mrb[0].mxu0
        %1396 = vmatprep.mubr.bf16.mxu0 0
        %1397 = vmatmul.mubr.bf16.gmra.mrb[0].mxu0 %v1277
        %v1398 = vpop.f32.mrb[0].mxu0
        %v1399 = vadd.f32 %v1158, %v1398
        %v1400 = vpop.f32.mrb[0].mxu0
        %v1401 = vpop.f32.mrb[0].mxu0
        %v1402 = vadd.f32 %v1158, %v1401
        %v1403 = vpop.f32.mrb[0].mxu0
        %1404 = vmatprep.mubr.bf16.mxu0 0
        %1405 = vmatmul.mubr.bf16.gmra.mrb[0].mxu0 %v1280
        %v1406 = vpop.f32.mrb[0].mxu0
        %v1407 = vadd.f32 %v1158, %v1406
        %v1408 = vpop.f32.mrb[0].mxu0
        %v1409 = vpop.f32.mrb[0].mxu0
        %v1410 = vadd.f32 %v1158, %v1409
        %v1411 = vpop.f32.mrb[0].mxu0
        %1412 = vmatprep.mubr.bf16.mxu0 0
        %1413 = vmatmul.mubr.bf16.gmra.mrb[0].mxu0 %v1283
        %v1414 = vpop.f32.mrb[0].mxu0
        %v1415 = vadd.f32 %v1158, %v1414
        %v1416 = vpop.f32.mrb[0].mxu0
        %v1417 = vpop.f32.mrb[0].mxu0
        %v1418 = vadd.f32 %v1158, %v1417
        %v1419 = vpop.f32.mrb[0].mxu0
        %1420 = vmatprep.mubr.bf16.mxu0 0
        %1421 = vmatmul.mubr.bf16.gmra.mrb[0].mxu0 %v1286
        %v1422 = vpop.f32.mrb[0].mxu0
        %v1423 = vadd.f32 %v1158, %v1422
        %v1424 = vpop.f32.mrb[0].mxu0
        %v1425 = vpop.f32.mrb[0].mxu0
        %v1426 = vadd.f32 %v1158, %v1425
        %v1427 = vpop.f32.mrb[0].mxu0
        %1428 = vmatprep.mubr.bf16.mxu0 0
        %1429 = vmatmul.mubr.bf16.gmra.mrb[0].mxu0 %v1289
        %v1430 = vpop.f32.mrb[0].mxu0
        %v1431 = vadd.f32 %v1158, %v1430
        %v1432 = vpop.f32.mrb[0].mxu0
        %v1433 = vpop.f32.mrb[0].mxu0
        %v1434 = vadd.f32 %v1158, %v1433
        %v1435 = vpop.f32.mrb[0].mxu0
        %1436 = vmatprep.mubr.bf16.mxu0 0
        %1437 = vmatmul.mubr.bf16.gmra.mrb[0].mxu0 %v1292
        %v1438 = vpop.f32.mrb[0].mxu0
        %v1439 = vadd.f32 %v1158, %v1438
        %v1440 = vpop.f32.mrb[0].mxu0
        %v1441 = vpop.f32.mrb[0].mxu0
        %v1442 = vadd.f32 %v1158, %v1441
        %v1443 = vpop.f32.mrb[0].mxu0
        %1444 = vmatprep.mubr.bf16.mxu0 0
        %1445 = vmatmul.mubr.bf16.gmra.mrb[0].mxu0 %v1295
        %v1446 = vpop.f32.mrb[0].mxu0
        %v1447 = vadd.f32 %v1158, %v1446
        %v1448 = vpop.f32.mrb[0].mxu0
        %v1449 = vpop.f32.mrb[0].mxu0
        %v1450 = vadd.f32 %v1158, %v1449
        %v1451 = vpop.f32.mrb[0].mxu0
        %1452 = vmatprep.mubr.bf16.mxu0 0
        %1453 = vmatmul.mubr.bf16.gmra.mrb[0].mxu0 %v1298
        %v1454 = vpop.f32.mrb[0].mxu0
        %v1455 = vadd.f32 %v1158, %v1454
        %v1456 = vpop.f32.mrb[0].mxu0
        %v1457 = vpop.f32.mrb[0].mxu0
        %v1458 = vadd.f32 %v1158, %v1457
        %v1459 = vpop.f32.mrb[0].mxu0
        %1460 = vdwg.mxu0
        %v1461 = vld [vmem:[%s832] sm:$0xf]
        %v1462 = vld [vmem:[%s832 + $0x4] sm:$0xf]
        %v1463 = vld [vmem:[%s832 + $0x8] sm:$0xf]
        %v1464 = vld [vmem:[%s832 + $0xc] sm:$0xf]
        %v1465 = vld [vmem:[%s832 + $0x10] sm:$0xf]
        %v1466 = vld [vmem:[%s832 + $0x14] sm:$0xf]
        %v1467 = vld [vmem:[%s832 + $0x18] sm:$0xf]
        %v1468 = vld [vmem:[%s832 + $0x1c] sm:$0xf]
        %v1469 = vld [vmem:[%s832 + $0x20] sm:$0xf]
        %v1470 = vld [vmem:[%s832 + $0x24] sm:$0xf]
        %v1471 = vld [vmem:[%s832 + $0x28] sm:$0xf]
        %v1472 = vld [vmem:[%s832 + $0x2c] sm:$0xf]
        %v1473 = vld [vmem:[%s832 + $0x30] sm:$0xf]
        %v1474 = vld [vmem:[%s832 + $0x34] sm:$0xf]
        %v1475 = vld [vmem:[%s832 + $0x38] sm:$0xf]
        %v1476 = vld [vmem:[%s832 + $0x3c] sm:$0xf]
        %v1477 = vld [vmem:[%s832 + $0x40] sm:$0xf]
        %v1478 = vld [vmem:[%s832 + $0x44] sm:$0xf]
        %v1479 = vld [vmem:[%s832 + $0x48] sm:$0xf]
        %v1480 = vld [vmem:[%s832 + $0x4c] sm:$0xf]
        %v1481 = vld [vmem:[%s832 + $0x50] sm:$0xf]
        %v1482 = vld [vmem:[%s832 + $0x54] sm:$0xf]
        %v1483 = vld [vmem:[%s832 + $0x58] sm:$0xf]
        %v1484 = vld [vmem:[%s832 + $0x5c] sm:$0xf]
        %v1485 = vld [vmem:[%s832 + $0x60] sm:$0xf]
        %v1486 = vld [vmem:[%s832 + $0x64] sm:$0xf]
        %v1487 = vld [vmem:[%s832 + $0x68] sm:$0xf]
        %v1488 = vld [vmem:[%s832 + $0x6c] sm:$0xf]
        %v1489 = vld [vmem:[%s832 + $0x70] sm:$0xf]
        %v1490 = vld [vmem:[%s832 + $0x74] sm:$0xf]
        %v1491 = vld [vmem:[%s832 + $0x78] sm:$0xf]
        %v1492 = vld [vmem:[%s832 + $0x7c] sm:$0xf]
        %v1493 = vunpack.c.l.bf16 %v1461
        %v1494 = vunpack.c.l.bf16 %v1462
        %v1495 = vunpack.c.l.bf16 %v1463
        %v1496 = vunpack.c.l.bf16 %v1464
        %v1497 = vunpack.c.l.bf16 %v1465
        %v1498 = vunpack.c.l.bf16 %v1466
        %v1499 = vunpack.c.l.bf16 %v1467
        %v1500 = vunpack.c.l.bf16 %v1468
        %v1501 = vunpack.c.l.bf16 %v1469
        %v1502 = vunpack.c.l.bf16 %v1470
        %v1503 = vunpack.c.l.bf16 %v1471
        %v1504 = vunpack.c.l.bf16 %v1472
        %v1505 = vunpack.c.l.bf16 %v1473
        %v1506 = vunpack.c.l.bf16 %v1474
        %v1507 = vunpack.c.l.bf16 %v1475
        %v1508 = vunpack.c.l.bf16 %v1476
        %v1509 = vunpack.c.l.bf16 %v1477
        %v1510 = vunpack.c.l.bf16 %v1478
        %v1511 = vunpack.c.l.bf16 %v1479
        %v1512 = vunpack.c.l.bf16 %v1480
        %v1513 = vunpack.c.l.bf16 %v1481
        %v1514 = vunpack.c.l.bf16 %v1482
        %v1515 = vunpack.c.l.bf16 %v1483
        %v1516 = vunpack.c.l.bf16 %v1484
        %v1517 = vunpack.c.l.bf16 %v1485
        %v1518 = vunpack.c.l.bf16 %v1486
        %v1519 = vunpack.c.l.bf16 %v1487
        %v1520 = vunpack.c.l.bf16 %v1488
        %v1521 = vunpack.c.l.bf16 %v1489
        %v1522 = vunpack.c.l.bf16 %v1490
        %v1523 = vunpack.c.l.bf16 %v1491
        %v1524 = vunpack.c.l.bf16 %v1492
        %v1526 = vlaneseq
        %v1527 = vshrl.u32 %v1526, 7
        %v1528 = vsub.s32 0, %v1527
        %v1529 = vrot.slane %v914, %v1528
        %v1531 = vmul.f32 %v1493, %v1529
        %v1532 = vmul.f32 %v1494, %v1529
        %v1533 = vmul.f32 %v1495, %v1529
        %v1534 = vmul.f32 %v1496, %v1529
        %v1535 = vmul.f32 %v1497, %v1529
        %v1536 = vmul.f32 %v1498, %v1529
        %v1537 = vmul.f32 %v1499, %v1529
        %v1538 = vmul.f32 %v1500, %v1529
        %v1539 = vmul.f32 %v1501, %v1529
        %v1540 = vmul.f32 %v1502, %v1529
        %v1541 = vmul.f32 %v1503, %v1529
        %v1542 = vmul.f32 %v1504, %v1529
        %v1543 = vmul.f32 %v1505, %v1529
        %v1544 = vmul.f32 %v1506, %v1529
        %v1545 = vmul.f32 %v1507, %v1529
        %v1546 = vmul.f32 %v1508, %v1529
        %v1547 = vmul.f32 %v1509, %v1529
        %v1548 = vmul.f32 %v1510, %v1529
        %v1549 = vmul.f32 %v1511, %v1529
        %v1550 = vmul.f32 %v1512, %v1529
        %v1551 = vmul.f32 %v1513, %v1529
        %v1552 = vmul.f32 %v1514, %v1529
        %v1553 = vmul.f32 %v1515, %v1529
        %v1554 = vmul.f32 %v1516, %v1529
        %v1555 = vmul.f32 %v1517, %v1529
        %v1556 = vmul.f32 %v1518, %v1529
        %v1557 = vmul.f32 %v1519, %v1529
        %v1558 = vmul.f32 %v1520, %v1529
        %v1559 = vmul.f32 %v1521, %v1529
        %v1560 = vmul.f32 %v1522, %v1529
        %v1561 = vmul.f32 %v1523, %v1529
        %v1562 = vmul.f32 %v1524, %v1529
        %v1563 = vsel %vm987, %v1531, 0.0
        %1564 = vadd.xlane.f32.xlu0 %v1563
        %v1565 = vpop.xlane.xlu0 %1564
        %v1566 = vsel %vm987, %v1532, 0.0
        %1567 = vadd.xlane.f32.xlu0 %v1566
        %v1568 = vpop.xlane.xlu0 %1567
        %v1569 = vsel %vm987, %v1533, 0.0
        %1570 = vadd.xlane.f32.xlu0 %v1569
        %v1571 = vpop.xlane.xlu0 %1570
        %v1572 = vsel %vm987, %v1534, 0.0
        %1573 = vadd.xlane.f32.xlu0 %v1572
        %v1574 = vpop.xlane.xlu0 %1573
        %v1575 = vsel %vm987, %v1535, 0.0
        %1576 = vadd.xlane.f32.xlu0 %v1575
        %v1577 = vpop.xlane.xlu0 %1576
        %v1578 = vsel %vm987, %v1536, 0.0
        %1579 = vadd.xlane.f32.xlu0 %v1578
        %v1580 = vpop.xlane.xlu0 %1579
        %v1581 = vsel %vm987, %v1537, 0.0
        %1582 = vadd.xlane.f32.xlu0 %v1581
        %v1583 = vpop.xlane.xlu0 %1582
        %v1584 = vsel %vm987, %v1538, 0.0
        %1585 = vadd.xlane.f32.xlu0 %v1584
        %v1586 = vpop.xlane.xlu0 %1585
        %v1587 = vsel %vm987, %v1539, 0.0
        %1588 = vadd.xlane.f32.xlu0 %v1587
        %v1589 = vpop.xlane.xlu0 %1588
        %v1590 = vsel %vm987, %v1540, 0.0
        %1591 = vadd.xlane.f32.xlu0 %v1590
        %v1592 = vpop.xlane.xlu0 %1591
        %v1593 = vsel %vm987, %v1541, 0.0
        %1594 = vadd.xlane.f32.xlu0 %v1593
        %v1595 = vpop.xlane.xlu0 %1594
        %v1596 = vsel %vm987, %v1542, 0.0
        %1597 = vadd.xlane.f32.xlu0 %v1596
        %v1598 = vpop.xlane.xlu0 %1597
        %v1599 = vsel %vm987, %v1543, 0.0
        %1600 = vadd.xlane.f32.xlu0 %v1599
        %v1601 = vpop.xlane.xlu0 %1600
        %v1602 = vsel %vm987, %v1544, 0.0
        %1603 = vadd.xlane.f32.xlu0 %v1602
        %v1604 = vpop.xlane.xlu0 %1603
        %v1605 = vsel %vm987, %v1545, 0.0
        %1606 = vadd.xlane.f32.xlu0 %v1605
        %v1607 = vpop.xlane.xlu0 %1606
        %v1608 = vsel %vm987, %v1546, 0.0
        %1609 = vadd.xlane.f32.xlu0 %v1608
        %v1610 = vpop.xlane.xlu0 %1609
        %v1611 = vsel %vm987, %v1547, 0.0
        %1612 = vadd.xlane.f32.xlu0 %v1611
        %v1613 = vpop.xlane.xlu0 %1612
        %v1614 = vsel %vm987, %v1548, 0.0
        %1615 = vadd.xlane.f32.xlu0 %v1614
        %v1616 = vpop.xlane.xlu0 %1615
        %v1617 = vsel %vm987, %v1549, 0.0
        %1618 = vadd.xlane.f32.xlu0 %v1617
        %v1619 = vpop.xlane.xlu0 %1618
        %v1620 = vsel %vm987, %v1550, 0.0
        %1621 = vadd.xlane.f32.xlu0 %v1620
        %v1622 = vpop.xlane.xlu0 %1621
        %v1623 = vsel %vm987, %v1551, 0.0
        %1624 = vadd.xlane.f32.xlu0 %v1623
        %v1625 = vpop.xlane.xlu0 %1624
        %v1626 = vsel %vm987, %v1552, 0.0
        %1627 = vadd.xlane.f32.xlu0 %v1626
        %v1628 = vpop.xlane.xlu0 %1627
        %v1629 = vsel %vm987, %v1553, 0.0
        %1630 = vadd.xlane.f32.xlu0 %v1629
        %v1631 = vpop.xlane.xlu0 %1630
        %v1632 = vsel %vm987, %v1554, 0.0
        %1633 = vadd.xlane.f32.xlu0 %v1632
        %v1634 = vpop.xlane.xlu0 %1633
        %v1635 = vsel %vm987, %v1555, 0.0
        %1636 = vadd.xlane.f32.xlu0 %v1635
        %v1637 = vpop.xlane.xlu0 %1636
        %v1638 = vsel %vm987, %v1556, 0.0
        %1639 = vadd.xlane.f32.xlu0 %v1638
        %v1640 = vpop.xlane.xlu0 %1639
        %v1641 = vsel %vm987, %v1557, 0.0
        %1642 = vadd.xlane.f32.xlu0 %v1641
        %v1643 = vpop.xlane.xlu0 %1642
        %v1644 = vsel %vm987, %v1558, 0.0
        %1645 = vadd.xlane.f32.xlu0 %v1644
        %v1646 = vpop.xlane.xlu0 %1645
        %v1647 = vsel %vm987, %v1559, 0.0
        %1648 = vadd.xlane.f32.xlu0 %v1647
        %v1649 = vpop.xlane.xlu0 %1648
        %v1650 = vsel %vm987, %v1560, 0.0
        %1651 = vadd.xlane.f32.xlu0 %v1650
        %v1652 = vpop.xlane.xlu0 %1651
        %v1653 = vsel %vm987, %v1561, 0.0
        %1654 = vadd.xlane.f32.xlu0 %v1653
        %v1655 = vpop.xlane.xlu0 %1654
        %v1656 = vsel %vm987, %v1562, 0.0
        %1657 = vadd.xlane.f32.xlu0 %v1656
        %v1658 = vpop.xlane.xlu0 %1657
        %v1659 = vadd.f32 %v1565, %v1085
        %v1660 = vadd.f32 %v1568, %v1086
        %v1661 = vadd.f32 %v1571, %v1087
        %v1662 = vadd.f32 %v1574, %v1088
        %v1663 = vadd.f32 %v1577, %v1089
        %v1664 = vadd.f32 %v1580, %v1090
        %v1665 = vadd.f32 %v1583, %v1091
        %v1666 = vadd.f32 %v1586, %v1092
        %v1667 = vadd.f32 %v1589, %v1093
        %v1668 = vadd.f32 %v1592, %v1094
        %v1669 = vadd.f32 %v1595, %v1095
        %v1670 = vadd.f32 %v1598, %v1096
        %v1671 = vadd.f32 %v1601, %v1097
        %v1672 = vadd.f32 %v1604, %v1098
        %v1673 = vadd.f32 %v1607, %v1099
        %v1674 = vadd.f32 %v1610, %v1100
        %v1675 = vadd.f32 %v1613, %v1101
        %v1676 = vadd.f32 %v1616, %v1102
        %v1677 = vadd.f32 %v1619, %v1103
        %v1678 = vadd.f32 %v1622, %v1104
        %v1679 = vadd.f32 %v1625, %v1105
        %v1680 = vadd.f32 %v1628, %v1106
        %v1681 = vadd.f32 %v1631, %v1107
        %v1682 = vadd.f32 %v1634, %v1108
        %v1683 = vadd.f32 %v1637, %v1109
        %v1684 = vadd.f32 %v1640, %v1110
        %v1685 = vadd.f32 %v1643, %v1111
        %v1686 = vadd.f32 %v1646, %v1112
        %v1687 = vadd.f32 %v1649, %v1113
        %v1688 = vadd.f32 %v1652, %v1114
        %v1689 = vadd.f32 %v1655, %v1115
        %v1690 = vadd.f32 %v1658, %v1116
        %v1691 = vtanh.pop %v1659
        %v1692 = vtanh.pop %v1660
        %v1693 = vtanh.pop %v1661
        %v1694 = vtanh.pop %v1662
        %v1695 = vtanh.pop %v1663
        %v1696 = vtanh.pop %v1664
        %v1697 = vtanh.pop %v1665
        %v1698 = vtanh.pop %v1666
        %v1699 = vtanh.pop %v1667
        %v1700 = vtanh.pop %v1668
        %v1701 = vtanh.pop %v1669
        %v1702 = vtanh.pop %v1670
        %v1703 = vtanh.pop %v1671
        %v1704 = vtanh.pop %v1672
        %v1705 = vtanh.pop %v1673
        %v1706 = vtanh.pop %v1674
        %v1707 = vtanh.pop %v1675
        %v1708 = vtanh.pop %v1676
        %v1709 = vtanh.pop %v1677
        %v1710 = vtanh.pop %v1678
        %v1711 = vtanh.pop %v1679
        %v1712 = vtanh.pop %v1680
        %v1713 = vtanh.pop %v1681
        %v1714 = vtanh.pop %v1682
        %v1715 = vtanh.pop %v1683
        %v1716 = vtanh.pop %v1684
        %v1717 = vtanh.pop %v1685
        %v1718 = vtanh.pop %v1686
        %v1719 = vtanh.pop %v1687
        %v1720 = vtanh.pop %v1688
        %v1721 = vtanh.pop %v1689
        %v1722 = vtanh.pop %v1690
        %v1723 = vmul.f32 %v1691, 1.442695
        %v1724 = vpow.pop %v1723
        %v1725 = vmul.f32 %v1692, 1.442695
        %v1726 = vpow.pop %v1725
        %v1727 = vmul.f32 %v1693, 1.442695
        %v1728 = vpow.pop %v1727
        %v1729 = vmul.f32 %v1694, 1.442695
        %v1730 = vpow.pop %v1729
        %v1731 = vmul.f32 %v1695, 1.442695
        %v1732 = vpow.pop %v1731
        %v1733 = vmul.f32 %v1696, 1.442695
        %v1734 = vpow.pop %v1733
        %v1735 = vmul.f32 %v1697, 1.442695
        %v1736 = vpow.pop %v1735
        %v1737 = vmul.f32 %v1698, 1.442695
        %v1738 = vpow.pop %v1737
        %v1739 = vmul.f32 %v1699, 1.442695
        %v1740 = vpow.pop %v1739
        %v1741 = vmul.f32 %v1700, 1.442695
        %v1742 = vpow.pop %v1741
        %v1743 = vmul.f32 %v1701, 1.442695
        %v1744 = vpow.pop %v1743
        %v1745 = vmul.f32 %v1702, 1.442695
        %v1746 = vpow.pop %v1745
        %v1747 = vmul.f32 %v1703, 1.442695
        %v1748 = vpow.pop %v1747
        %v1749 = vmul.f32 %v1704, 1.442695
        %v1750 = vpow.pop %v1749
        %v1751 = vmul.f32 %v1705, 1.442695
        %v1752 = vpow.pop %v1751
        %v1753 = vmul.f32 %v1706, 1.442695
        %v1754 = vpow.pop %v1753
        %v1755 = vmul.f32 %v1707, 1.442695
        %v1756 = vpow.pop %v1755
        %v1757 = vmul.f32 %v1708, 1.442695
        %v1758 = vpow.pop %v1757
        %v1759 = vmul.f32 %v1709, 1.442695
        %v1760 = vpow.pop %v1759
        %v1761 = vmul.f32 %v1710, 1.442695
        %v1762 = vpow.pop %v1761
        %v1763 = vmul.f32 %v1711, 1.442695
        %v1764 = vpow.pop %v1763
        %v1765 = vmul.f32 %v1712, 1.442695
        %v1766 = vpow.pop %v1765
        %v1767 = vmul.f32 %v1713, 1.442695
        %v1768 = vpow.pop %v1767
        %v1769 = vmul.f32 %v1714, 1.442695
        %v1770 = vpow.pop %v1769
        %v1771 = vmul.f32 %v1715, 1.442695
        %v1772 = vpow.pop %v1771
        %v1773 = vmul.f32 %v1716, 1.442695
        %v1774 = vpow.pop %v1773
        %v1775 = vmul.f32 %v1717, 1.442695
        %v1776 = vpow.pop %v1775
        %v1777 = vmul.f32 %v1718, 1.442695
        %v1778 = vpow.pop %v1777
        %v1779 = vmul.f32 %v1719, 1.442695
        %v1780 = vpow.pop %v1779
        %v1781 = vmul.f32 %v1720, 1.442695
        %v1782 = vpow.pop %v1781
        %v1783 = vmul.f32 %v1721, 1.442695
        %v1784 = vpow.pop %v1783
        %v1785 = vmul.f32 %v1722, 1.442695
        %v1786 = vpow.pop %v1785
        %v1787 = vmax.bf16 %v1461, 0
        %v1788 = vmax.bf16 %v1462, 0
        %v1789 = vmax.bf16 %v1463, 0
        %v1790 = vmax.bf16 %v1464, 0
        %v1791 = vmax.bf16 %v1465, 0
        %v1792 = vmax.bf16 %v1466, 0
        %v1793 = vmax.bf16 %v1467, 0
        %v1794 = vmax.bf16 %v1468, 0
        %v1795 = vmax.bf16 %v1469, 0
        %v1796 = vmax.bf16 %v1470, 0
        %v1797 = vmax.bf16 %v1471, 0
        %v1798 = vmax.bf16 %v1472, 0
        %v1799 = vmax.bf16 %v1473, 0
        %v1800 = vmax.bf16 %v1474, 0
        %v1801 = vmax.bf16 %v1475, 0
        %v1802 = vmax.bf16 %v1476, 0
        %v1803 = vmax.bf16 %v1477, 0
        %v1804 = vmax.bf16 %v1478, 0
        %v1805 = vmax.bf16 %v1479, 0
        %v1806 = vmax.bf16 %v1480, 0
        %v1807 = vmax.bf16 %v1481, 0
        %v1808 = vmax.bf16 %v1482, 0
        %v1809 = vmax.bf16 %v1483, 0
        %v1810 = vmax.bf16 %v1484, 0
        %v1811 = vmax.bf16 %v1485, 0
        %v1812 = vmax.bf16 %v1486, 0
        %v1813 = vmax.bf16 %v1487, 0
        %v1814 = vmax.bf16 %v1488, 0
        %v1815 = vmax.bf16 %v1489, 0
        %v1816 = vmax.bf16 %v1490, 0
        %v1817 = vmax.bf16 %v1491, 0
        %v1818 = vmax.bf16 %v1492, 0
        %v1819 = vld [vmem:[%s5] sm:$0xf]
        %v1820 = vld [vmem:[%s5 + $0x4] sm:$0xf]
        %v1821 = vld [vmem:[%s5 + $0x8] sm:$0xf]
        %v1822 = vld [vmem:[%s5 + $0xc] sm:$0xf]
        %v1855 = vunpack.c.l.b16 %v1787
        %v1856 = vunpack.c.l.b16 %v1788
        %v1857 = vunpack.c.l.b16 %v1789
        %v1858 = vunpack.c.l.b16 %v1790
        %v1859 = vunpack.c.l.b16 %v1791
        %v1860 = vunpack.c.l.b16 %v1792
        %v1861 = vunpack.c.l.b16 %v1793
        %v1862 = vunpack.c.l.b16 %v1794
        %v1863 = vunpack.c.l.b16 %v1795
        %v1864 = vunpack.c.l.b16 %v1796
        %v1865 = vunpack.c.l.b16 %v1797
        %v1866 = vunpack.c.l.b16 %v1798
        %v1867 = vunpack.c.l.b16 %v1799
        %v1868 = vunpack.c.l.b16 %v1800
        %v1869 = vunpack.c.l.b16 %v1801
        %v1870 = vunpack.c.l.b16 %v1802
        %v1871 = vunpack.c.l.b16 %v1803
        %v1872 = vunpack.c.l.b16 %v1804
        %v1873 = vunpack.c.l.b16 %v1805
        %v1874 = vunpack.c.l.b16 %v1806
        %v1875 = vunpack.c.l.b16 %v1807
        %v1876 = vunpack.c.l.b16 %v1808
        %v1877 = vunpack.c.l.b16 %v1809
        %v1878 = vunpack.c.l.b16 %v1810
        %v1879 = vunpack.c.l.b16 %v1811
        %v1880 = vunpack.c.l.b16 %v1812
        %v1881 = vunpack.c.l.b16 %v1813
        %v1882 = vunpack.c.l.b16 %v1814
        %v1883 = vunpack.c.l.b16 %v1815
        %v1884 = vunpack.c.l.b16 %v1816
        %v1885 = vunpack.c.l.b16 %v1817
        %v1886 = vunpack.c.l.b16 %v1818
        %v1887 = vpack.c.b16 %v1856, %v1855
        %v1888 = vpack.c.b16 %v1858, %v1857
        %v1889 = vpack.c.b16 %v1860, %v1859
        %v1890 = vpack.c.b16 %v1862, %v1861
        %v1891 = vpack.c.b16 %v1864, %v1863
        %v1892 = vpack.c.b16 %v1866, %v1865
        %v1893 = vpack.c.b16 %v1868, %v1867
        %v1894 = vpack.c.b16 %v1870, %v1869
        %v1895 = vpack.c.b16 %v1872, %v1871
        %v1896 = vpack.c.b16 %v1874, %v1873
        %v1897 = vpack.c.b16 %v1876, %v1875
        %v1898 = vpack.c.b16 %v1878, %v1877
        %v1899 = vpack.c.b16 %v1880, %v1879
        %v1900 = vpack.c.b16 %v1882, %v1881
        %v1901 = vpack.c.b16 %v1884, %v1883
        %v1902 = vpack.c.b16 %v1886, %v1885
        %v1907 = vunpack.c.l.b16 %v1819
        %v1908 = vunpack.c.l.b16 %v1820
        %v1909 = vunpack.c.l.b16 %v1821
        %v1910 = vunpack.c.l.b16 %v1822
        %v1911 = vpack.c.b16 %v1908, %v1907
        %v1912 = vpack.c.b16 %v1910, %v1909
        %v1916 = vsel %vm987, %v1887, 0
        %v1919 = vsel %vm987, %v1888, 0
        %v1922 = vsel %vm987, %v1889, 0
        %v1925 = vsel %vm987, %v1890, 0
        %v1928 = vsel %vm987, %v1891, 0
        %v1931 = vsel %vm987, %v1892, 0
        %v1934 = vsel %vm987, %v1893, 0
        %v1937 = vsel %vm987, %v1894, 0
        %v1940 = vsel %vm987, %v1895, 0
        %v1943 = vsel %vm987, %v1896, 0
        %v1946 = vsel %vm987, %v1897, 0
        %v1949 = vsel %vm987, %v1898, 0
        %v1952 = vsel %vm987, %v1899, 0
        %v1955 = vsel %vm987, %v1900, 0
        %v1958 = vsel %vm987, %v1901, 0
        %v1961 = vsel %vm987, %v1902, 0
        %1963 = vmatprep.subr.bf16.mxu0 0
        %1964 = vmatpush1.bf16.msra.mxu0 %v1911
        %1965 = vmatprep.subr.bf16.mxu0 0
        %1966 = vmatpush1.bf16.msra.mxu0 %v1912
        %1967 = vmatprep.subr.bf16.mxu0 0
        %1968 = vmatpush1.bf16.msra.mxu0 0
        %1969 = vmatprep.subr.bf16.mxu0 0
        %1970 = vmatpush1.bf16.msra.mxu0 0
        %1971 = vmatprep.subr.bf16.mxu0 0
        %1972 = vmatpush1.bf16.msra.mxu0 0
        %1973 = vmatprep.subr.bf16.mxu0 0
        %1974 = vmatpush1.bf16.msra.mxu0 0
        %1975 = vmatprep.subr.bf16.mxu0 0
        %1976 = vmatpush1.bf16.msra.mxu0 0
        %1977 = vmatprep.subr.bf16.mxu0 0
        %1978 = vmatpush1.bf16.msra.mxu0 0
        %1979 = vmatprep.subr.bf16.mxu0 0
        %1980 = vmatpush1.bf16.msra.mxu0 0
        %1981 = vmatprep.subr.bf16.mxu0 0
        %1982 = vmatpush1.bf16.msra.mxu0 0
        %1983 = vmatprep.subr.bf16.mxu0 0
        %1984 = vmatpush1.bf16.msra.mxu0 0
        %1985 = vmatprep.subr.bf16.mxu0 0
        %1986 = vmatpush1.bf16.msra.mxu0 0
        %1987 = vmatprep.subr.bf16.mxu0 0
        %1988 = vmatpush1.bf16.msra.mxu0 0
        %1989 = vmatprep.subr.bf16.mxu0 0
        %1990 = vmatpush1.bf16.msra.mxu0 0
        %1991 = vmatprep.subr.bf16.mxu0 0
        %1992 = vmatpush1.bf16.msra.mxu0 0
        %1993 = vmatprep.subr.bf16.mxu0 0
        %1994 = vmatpush1.bf16.msra.mxu0 0
        %1995 = vmatprep.mubr.bf16.mxu0 0
        %1996 = vmatmul.mubr.bf16.gmra.mrb[0].mxu0 %v1916
        %v1997 = vpop.f32.mrb[0].mxu0
        %v1998 = vadd.f32 %v1335, %v1997
        %v1999 = vpop.f32.mrb[0].mxu0
        %v2000 = vpop.f32.mrb[0].mxu0
        %v2001 = vadd.f32 %v1338, %v2000
        %v2002 = vpop.f32.mrb[0].mxu0
        %2003 = vmatprep.mubr.bf16.mxu0 0
        %2004 = vmatmul.mubr.bf16.gmra.mrb[0].mxu0 %v1919
        %v2005 = vpop.f32.mrb[0].mxu0
        %v2006 = vadd.f32 %v1343, %v2005
        %v2007 = vpop.f32.mrb[0].mxu0
        %v2008 = vpop.f32.mrb[0].mxu0
        %v2009 = vadd.f32 %v1346, %v2008
        %v2010 = vpop.f32.mrb[0].mxu0
        %2011 = vmatprep.mubr.bf16.mxu0 0
        %2012 = vmatmul.mubr.bf16.gmra.mrb[0].mxu0 %v1922
        %v2013 = vpop.f32.mrb[0].mxu0
        %v2014 = vadd.f32 %v1351, %v2013
        %v2015 = vpop.f32.mrb[0].mxu0
        %v2016 = vpop.f32.mrb[0].mxu0
        %v2017 = vadd.f32 %v1354, %v2016
        %v2018 = vpop.f32.mrb[0].mxu0
        %2019 = vmatprep.mubr.bf16.mxu0 0
        %2020 = vmatmul.mubr.bf16.gmra.mrb[0].mxu0 %v1925
        %v2021 = vpop.f32.mrb[0].mxu0
        %v2022 = vadd.f32 %v1359, %v2021
        %v2023 = vpop.f32.mrb[0].mxu0
        %v2024 = vpop.f32.mrb[0].mxu0
        %v2025 = vadd.f32 %v1362, %v2024
        %v2026 = vpop.f32.mrb[0].mxu0
        %2027 = vmatprep.mubr.bf16.mxu0 0
        %2028 = vmatmul.mubr.bf16.gmra.mrb[0].mxu0 %v1928
        %v2029 = vpop.f32.mrb[0].mxu0
        %v2030 = vadd.f32 %v1367, %v2029
        %v2031 = vpop.f32.mrb[0].mxu0
        %v2032 = vpop.f32.mrb[0].mxu0
        %v2033 = vadd.f32 %v1370, %v2032
        %v2034 = vpop.f32.mrb[0].mxu0
        %2035 = vmatprep.mubr.bf16.mxu0 0
        %2036 = vmatmul.mubr.bf16.gmra.mrb[0].mxu0 %v1931
        %v2037 = vpop.f32.mrb[0].mxu0
        %v2038 = vadd.f32 %v1375, %v2037
        %v2039 = vpop.f32.mrb[0].mxu0
        %v2040 = vpop.f32.mrb[0].mxu0
        %v2041 = vadd.f32 %v1378, %v2040
        %v2042 = vpop.f32.mrb[0].mxu0
        %2043 = vmatprep.mubr.bf16.mxu0 0
        %2044 = vmatmul.mubr.bf16.gmra.mrb[0].mxu0 %v1934
        %v2045 = vpop.f32.mrb[0].mxu0
        %v2046 = vadd.f32 %v1383, %v2045
        %v2047 = vpop.f32.mrb[0].mxu0
        %v2048 = vpop.f32.mrb[0].mxu0
        %v2049 = vadd.f32 %v1386, %v2048
        %v2050 = vpop.f32.mrb[0].mxu0
        %2051 = vmatprep.mubr.bf16.mxu0 0
        %2052 = vmatmul.mubr.bf16.gmra.mrb[0].mxu0 %v1937
        %v2053 = vpop.f32.mrb[0].mxu0
        %v2054 = vadd.f32 %v1391, %v2053
        %v2055 = vpop.f32.mrb[0].mxu0
        %v2056 = vpop.f32.mrb[0].mxu0
        %v2057 = vadd.f32 %v1394, %v2056
        %v2058 = vpop.f32.mrb[0].mxu0
        %2059 = vmatprep.mubr.bf16.mxu0 0
        %2060 = vmatmul.mubr.bf16.gmra.mrb[0].mxu0 %v1940
        %v2061 = vpop.f32.mrb[0].mxu0
        %v2062 = vadd.f32 %v1399, %v2061
        %v2063 = vpop.f32.mrb[0].mxu0
        %v2064 = vpop.f32.mrb[0].mxu0
        %v2065 = vadd.f32 %v1402, %v2064
        %v2066 = vpop.f32.mrb[0].mxu0
        %2067 = vmatprep.mubr.bf16.mxu0 0
        %2068 = vmatmul.mubr.bf16.gmra.mrb[0].mxu0 %v1943
        %v2069 = vpop.f32.mrb[0].mxu0
        %v2070 = vadd.f32 %v1407, %v2069
        %v2071 = vpop.f32.mrb[0].mxu0
        %v2072 = vpop.f32.mrb[0].mxu0
        %v2073 = vadd.f32 %v1410, %v2072
        %v2074 = vpop.f32.mrb[0].mxu0
        %2075 = vmatprep.mubr.bf16.mxu0 0
        %2076 = vmatmul.mubr.bf16.gmra.mrb[0].mxu0 %v1946
        %v2077 = vpop.f32.mrb[0].mxu0
        %v2078 = vadd.f32 %v1415, %v2077
        %v2079 = vpop.f32.mrb[0].mxu0
        %v2080 = vpop.f32.mrb[0].mxu0
        %v2081 = vadd.f32 %v1418, %v2080
        %v2082 = vpop.f32.mrb[0].mxu0
        %2083 = vmatprep.mubr.bf16.mxu0 0
        %2084 = vmatmul.mubr.bf16.gmra.mrb[0].mxu0 %v1949
        %v2085 = vpop.f32.mrb[0].mxu0
        %v2086 = vadd.f32 %v1423, %v2085
        %v2087 = vpop.f32.mrb[0].mxu0
        %v2088 = vpop.f32.mrb[0].mxu0
        %v2089 = vadd.f32 %v1426, %v2088
        %v2090 = vpop.f32.mrb[0].mxu0
        %2091 = vmatprep.mubr.bf16.mxu0 0
        %2092 = vmatmul.mubr.bf16.gmra.mrb[0].mxu0 %v1952
        %v2093 = vpop.f32.mrb[0].mxu0
        %v2094 = vadd.f32 %v1431, %v2093
        %v2095 = vpop.f32.mrb[0].mxu0
        %v2096 = vpop.f32.mrb[0].mxu0
        %v2097 = vadd.f32 %v1434, %v2096
        %v2098 = vpop.f32.mrb[0].mxu0
        %2099 = vmatprep.mubr.bf16.mxu0 0
        %2100 = vmatmul.mubr.bf16.gmra.mrb[0].mxu0 %v1955
        %v2101 = vpop.f32.mrb[0].mxu0
        %v2102 = vadd.f32 %v1439, %v2101
        %v2103 = vpop.f32.mrb[0].mxu0
        %v2104 = vpop.f32.mrb[0].mxu0
        %v2105 = vadd.f32 %v1442, %v2104
        %v2106 = vpop.f32.mrb[0].mxu0
        %2107 = vmatprep.mubr.bf16.mxu0 0
        %2108 = vmatmul.mubr.bf16.gmra.mrb[0].mxu0 %v1958
        %v2109 = vpop.f32.mrb[0].mxu0
        %v2110 = vadd.f32 %v1447, %v2109
        %v2111 = vpop.f32.mrb[0].mxu0
        %v2112 = vpop.f32.mrb[0].mxu0
        %v2113 = vadd.f32 %v1450, %v2112
        %v2114 = vpop.f32.mrb[0].mxu0
        %2115 = vmatprep.mubr.bf16.mxu0 0
        %2116 = vmatmul.mubr.bf16.gmra.mrb[0].mxu0 %v1961
        %v2117 = vpop.f32.mrb[0].mxu0
        %v2118 = vadd.f32 %v1455, %v2117
        %v2119 = vpop.f32.mrb[0].mxu0
        %v2120 = vpop.f32.mrb[0].mxu0
        %v2121 = vadd.f32 %v1458, %v2120
        %v2122 = vpop.f32.mrb[0].mxu0
        %2123 = vdwg.mxu0
        %v2124 = vmul.f32 %v1724, %v1998
        %v2125 = vmul.f32 %v1726, %v2001
        %v2126 = vmul.f32 %v1728, %v2006
        %v2127 = vmul.f32 %v1730, %v2009
        %v2128 = vmul.f32 %v1732, %v2014
        %v2129 = vmul.f32 %v1734, %v2017
        %v2130 = vmul.f32 %v1736, %v2022
        %v2131 = vmul.f32 %v1738, %v2025
        %v2132 = vmul.f32 %v1740, %v2030
        %v2133 = vmul.f32 %v1742, %v2033
        %v2134 = vmul.f32 %v1744, %v2038
        %v2135 = vmul.f32 %v1746, %v2041
        %v2136 = vmul.f32 %v1748, %v2046
        %v2137 = vmul.f32 %v1750, %v2049
        %v2138 = vmul.f32 %v1752, %v2054
        %v2139 = vmul.f32 %v1754, %v2057
        %v2140 = vmul.f32 %v1756, %v2062
        %v2141 = vmul.f32 %v1758, %v2065
        %v2142 = vmul.f32 %v1760, %v2070
        %v2143 = vmul.f32 %v1762, %v2073
        %v2144 = vmul.f32 %v1764, %v2078
        %v2145 = vmul.f32 %v1766, %v2081
        %v2146 = vmul.f32 %v1768, %v2086
        %v2147 = vmul.f32 %v1770, %v2089
        %v2148 = vmul.f32 %v1772, %v2094
        %v2149 = vmul.f32 %v1774, %v2097
        %v2150 = vmul.f32 %v1776, %v2102
        %v2151 = vmul.f32 %v1778, %v2105
        %v2152 = vmul.f32 %v1780, %v2110
        %v2153 = vmul.f32 %v1782, %v2113
        %v2154 = vmul.f32 %v1784, %v2118
        %v2155 = vmul.f32 %v1786, %v2121
        %s2156 = scalar_lea.vmem %s832, 128 [#allocation3]
        %v2157 = vld [vmem:[%s2156] sm:$0xf]
        %v2158 = vld [vmem:[%s2156 + $0x4] sm:$0xf]
        %v2159 = vld [vmem:[%s2156 + $0x8] sm:$0xf]
        %v2160 = vld [vmem:[%s2156 + $0xc] sm:$0xf]
        %v2161 = vld [vmem:[%s2156 + $0x10] sm:$0xf]
        %v2162 = vld [vmem:[%s2156 + $0x14] sm:$0xf]
        %v2163 = vld [vmem:[%s2156 + $0x18] sm:$0xf]
        %v2164 = vld [vmem:[%s2156 + $0x1c] sm:$0xf]
        %v2165 = vld [vmem:[%s2156 + $0x20] sm:$0xf]
        %v2166 = vld [vmem:[%s2156 + $0x24] sm:$0xf]
        %v2167 = vld [vmem:[%s2156 + $0x28] sm:$0xf]
        %v2168 = vld [vmem:[%s2156 + $0x2c] sm:$0xf]
        %v2169 = vld [vmem:[%s2156 + $0x30] sm:$0xf]
        %v2170 = vld [vmem:[%s2156 + $0x34] sm:$0xf]
        %v2171 = vld [vmem:[%s2156 + $0x38] sm:$0xf]
        %v2172 = vld [vmem:[%s2156 + $0x3c] sm:$0xf]
        %v2173 = vld [vmem:[%s2156 + $0x40] sm:$0xf]
        %v2174 = vld [vmem:[%s2156 + $0x44] sm:$0xf]
        %v2175 = vld [vmem:[%s2156 + $0x48] sm:$0xf]
        %v2176 = vld [vmem:[%s2156 + $0x4c] sm:$0xf]
        %v2177 = vld [vmem:[%s2156 + $0x50] sm:$0xf]
        %v2178 = vld [vmem:[%s2156 + $0x54] sm:$0xf]
        %v2179 = vld [vmem:[%s2156 + $0x58] sm:$0xf]
        %v2180 = vld [vmem:[%s2156 + $0x5c] sm:$0xf]
        %v2181 = vld [vmem:[%s2156 + $0x60] sm:$0xf]
        %v2182 = vld [vmem:[%s2156 + $0x64] sm:$0xf]
        %v2183 = vld [vmem:[%s2156 + $0x68] sm:$0xf]
        %v2184 = vld [vmem:[%s2156 + $0x6c] sm:$0xf]
        %v2185 = vld [vmem:[%s2156 + $0x70] sm:$0xf]
        %v2186 = vld [vmem:[%s2156 + $0x74] sm:$0xf]
        %v2187 = vld [vmem:[%s2156 + $0x78] sm:$0xf]
        %v2188 = vld [vmem:[%s2156 + $0x7c] sm:$0xf]
        %v2189 = vunpack.c.l.bf16 %v2157
        %v2190 = vunpack.c.l.bf16 %v2158
        %v2191 = vunpack.c.l.bf16 %v2159
        %v2192 = vunpack.c.l.bf16 %v2160
        %v2193 = vunpack.c.l.bf16 %v2161
        %v2194 = vunpack.c.l.bf16 %v2162
        %v2195 = vunpack.c.l.bf16 %v2163
        %v2196 = vunpack.c.l.bf16 %v2164
        %v2197 = vunpack.c.l.bf16 %v2165
        %v2198 = vunpack.c.l.bf16 %v2166
        %v2199 = vunpack.c.l.bf16 %v2167
        %v2200 = vunpack.c.l.bf16 %v2168
        %v2201 = vunpack.c.l.bf16 %v2169
        %v2202 = vunpack.c.l.bf16 %v2170
        %v2203 = vunpack.c.l.bf16 %v2171
        %v2204 = vunpack.c.l.bf16 %v2172
        %v2205 = vunpack.c.l.bf16 %v2173
        %v2206 = vunpack.c.l.bf16 %v2174
        %v2207 = vunpack.c.l.bf16 %v2175
        %v2208 = vunpack.c.l.bf16 %v2176
        %v2209 = vunpack.c.l.bf16 %v2177
        %v2210 = vunpack.c.l.bf16 %v2178
        %v2211 = vunpack.c.l.bf16 %v2179
        %v2212 = vunpack.c.l.bf16 %v2180
        %v2213 = vunpack.c.l.bf16 %v2181
        %v2214 = vunpack.c.l.bf16 %v2182
        %v2215 = vunpack.c.l.bf16 %v2183
        %v2216 = vunpack.c.l.bf16 %v2184
        %v2217 = vunpack.c.l.bf16 %v2185
        %v2218 = vunpack.c.l.bf16 %v2186
        %v2219 = vunpack.c.l.bf16 %v2187
        %v2220 = vunpack.c.l.bf16 %v2188
        %v2221 = vmul.f32 %v2189, %v1529
        %v2222 = vmul.f32 %v2190, %v1529
        %v2223 = vmul.f32 %v2191, %v1529
        %v2224 = vmul.f32 %v2192, %v1529
        %v2225 = vmul.f32 %v2193, %v1529
        %v2226 = vmul.f32 %v2194, %v1529
        %v2227 = vmul.f32 %v2195, %v1529
        %v2228 = vmul.f32 %v2196, %v1529
        %v2229 = vmul.f32 %v2197, %v1529
        %v2230 = vmul.f32 %v2198, %v1529
        %v2231 = vmul.f32 %v2199, %v1529
        %v2232 = vmul.f32 %v2200, %v1529
        %v2233 = vmul.f32 %v2201, %v1529
        %v2234 = vmul.f32 %v2202, %v1529
        %v2235 = vmul.f32 %v2203, %v1529
        %v2236 = vmul.f32 %v2204, %v1529
        %v2237 = vmul.f32 %v2205, %v1529
        %v2238 = vmul.f32 %v2206, %v1529
        %v2239 = vmul.f32 %v2207, %v1529
        %v2240 = vmul.f32 %v2208, %v1529
        %v2241 = vmul.f32 %v2209, %v1529
        %v2242 = vmul.f32 %v2210, %v1529
        %v2243 = vmul.f32 %v2211, %v1529
        %v2244 = vmul.f32 %v2212, %v1529
        %v2245 = vmul.f32 %v2213, %v1529
        %v2246 = vmul.f32 %v2214, %v1529
        %v2247 = vmul.f32 %v2215, %v1529
        %v2248 = vmul.f32 %v2216, %v1529
        %v2249 = vmul.f32 %v2217, %v1529
        %v2250 = vmul.f32 %v2218, %v1529
        %v2251 = vmul.f32 %v2219, %v1529
        %v2252 = vmul.f32 %v2220, %v1529
        %v2253 = vsel %vm987, %v2221, 0.0
        %2254 = vadd.xlane.f32.xlu0 %v2253
        %v2255 = vpop.xlane.xlu0 %2254
        %v2256 = vsel %vm987, %v2222, 0.0
        %2257 = vadd.xlane.f32.xlu0 %v2256
        %v2258 = vpop.xlane.xlu0 %2257
        %v2259 = vsel %vm987, %v2223, 0.0
        %2260 = vadd.xlane.f32.xlu0 %v2259
        %v2261 = vpop.xlane.xlu0 %2260
        %v2262 = vsel %vm987, %v2224, 0.0
        %2263 = vadd.xlane.f32.xlu0 %v2262
        %v2264 = vpop.xlane.xlu0 %2263
        %v2265 = vsel %vm987, %v2225, 0.0
        %2266 = vadd.xlane.f32.xlu0 %v2265
        %v2267 = vpop.xlane.xlu0 %2266
        %v2268 = vsel %vm987, %v2226, 0.0
        %2269 = vadd.xlane.f32.xlu0 %v2268
        %v2270 = vpop.xlane.xlu0 %2269
        %v2271 = vsel %vm987, %v2227, 0.0
        %2272 = vadd.xlane.f32.xlu0 %v2271
        %v2273 = vpop.xlane.xlu0 %2272
        %v2274 = vsel %vm987, %v2228, 0.0
        %2275 = vadd.xlane.f32.xlu0 %v2274
        %v2276 = vpop.xlane.xlu0 %2275
        %v2277 = vsel %vm987, %v2229, 0.0
        %2278 = vadd.xlane.f32.xlu0 %v2277
        %v2279 = vpop.xlane.xlu0 %2278
        %v2280 = vsel %vm987, %v2230, 0.0
        %2281 = vadd.xlane.f32.xlu0 %v2280
        %v2282 = vpop.xlane.xlu0 %2281
        %v2283 = vsel %vm987, %v2231, 0.0
        %2284 = vadd.xlane.f32.xlu0 %v2283
        %v2285 = vpop.xlane.xlu0 %2284
        %v2286 = vsel %vm987, %v2232, 0.0
        %2287 = vadd.xlane.f32.xlu0 %v2286
        %v2288 = vpop.xlane.xlu0 %2287
        %v2289 = vsel %vm987, %v2233, 0.0
        %2290 = vadd.xlane.f32.xlu0 %v2289
        %v2291 = vpop.xlane.xlu0 %2290
        %v2292 = vsel %vm987, %v2234, 0.0
        %2293 = vadd.xlane.f32.xlu0 %v2292
        %v2294 = vpop.xlane.xlu0 %2293
        %v2295 = vsel %vm987, %v2235, 0.0
        %2296 = vadd.xlane.f32.xlu0 %v2295
        %v2297 = vpop.xlane.xlu0 %2296
        %v2298 = vsel %vm987, %v2236, 0.0
        %2299 = vadd.xlane.f32.xlu0 %v2298
        %v2300 = vpop.xlane.xlu0 %2299
        %v2301 = vsel %vm987, %v2237, 0.0
        %2302 = vadd.xlane.f32.xlu0 %v2301
        %v2303 = vpop.xlane.xlu0 %2302
        %v2304 = vsel %vm987, %v2238, 0.0
        %2305 = vadd.xlane.f32.xlu0 %v2304
        %v2306 = vpop.xlane.xlu0 %2305
        %v2307 = vsel %vm987, %v2239, 0.0
        %2308 = vadd.xlane.f32.xlu0 %v2307
        %v2309 = vpop.xlane.xlu0 %2308
        %v2310 = vsel %vm987, %v2240, 0.0
        %2311 = vadd.xlane.f32.xlu0 %v2310
        %v2312 = vpop.xlane.xlu0 %2311
        %v2313 = vsel %vm987, %v2241, 0.0
        %2314 = vadd.xlane.f32.xlu0 %v2313
        %v2315 = vpop.xlane.xlu0 %2314
        %v2316 = vsel %vm987, %v2242, 0.0
        %2317 = vadd.xlane.f32.xlu0 %v2316
        %v2318 = vpop.xlane.xlu0 %2317
        %v2319 = vsel %vm987, %v2243, 0.0
        %2320 = vadd.xlane.f32.xlu0 %v2319
        %v2321 = vpop.xlane.xlu0 %2320
        %v2322 = vsel %vm987, %v2244, 0.0
        %2323 = vadd.xlane.f32.xlu0 %v2322
        %v2324 = vpop.xlane.xlu0 %2323
        %v2325 = vsel %vm987, %v2245, 0.0
        %2326 = vadd.xlane.f32.xlu0 %v2325
        %v2327 = vpop.xlane.xlu0 %2326
        %v2328 = vsel %vm987, %v2246, 0.0
        %2329 = vadd.xlane.f32.xlu0 %v2328
        %v2330 = vpop.xlane.xlu0 %2329
        %v2331 = vsel %vm987, %v2247, 0.0
        %2332 = vadd.xlane.f32.xlu0 %v2331
        %v2333 = vpop.xlane.xlu0 %2332
        %v2334 = vsel %vm987, %v2248, 0.0
        %2335 = vadd.xlane.f32.xlu0 %v2334
        %v2336 = vpop.xlane.xlu0 %2335
        %v2337 = vsel %vm987, %v2249, 0.0
        %2338 = vadd.xlane.f32.xlu0 %v2337
        %v2339 = vpop.xlane.xlu0 %2338
        %v2340 = vsel %vm987, %v2250, 0.0
        %2341 = vadd.xlane.f32.xlu0 %v2340
        %v2342 = vpop.xlane.xlu0 %2341
        %v2343 = vsel %vm987, %v2251, 0.0
        %2344 = vadd.xlane.f32.xlu0 %v2343
        %v2345 = vpop.xlane.xlu0 %2344
        %v2346 = vsel %vm987, %v2252, 0.0
        %2347 = vadd.xlane.f32.xlu0 %v2346
        %v2348 = vpop.xlane.xlu0 %2347
        %v2349 = vadd.f32 %v2255, %v1085
        %v2350 = vadd.f32 %v2258, %v1086
        %v2351 = vadd.f32 %v2261, %v1087
        %v2352 = vadd.f32 %v2264, %v1088
        %v2353 = vadd.f32 %v2267, %v1089
        %v2354 = vadd.f32 %v2270, %v1090
        %v2355 = vadd.f32 %v2273, %v1091
        %v2356 = vadd.f32 %v2276, %v1092
        %v2357 = vadd.f32 %v2279, %v1093
        %v2358 = vadd.f32 %v2282, %v1094
        %v2359 = vadd.f32 %v2285, %v1095
        %v2360 = vadd.f32 %v2288, %v1096
        %v2361 = vadd.f32 %v2291, %v1097
        %v2362 = vadd.f32 %v2294, %v1098
        %v2363 = vadd.f32 %v2297, %v1099
        %v2364 = vadd.f32 %v2300, %v1100
        %v2365 = vadd.f32 %v2303, %v1101
        %v2366 = vadd.f32 %v2306, %v1102
        %v2367 = vadd.f32 %v2309, %v1103
        %v2368 = vadd.f32 %v2312, %v1104
        %v2369 = vadd.f32 %v2315, %v1105
        %v2370 = vadd.f32 %v2318, %v1106
        %v2371 = vadd.f32 %v2321, %v1107
        %v2372 = vadd.f32 %v2324, %v1108
        %v2373 = vadd.f32 %v2327, %v1109
        %v2374 = vadd.f32 %v2330, %v1110
        %v2375 = vadd.f32 %v2333, %v1111
        %v2376 = vadd.f32 %v2336, %v1112
        %v2377 = vadd.f32 %v2339, %v1113
        %v2378 = vadd.f32 %v2342, %v1114
        %v2379 = vadd.f32 %v2345, %v1115
        %v2380 = vadd.f32 %v2348, %v1116
        %v2381 = vtanh.pop %v2349
        %v2382 = vtanh.pop %v2350
        %v2383 = vtanh.pop %v2351
        %v2384 = vtanh.pop %v2352
        %v2385 = vtanh.pop %v2353
        %v2386 = vtanh.pop %v2354
        %v2387 = vtanh.pop %v2355
        %v2388 = vtanh.pop %v2356
        %v2389 = vtanh.pop %v2357
        %v2390 = vtanh.pop %v2358
        %v2391 = vtanh.pop %v2359
        %v2392 = vtanh.pop %v2360
        %v2393 = vtanh.pop %v2361
        %v2394 = vtanh.pop %v2362
        %v2395 = vtanh.pop %v2363
        %v2396 = vtanh.pop %v2364
        %v2397 = vtanh.pop %v2365
        %v2398 = vtanh.pop %v2366
        %v2399 = vtanh.pop %v2367
        %v2400 = vtanh.pop %v2368
        %v2401 = vtanh.pop %v2369
        %v2402 = vtanh.pop %v2370
        %v2403 = vtanh.pop %v2371
        %v2404 = vtanh.pop %v2372
        %v2405 = vtanh.pop %v2373
        %v2406 = vtanh.pop %v2374
        %v2407 = vtanh.pop %v2375
        %v2408 = vtanh.pop %v2376
        %v2409 = vtanh.pop %v2377
        %v2410 = vtanh.pop %v2378
        %v2411 = vtanh.pop %v2379
        %v2412 = vtanh.pop %v2380
        %v2413 = vmul.f32 %v2381, 1.442695
        %v2414 = vpow.pop %v2413
        %v2415 = vmul.f32 %v2382, 1.442695
        %v2416 = vpow.pop %v2415
        %v2417 = vmul.f32 %v2383, 1.442695
        %v2418 = vpow.pop %v2417
        %v2419 = vmul.f32 %v2384, 1.442695
        %v2420 = vpow.pop %v2419
        %v2421 = vmul.f32 %v2385, 1.442695
        %v2422 = vpow.pop %v2421
        %v2423 = vmul.f32 %v2386, 1.442695
        %v2424 = vpow.pop %v2423
        %v2425 = vmul.f32 %v2387, 1.442695
        %v2426 = vpow.pop %v2425
        %v2427 = vmul.f32 %v2388, 1.442695
        %v2428 = vpow.pop %v2427
        %v2429 = vmul.f32 %v2389, 1.442695
        %v2430 = vpow.pop %v2429
        %v2431 = vmul.f32 %v2390, 1.442695
        %v2432 = vpow.pop %v2431
        %v2433 = vmul.f32 %v2391, 1.442695
        %v2434 = vpow.pop %v2433
        %v2435 = vmul.f32 %v2392, 1.442695
        %v2436 = vpow.pop %v2435
        %v2437 = vmul.f32 %v2393, 1.442695
        %v2438 = vpow.pop %v2437
        %v2439 = vmul.f32 %v2394, 1.442695
        %v2440 = vpow.pop %v2439
        %v2441 = vmul.f32 %v2395, 1.442695
        %v2442 = vpow.pop %v2441
        %v2443 = vmul.f32 %v2396, 1.442695
        %v2444 = vpow.pop %v2443
        %v2445 = vmul.f32 %v2397, 1.442695
        %v2446 = vpow.pop %v2445
        %v2447 = vmul.f32 %v2398, 1.442695
        %v2448 = vpow.pop %v2447
        %v2449 = vmul.f32 %v2399, 1.442695
        %v2450 = vpow.pop %v2449
        %v2451 = vmul.f32 %v2400, 1.442695
        %v2452 = vpow.pop %v2451
        %v2453 = vmul.f32 %v2401, 1.442695
        %v2454 = vpow.pop %v2453
        %v2455 = vmul.f32 %v2402, 1.442695
        %v2456 = vpow.pop %v2455
        %v2457 = vmul.f32 %v2403, 1.442695
        %v2458 = vpow.pop %v2457
        %v2459 = vmul.f32 %v2404, 1.442695
        %v2460 = vpow.pop %v2459
        %v2461 = vmul.f32 %v2405, 1.442695
        %v2462 = vpow.pop %v2461
        %v2463 = vmul.f32 %v2406, 1.442695
        %v2464 = vpow.pop %v2463
        %v2465 = vmul.f32 %v2407, 1.442695
        %v2466 = vpow.pop %v2465
        %v2467 = vmul.f32 %v2408, 1.442695
        %v2468 = vpow.pop %v2467
        %v2469 = vmul.f32 %v2409, 1.442695
        %v2470 = vpow.pop %v2469
        %v2471 = vmul.f32 %v2410, 1.442695
        %v2472 = vpow.pop %v2471
        %v2473 = vmul.f32 %v2411, 1.442695
        %v2474 = vpow.pop %v2473
        %v2475 = vmul.f32 %v2412, 1.442695
        %v2476 = vpow.pop %v2475
        %v2477 = vmax.bf16 %v2157, 0
        %v2478 = vmax.bf16 %v2158, 0
        %v2479 = vmax.bf16 %v2159, 0
        %v2480 = vmax.bf16 %v2160, 0
        %v2481 = vmax.bf16 %v2161, 0
        %v2482 = vmax.bf16 %v2162, 0
        %v2483 = vmax.bf16 %v2163, 0
        %v2484 = vmax.bf16 %v2164, 0
        %v2485 = vmax.bf16 %v2165, 0
        %v2486 = vmax.bf16 %v2166, 0
        %v2487 = vmax.bf16 %v2167, 0
        %v2488 = vmax.bf16 %v2168, 0
        %v2489 = vmax.bf16 %v2169, 0
        %v2490 = vmax.bf16 %v2170, 0
        %v2491 = vmax.bf16 %v2171, 0
        %v2492 = vmax.bf16 %v2172, 0
        %v2493 = vmax.bf16 %v2173, 0
        %v2494 = vmax.bf16 %v2174, 0
        %v2495 = vmax.bf16 %v2175, 0
        %v2496 = vmax.bf16 %v2176, 0
        %v2497 = vmax.bf16 %v2177, 0
        %v2498 = vmax.bf16 %v2178, 0
        %v2499 = vmax.bf16 %v2179, 0
        %v2500 = vmax.bf16 %v2180, 0
        %v2501 = vmax.bf16 %v2181, 0
        %v2502 = vmax.bf16 %v2182, 0
        %v2503 = vmax.bf16 %v2183, 0
        %v2504 = vmax.bf16 %v2184, 0
        %v2505 = vmax.bf16 %v2185, 0
        %v2506 = vmax.bf16 %v2186, 0
        %v2507 = vmax.bf16 %v2187, 0
        %v2508 = vmax.bf16 %v2188, 0
        %v2541 = vunpack.c.l.b16 %v2477
        %v2542 = vunpack.c.l.b16 %v2478
        %v2543 = vunpack.c.l.b16 %v2479
        %v2544 = vunpack.c.l.b16 %v2480
        %v2545 = vunpack.c.l.b16 %v2481
        %v2546 = vunpack.c.l.b16 %v2482
        %v2547 = vunpack.c.l.b16 %v2483
        %v2548 = vunpack.c.l.b16 %v2484
        %v2549 = vunpack.c.l.b16 %v2485
        %v2550 = vunpack.c.l.b16 %v2486
        %v2551 = vunpack.c.l.b16 %v2487
        %v2552 = vunpack.c.l.b16 %v2488
        %v2553 = vunpack.c.l.b16 %v2489
        %v2554 = vunpack.c.l.b16 %v2490
        %v2555 = vunpack.c.l.b16 %v2491
        %v2556 = vunpack.c.l.b16 %v2492
        %v2557 = vunpack.c.l.b16 %v2493
        %v2558 = vunpack.c.l.b16 %v2494
        %v2559 = vunpack.c.l.b16 %v2495
        %v2560 = vunpack.c.l.b16 %v2496
        %v2561 = vunpack.c.l.b16 %v2497
        %v2562 = vunpack.c.l.b16 %v2498
        %v2563 = vunpack.c.l.b16 %v2499
        %v2564 = vunpack.c.l.b16 %v2500
        %v2565 = vunpack.c.l.b16 %v2501
        %v2566 = vunpack.c.l.b16 %v2502
        %v2567 = vunpack.c.l.b16 %v2503
        %v2568 = vunpack.c.l.b16 %v2504
        %v2569 = vunpack.c.l.b16 %v2505
        %v2570 = vunpack.c.l.b16 %v2506
        %v2571 = vunpack.c.l.b16 %v2507
        %v2572 = vunpack.c.l.b16 %v2508
        %v2573 = vpack.c.b16 %v2542, %v2541
        %v2574 = vpack.c.b16 %v2544, %v2543
        %v2575 = vpack.c.b16 %v2546, %v2545
        %v2576 = vpack.c.b16 %v2548, %v2547
        %v2577 = vpack.c.b16 %v2550, %v2549
        %v2578 = vpack.c.b16 %v2552, %v2551
        %v2579 = vpack.c.b16 %v2554, %v2553
        %v2580 = vpack.c.b16 %v2556, %v2555
        %v2581 = vpack.c.b16 %v2558, %v2557
        %v2582 = vpack.c.b16 %v2560, %v2559
        %v2583 = vpack.c.b16 %v2562, %v2561
        %v2584 = vpack.c.b16 %v2564, %v2563
        %v2585 = vpack.c.b16 %v2566, %v2565
        %v2586 = vpack.c.b16 %v2568, %v2567
        %v2587 = vpack.c.b16 %v2570, %v2569
        %v2588 = vpack.c.b16 %v2572, %v2571
        %v2590 = vsel %vm987, %v2573, 0
        %v2593 = vsel %vm987, %v2574, 0
        %v2596 = vsel %vm987, %v2575, 0
        %v2599 = vsel %vm987, %v2576, 0
        %v2602 = vsel %vm987, %v2577, 0
        %v2605 = vsel %vm987, %v2578, 0
        %v2608 = vsel %vm987, %v2579, 0
        %v2611 = vsel %vm987, %v2580, 0
        %v2614 = vsel %vm987, %v2581, 0
        %v2617 = vsel %vm987, %v2582, 0
        %v2620 = vsel %vm987, %v2583, 0
        %v2623 = vsel %vm987, %v2584, 0
        %v2626 = vsel %vm987, %v2585, 0
        %v2629 = vsel %vm987, %v2586, 0
        %v2632 = vsel %vm987, %v2587, 0
        %v2635 = vsel %vm987, %v2588, 0
        %2637 = vmatprep.subr.bf16.mxu0 0
        %2638 = vmatpush1.bf16.msra.mxu0 %v1911
        %2639 = vmatprep.subr.bf16.mxu0 0
        %2640 = vmatpush1.bf16.msra.mxu0 %v1912
        %2641 = vmatprep.subr.bf16.mxu0 0
        %2642 = vmatpush1.bf16.msra.mxu0 0
        %2643 = vmatprep.subr.bf16.mxu0 0
        %2644 = vmatpush1.bf16.msra.mxu0 0
        %2645 = vmatprep.subr.bf16.mxu0 0
        %2646 = vmatpush1.bf16.msra.mxu0 0
        %2647 = vmatprep.subr.bf16.mxu0 0
        %2648 = vmatpush1.bf16.msra.mxu0 0
        %2649 = vmatprep.subr.bf16.mxu0 0
        %2650 = vmatpush1.bf16.msra.mxu0 0
        %2651 = vmatprep.subr.bf16.mxu0 0
        %2652 = vmatpush1.bf16.msra.mxu0 0
        %2653 = vmatprep.subr.bf16.mxu0 0
        %2654 = vmatpush1.bf16.msra.mxu0 0
        %2655 = vmatprep.subr.bf16.mxu0 0
        %2656 = vmatpush1.bf16.msra.mxu0 0
        %2657 = vmatprep.subr.bf16.mxu0 0
        %2658 = vmatpush1.bf16.msra.mxu0 0
        %2659 = vmatprep.subr.bf16.mxu0 0
        %2660 = vmatpush1.bf16.msra.mxu0 0
        %2661 = vmatprep.subr.bf16.mxu0 0
        %2662 = vmatpush1.bf16.msra.mxu0 0
        %2663 = vmatprep.subr.bf16.mxu0 0
        %2664 = vmatpush1.bf16.msra.mxu0 0
        %2665 = vmatprep.subr.bf16.mxu0 0
        %2666 = vmatpush1.bf16.msra.mxu0 0
        %2667 = vmatprep.subr.bf16.mxu0 0
        %2668 = vmatpush1.bf16.msra.mxu0 0
        %2669 = vmatprep.mubr.bf16.mxu0 0
        %2670 = vmatmul.mubr.bf16.gmra.mrb[0].mxu0 %v2590
        %v2671 = vpop.f32.mrb[0].mxu0
        %v2672 = vadd.f32 %v1335, %v2671
        %v2673 = vpop.f32.mrb[0].mxu0
        %v2674 = vpop.f32.mrb[0].mxu0
        %v2675 = vadd.f32 %v1338, %v2674
        %v2676 = vpop.f32.mrb[0].mxu0
        %2677 = vmatprep.mubr.bf16.mxu0 0
        %2678 = vmatmul.mubr.bf16.gmra.mrb[0].mxu0 %v2593
        %v2679 = vpop.f32.mrb[0].mxu0
        %v2680 = vadd.f32 %v1343, %v2679
        %v2681 = vpop.f32.mrb[0].mxu0
        %v2682 = vpop.f32.mrb[0].mxu0
        %v2683 = vadd.f32 %v1346, %v2682
        %v2684 = vpop.f32.mrb[0].mxu0
        %2685 = vmatprep.mubr.bf16.mxu0 0
        %2686 = vmatmul.mubr.bf16.gmra.mrb[0].mxu0 %v2596
        %v2687 = vpop.f32.mrb[0].mxu0
        %v2688 = vadd.f32 %v1351, %v2687
        %v2689 = vpop.f32.mrb[0].mxu0
        %v2690 = vpop.f32.mrb[0].mxu0
        %v2691 = vadd.f32 %v1354, %v2690
        %v2692 = vpop.f32.mrb[0].mxu0
        %2693 = vmatprep.mubr.bf16.mxu0 0
        %2694 = vmatmul.mubr.bf16.gmra.mrb[0].mxu0 %v2599
        %v2695 = vpop.f32.mrb[0].mxu0
        %v2696 = vadd.f32 %v1359, %v2695
        %v2697 = vpop.f32.mrb[0].mxu0
        %v2698 = vpop.f32.mrb[0].mxu0
        %v2699 = vadd.f32 %v1362, %v2698
        %v2700 = vpop.f32.mrb[0].mxu0
        %2701 = vmatprep.mubr.bf16.mxu0 0
        %2702 = vmatmul.mubr.bf16.gmra.mrb[0].mxu0 %v2602
        %v2703 = vpop.f32.mrb[0].mxu0
        %v2704 = vadd.f32 %v1367, %v2703
        %v2705 = vpop.f32.mrb[0].mxu0
        %v2706 = vpop.f32.mrb[0].mxu0
        %v2707 = vadd.f32 %v1370, %v2706
        %v2708 = vpop.f32.mrb[0].mxu0
        %2709 = vmatprep.mubr.bf16.mxu0 0
        %2710 = vmatmul.mubr.bf16.gmra.mrb[0].mxu0 %v2605
        %v2711 = vpop.f32.mrb[0].mxu0
        %v2712 = vadd.f32 %v1375, %v2711
        %v2713 = vpop.f32.mrb[0].mxu0
        %v2714 = vpop.f32.mrb[0].mxu0
        %v2715 = vadd.f32 %v1378, %v2714
        %v2716 = vpop.f32.mrb[0].mxu0
        %2717 = vmatprep.mubr.bf16.mxu0 0
        %2718 = vmatmul.mubr.bf16.gmra.mrb[0].mxu0 %v2608
        %v2719 = vpop.f32.mrb[0].mxu0
        %v2720 = vadd.f32 %v1383, %v2719
        %v2721 = vpop.f32.mrb[0].mxu0
        %v2722 = vpop.f32.mrb[0].mxu0
        %v2723 = vadd.f32 %v1386, %v2722
        %v2724 = vpop.f32.mrb[0].mxu0
        %2725 = vmatprep.mubr.bf16.mxu0 0
        %2726 = vmatmul.mubr.bf16.gmra.mrb[0].mxu0 %v2611
        %v2727 = vpop.f32.mrb[0].mxu0
        %v2728 = vadd.f32 %v1391, %v2727
        %v2729 = vpop.f32.mrb[0].mxu0
        %v2730 = vpop.f32.mrb[0].mxu0
        %v2731 = vadd.f32 %v1394, %v2730
        %v2732 = vpop.f32.mrb[0].mxu0
        %2733 = vmatprep.mubr.bf16.mxu0 0
        %2734 = vmatmul.mubr.bf16.gmra.mrb[0].mxu0 %v2614
        %v2735 = vpop.f32.mrb[0].mxu0
        %v2736 = vadd.f32 %v1399, %v2735
        %v2737 = vpop.f32.mrb[0].mxu0
        %v2738 = vpop.f32.mrb[0].mxu0
        %v2739 = vadd.f32 %v1402, %v2738
        %v2740 = vpop.f32.mrb[0].mxu0
        %2741 = vmatprep.mubr.bf16.mxu0 0
        %2742 = vmatmul.mubr.bf16.gmra.mrb[0].mxu0 %v2617
        %v2743 = vpop.f32.mrb[0].mxu0
        %v2744 = vadd.f32 %v1407, %v2743
        %v2745 = vpop.f32.mrb[0].mxu0
        %v2746 = vpop.f32.mrb[0].mxu0
        %v2747 = vadd.f32 %v1410, %v2746
        %v2748 = vpop.f32.mrb[0].mxu0
        %2749 = vmatprep.mubr.bf16.mxu0 0
        %2750 = vmatmul.mubr.bf16.gmra.mrb[0].mxu0 %v2620
        %v2751 = vpop.f32.mrb[0].mxu0
        %v2752 = vadd.f32 %v1415, %v2751
        %v2753 = vpop.f32.mrb[0].mxu0
        %v2754 = vpop.f32.mrb[0].mxu0
        %v2755 = vadd.f32 %v1418, %v2754
        %v2756 = vpop.f32.mrb[0].mxu0
        %2757 = vmatprep.mubr.bf16.mxu0 0
        %2758 = vmatmul.mubr.bf16.gmra.mrb[0].mxu0 %v2623
        %v2759 = vpop.f32.mrb[0].mxu0
        %v2760 = vadd.f32 %v1423, %v2759
        %v2761 = vpop.f32.mrb[0].mxu0
        %v2762 = vpop.f32.mrb[0].mxu0
        %v2763 = vadd.f32 %v1426, %v2762
        %v2764 = vpop.f32.mrb[0].mxu0
        %2765 = vmatprep.mubr.bf16.mxu0 0
        %2766 = vmatmul.mubr.bf16.gmra.mrb[0].mxu0 %v2626
        %v2767 = vpop.f32.mrb[0].mxu0
        %v2768 = vadd.f32 %v1431, %v2767
        %v2769 = vpop.f32.mrb[0].mxu0
        %v2770 = vpop.f32.mrb[0].mxu0
        %v2771 = vadd.f32 %v1434, %v2770
        %v2772 = vpop.f32.mrb[0].mxu0
        %2773 = vmatprep.mubr.bf16.mxu0 0
        %2774 = vmatmul.mubr.bf16.gmra.mrb[0].mxu0 %v2629
        %v2775 = vpop.f32.mrb[0].mxu0
        %v2776 = vadd.f32 %v1439, %v2775
        %v2777 = vpop.f32.mrb[0].mxu0
        %v2778 = vpop.f32.mrb[0].mxu0
        %v2779 = vadd.f32 %v1442, %v2778
        %v2780 = vpop.f32.mrb[0].mxu0
        %2781 = vmatprep.mubr.bf16.mxu0 0
        %2782 = vmatmul.mubr.bf16.gmra.mrb[0].mxu0 %v2632
        %v2783 = vpop.f32.mrb[0].mxu0
        %v2784 = vadd.f32 %v1447, %v2783
        %v2785 = vpop.f32.mrb[0].mxu0
        %v2786 = vpop.f32.mrb[0].mxu0
        %v2787 = vadd.f32 %v1450, %v2786
        %v2788 = vpop.f32.mrb[0].mxu0
        %2789 = vmatprep.mubr.bf16.mxu0 0
        %2790 = vmatmul.mubr.bf16.gmra.mrb[0].mxu0 %v2635
        %v2791 = vpop.f32.mrb[0].mxu0
        %v2792 = vadd.f32 %v1455, %v2791
        %v2793 = vpop.f32.mrb[0].mxu0
        %v2794 = vpop.f32.mrb[0].mxu0
        %v2795 = vadd.f32 %v1458, %v2794
        %v2796 = vpop.f32.mrb[0].mxu0
        %2797 = vdwg.mxu0
        %v2798 = vmul.f32 %v2414, %v2672
        %v2799 = vmul.f32 %v2416, %v2675
        %v2800 = vmul.f32 %v2418, %v2680
        %v2801 = vmul.f32 %v2420, %v2683
        %v2802 = vmul.f32 %v2422, %v2688
        %v2803 = vmul.f32 %v2424, %v2691
        %v2804 = vmul.f32 %v2426, %v2696
        %v2805 = vmul.f32 %v2428, %v2699
        %v2806 = vmul.f32 %v2430, %v2704
        %v2807 = vmul.f32 %v2432, %v2707
        %v2808 = vmul.f32 %v2434, %v2712
        %v2809 = vmul.f32 %v2436, %v2715
        %v2810 = vmul.f32 %v2438, %v2720
        %v2811 = vmul.f32 %v2440, %v2723
        %v2812 = vmul.f32 %v2442, %v2728
        %v2813 = vmul.f32 %v2444, %v2731
        %v2814 = vmul.f32 %v2446, %v2736
        %v2815 = vmul.f32 %v2448, %v2739
        %v2816 = vmul.f32 %v2450, %v2744
        %v2817 = vmul.f32 %v2452, %v2747
        %v2818 = vmul.f32 %v2454, %v2752
        %v2819 = vmul.f32 %v2456, %v2755
        %v2820 = vmul.f32 %v2458, %v2760
        %v2821 = vmul.f32 %v2460, %v2763
        %v2822 = vmul.f32 %v2462, %v2768
        %v2823 = vmul.f32 %v2464, %v2771
        %v2824 = vmul.f32 %v2466, %v2776
        %v2825 = vmul.f32 %v2468, %v2779
        %v2826 = vmul.f32 %v2470, %v2784
        %v2827 = vmul.f32 %v2472, %v2787
        %v2828 = vmul.f32 %v2474, %v2792
        %v2829 = vmul.f32 %v2476, %v2795
        %v2830 = vadd.f32 %v2124, %v2798
        %v2831 = vadd.f32 %v2125, %v2799
        %v2832 = vadd.f32 %v2126, %v2800
        %v2833 = vadd.f32 %v2127, %v2801
        %v2834 = vadd.f32 %v2128, %v2802
        %v2835 = vadd.f32 %v2129, %v2803
        %v2836 = vadd.f32 %v2130, %v2804
        %v2837 = vadd.f32 %v2131, %v2805
        %v2838 = vadd.f32 %v2132, %v2806
        %v2839 = vadd.f32 %v2133, %v2807
        %v2840 = vadd.f32 %v2134, %v2808
        %v2841 = vadd.f32 %v2135, %v2809
        %v2842 = vadd.f32 %v2136, %v2810
        %v2843 = vadd.f32 %v2137, %v2811
        %v2844 = vadd.f32 %v2138, %v2812
        %v2845 = vadd.f32 %v2139, %v2813
        %v2846 = vadd.f32 %v2140, %v2814
        %v2847 = vadd.f32 %v2141, %v2815
        %v2848 = vadd.f32 %v2142, %v2816
        %v2849 = vadd.f32 %v2143, %v2817
        %v2850 = vadd.f32 %v2144, %v2818
        %v2851 = vadd.f32 %v2145, %v2819
        %v2852 = vadd.f32 %v2146, %v2820
        %v2853 = vadd.f32 %v2147, %v2821
        %v2854 = vadd.f32 %v2148, %v2822
        %v2855 = vadd.f32 %v2149, %v2823
        %v2856 = vadd.f32 %v2150, %v2824
        %v2857 = vadd.f32 %v2151, %v2825
        %v2858 = vadd.f32 %v2152, %v2826
        %v2859 = vadd.f32 %v2153, %v2827
        %v2860 = vadd.f32 %v2154, %v2828
        %v2861 = vadd.f32 %v2155, %v2829
        %v2862 = vadd.f32 %v1724, %v2414
        %v2863 = vadd.f32 %v1726, %v2416
        %v2864 = vadd.f32 %v1728, %v2418
        %v2865 = vadd.f32 %v1730, %v2420
        %v2866 = vadd.f32 %v1732, %v2422
        %v2867 = vadd.f32 %v1734, %v2424
        %v2868 = vadd.f32 %v1736, %v2426
        %v2869 = vadd.f32 %v1738, %v2428
        %v2870 = vadd.f32 %v1740, %v2430
        %v2871 = vadd.f32 %v1742, %v2432
        %v2872 = vadd.f32 %v1744, %v2434
        %v2873 = vadd.f32 %v1746, %v2436
        %v2874 = vadd.f32 %v1748, %v2438
        %v2875 = vadd.f32 %v1750, %v2440
        %v2876 = vadd.f32 %v1752, %v2442
        %v2877 = vadd.f32 %v1754, %v2444
        %v2878 = vadd.f32 %v1756, %v2446
        %v2879 = vadd.f32 %v1758, %v2448
        %v2880 = vadd.f32 %v1760, %v2450
        %v2881 = vadd.f32 %v1762, %v2452
        %v2882 = vadd.f32 %v1764, %v2454
        %v2883 = vadd.f32 %v1766, %v2456
        %v2884 = vadd.f32 %v1768, %v2458
        %v2885 = vadd.f32 %v1770, %v2460
        %v2886 = vadd.f32 %v1772, %v2462
        %v2887 = vadd.f32 %v1774, %v2464
        %v2888 = vadd.f32 %v1776, %v2466
        %v2889 = vadd.f32 %v1778, %v2468
        %v2890 = vadd.f32 %v1780, %v2470
        %v2891 = vadd.f32 %v1782, %v2472
        %v2892 = vadd.f32 %v1784, %v2474
        %v2893 = vadd.f32 %v1786, %v2476
        %s2894 = scalar_lea.vmem %s832, 256 [#allocation3]
        %v2895 = vld [vmem:[%s2894] sm:$0xf]
        %v2896 = vld [vmem:[%s2894 + $0x4] sm:$0xf]
        %v2897 = vld [vmem:[%s2894 + $0x8] sm:$0xf]
        %v2898 = vld [vmem:[%s2894 + $0xc] sm:$0xf]
        %v2899 = vld [vmem:[%s2894 + $0x10] sm:$0xf]
        %v2900 = vld [vmem:[%s2894 + $0x14] sm:$0xf]
        %v2901 = vld [vmem:[%s2894 + $0x18] sm:$0xf]
        %v2902 = vld [vmem:[%s2894 + $0x1c] sm:$0xf]
        %v2903 = vld [vmem:[%s2894 + $0x20] sm:$0xf]
        %v2904 = vld [vmem:[%s2894 + $0x24] sm:$0xf]
        %v2905 = vld [vmem:[%s2894 + $0x28] sm:$0xf]
        %v2906 = vld [vmem:[%s2894 + $0x2c] sm:$0xf]
        %v2907 = vld [vmem:[%s2894 + $0x30] sm:$0xf]
        %v2908 = vld [vmem:[%s2894 + $0x34] sm:$0xf]
        %v2909 = vld [vmem:[%s2894 + $0x38] sm:$0xf]
        %v2910 = vld [vmem:[%s2894 + $0x3c] sm:$0xf]
        %v2911 = vld [vmem:[%s2894 + $0x40] sm:$0xf]
        %v2912 = vld [vmem:[%s2894 + $0x44] sm:$0xf]
        %v2913 = vld [vmem:[%s2894 + $0x48] sm:$0xf]
        %v2914 = vld [vmem:[%s2894 + $0x4c] sm:$0xf]
        %v2915 = vld [vmem:[%s2894 + $0x50] sm:$0xf]
        %v2916 = vld [vmem:[%s2894 + $0x54] sm:$0xf]
        %v2917 = vld [vmem:[%s2894 + $0x58] sm:$0xf]
        %v2918 = vld [vmem:[%s2894 + $0x5c] sm:$0xf]
        %v2919 = vld [vmem:[%s2894 + $0x60] sm:$0xf]
        %v2920 = vld [vmem:[%s2894 + $0x64] sm:$0xf]
        %v2921 = vld [vmem:[%s2894 + $0x68] sm:$0xf]
        %v2922 = vld [vmem:[%s2894 + $0x6c] sm:$0xf]
        %v2923 = vld [vmem:[%s2894 + $0x70] sm:$0xf]
        %v2924 = vld [vmem:[%s2894 + $0x74] sm:$0xf]
        %v2925 = vld [vmem:[%s2894 + $0x78] sm:$0xf]
        %v2926 = vld [vmem:[%s2894 + $0x7c] sm:$0xf]
        %v2927 = vunpack.c.l.bf16 %v2895
        %v2928 = vunpack.c.l.bf16 %v2896
        %v2929 = vunpack.c.l.bf16 %v2897
        %v2930 = vunpack.c.l.bf16 %v2898
        %v2931 = vunpack.c.l.bf16 %v2899
        %v2932 = vunpack.c.l.bf16 %v2900
        %v2933 = vunpack.c.l.bf16 %v2901
        %v2934 = vunpack.c.l.bf16 %v2902
        %v2935 = vunpack.c.l.bf16 %v2903
        %v2936 = vunpack.c.l.bf16 %v2904
        %v2937 = vunpack.c.l.bf16 %v2905
        %v2938 = vunpack.c.l.bf16 %v2906
        %v2939 = vunpack.c.l.bf16 %v2907
        %v2940 = vunpack.c.l.bf16 %v2908
        %v2941 = vunpack.c.l.bf16 %v2909
        %v2942 = vunpack.c.l.bf16 %v2910
        %v2943 = vunpack.c.l.bf16 %v2911
        %v2944 = vunpack.c.l.bf16 %v2912
        %v2945 = vunpack.c.l.bf16 %v2913
        %v2946 = vunpack.c.l.bf16 %v2914
        %v2947 = vunpack.c.l.bf16 %v2915
        %v2948 = vunpack.c.l.bf16 %v2916
        %v2949 = vunpack.c.l.bf16 %v2917
        %v2950 = vunpack.c.l.bf16 %v2918
        %v2951 = vunpack.c.l.bf16 %v2919
        %v2952 = vunpack.c.l.bf16 %v2920
        %v2953 = vunpack.c.l.bf16 %v2921
        %v2954 = vunpack.c.l.bf16 %v2922
        %v2955 = vunpack.c.l.bf16 %v2923
        %v2956 = vunpack.c.l.bf16 %v2924
        %v2957 = vunpack.c.l.bf16 %v2925
        %v2958 = vunpack.c.l.bf16 %v2926
        %v2959 = vmul.f32 %v2927, %v1529
        %v2960 = vmul.f32 %v2928, %v1529
        %v2961 = vmul.f32 %v2929, %v1529
        %v2962 = vmul.f32 %v2930, %v1529
        %v2963 = vmul.f32 %v2931, %v1529
        %v2964 = vmul.f32 %v2932, %v1529
        %v2965 = vmul.f32 %v2933, %v1529
        %v2966 = vmul.f32 %v2934, %v1529
        %v2967 = vmul.f32 %v2935, %v1529
        %v2968 = vmul.f32 %v2936, %v1529
        %v2969 = vmul.f32 %v2937, %v1529
        %v2970 = vmul.f32 %v2938, %v1529
        %v2971 = vmul.f32 %v2939, %v1529
        %v2972 = vmul.f32 %v2940, %v1529
        %v2973 = vmul.f32 %v2941, %v1529
        %v2974 = vmul.f32 %v2942, %v1529
        %v2975 = vmul.f32 %v2943, %v1529
        %v2976 = vmul.f32 %v2944, %v1529
        %v2977 = vmul.f32 %v2945, %v1529
        %v2978 = vmul.f32 %v2946, %v1529
        %v2979 = vmul.f32 %v2947, %v1529
        %v2980 = vmul.f32 %v2948, %v1529
        %v2981 = vmul.f32 %v2949, %v1529
        %v2982 = vmul.f32 %v2950, %v1529
        %v2983 = vmul.f32 %v2951, %v1529
        %v2984 = vmul.f32 %v2952, %v1529
        %v2985 = vmul.f32 %v2953, %v1529
        %v2986 = vmul.f32 %v2954, %v1529
        %v2987 = vmul.f32 %v2955, %v1529
        %v2988 = vmul.f32 %v2956, %v1529
        %v2989 = vmul.f32 %v2957, %v1529
        %v2990 = vmul.f32 %v2958, %v1529
        %v2991 = vsel %vm987, %v2959, 0.0
        %2992 = vadd.xlane.f32.xlu0 %v2991
        %v2993 = vpop.xlane.xlu0 %2992
        %v2994 = vsel %vm987, %v2960, 0.0
        %2995 = vadd.xlane.f32.xlu0 %v2994
        %v2996 = vpop.xlane.xlu0 %2995
        %v2997 = vsel %vm987, %v2961, 0.0
        %2998 = vadd.xlane.f32.xlu0 %v2997
        %v2999 = vpop.xlane.xlu0 %2998
        %v3000 = vsel %vm987, %v2962, 0.0
        %3001 = vadd.xlane.f32.xlu0 %v3000
        %v3002 = vpop.xlane.xlu0 %3001
        %v3003 = vsel %vm987, %v2963, 0.0
        %3004 = vadd.xlane.f32.xlu0 %v3003
        %v3005 = vpop.xlane.xlu0 %3004
        %v3006 = vsel %vm987, %v2964, 0.0
        %3007 = vadd.xlane.f32.xlu0 %v3006
        %v3008 = vpop.xlane.xlu0 %3007
        %v3009 = vsel %vm987, %v2965, 0.0
        %3010 = vadd.xlane.f32.xlu0 %v3009
        %v3011 = vpop.xlane.xlu0 %3010
        %v3012 = vsel %vm987, %v2966, 0.0
        %3013 = vadd.xlane.f32.xlu0 %v3012
        %v3014 = vpop.xlane.xlu0 %3013
        %v3015 = vsel %vm987, %v2967, 0.0
        %3016 = vadd.xlane.f32.xlu0 %v3015
        %v3017 = vpop.xlane.xlu0 %3016
        %v3018 = vsel %vm987, %v2968, 0.0
        %3019 = vadd.xlane.f32.xlu0 %v3018
        %v3020 = vpop.xlane.xlu0 %3019
        %v3021 = vsel %vm987, %v2969, 0.0
        %3022 = vadd.xlane.f32.xlu0 %v3021
        %v3023 = vpop.xlane.xlu0 %3022
        %v3024 = vsel %vm987, %v2970, 0.0
        %3025 = vadd.xlane.f32.xlu0 %v3024
        %v3026 = vpop.xlane.xlu0 %3025
        %v3027 = vsel %vm987, %v2971, 0.0
        %3028 = vadd.xlane.f32.xlu0 %v3027
        %v3029 = vpop.xlane.xlu0 %3028
        %v3030 = vsel %vm987, %v2972, 0.0
        %3031 = vadd.xlane.f32.xlu0 %v3030
        %v3032 = vpop.xlane.xlu0 %3031
        %v3033 = vsel %vm987, %v2973, 0.0
        %3034 = vadd.xlane.f32.xlu0 %v3033
        %v3035 = vpop.xlane.xlu0 %3034
        %v3036 = vsel %vm987, %v2974, 0.0
        %3037 = vadd.xlane.f32.xlu0 %v3036
        %v3038 = vpop.xlane.xlu0 %3037
        %v3039 = vsel %vm987, %v2975, 0.0
        %3040 = vadd.xlane.f32.xlu0 %v3039
        %v3041 = vpop.xlane.xlu0 %3040
        %v3042 = vsel %vm987, %v2976, 0.0
        %3043 = vadd.xlane.f32.xlu0 %v3042
        %v3044 = vpop.xlane.xlu0 %3043
        %v3045 = vsel %vm987, %v2977, 0.0
        %3046 = vadd.xlane.f32.xlu0 %v3045
        %v3047 = vpop.xlane.xlu0 %3046
        %v3048 = vsel %vm987, %v2978, 0.0
        %3049 = vadd.xlane.f32.xlu0 %v3048
        %v3050 = vpop.xlane.xlu0 %3049
        %v3051 = vsel %vm987, %v2979, 0.0
        %3052 = vadd.xlane.f32.xlu0 %v3051
        %v3053 = vpop.xlane.xlu0 %3052
        %v3054 = vsel %vm987, %v2980, 0.0
        %3055 = vadd.xlane.f32.xlu0 %v3054
        %v3056 = vpop.xlane.xlu0 %3055
        %v3057 = vsel %vm987, %v2981, 0.0
        %3058 = vadd.xlane.f32.xlu0 %v3057
        %v3059 = vpop.xlane.xlu0 %3058
        %v3060 = vsel %vm987, %v2982, 0.0
        %3061 = vadd.xlane.f32.xlu0 %v3060
        %v3062 = vpop.xlane.xlu0 %3061
        %v3063 = vsel %vm987, %v2983, 0.0
        %3064 = vadd.xlane.f32.xlu0 %v3063
        %v3065 = vpop.xlane.xlu0 %3064
        %v3066 = vsel %vm987, %v2984, 0.0
        %3067 = vadd.xlane.f32.xlu0 %v3066
        %v3068 = vpop.xlane.xlu0 %3067
        %v3069 = vsel %vm987, %v2985, 0.0
        %3070 = vadd.xlane.f32.xlu0 %v3069
        %v3071 = vpop.xlane.xlu0 %3070
        %v3072 = vsel %vm987, %v2986, 0.0
        %3073 = vadd.xlane.f32.xlu0 %v3072
        %v3074 = vpop.xlane.xlu0 %3073
        %v3075 = vsel %vm987, %v2987, 0.0
        %3076 = vadd.xlane.f32.xlu0 %v3075
        %v3077 = vpop.xlane.xlu0 %3076
        %v3078 = vsel %vm987, %v2988, 0.0
        %3079 = vadd.xlane.f32.xlu0 %v3078
        %v3080 = vpop.xlane.xlu0 %3079
        %v3081 = vsel %vm987, %v2989, 0.0
        %3082 = vadd.xlane.f32.xlu0 %v3081
        %v3083 = vpop.xlane.xlu0 %3082
        %v3084 = vsel %vm987, %v2990, 0.0
        %3085 = vadd.xlane.f32.xlu0 %v3084
        %v3086 = vpop.xlane.xlu0 %3085
        %v3087 = vadd.f32 %v2993, %v1085
        %v3088 = vadd.f32 %v2996, %v1086
        %v3089 = vadd.f32 %v2999, %v1087
        %v3090 = vadd.f32 %v3002, %v1088
        %v3091 = vadd.f32 %v3005, %v1089
        %v3092 = vadd.f32 %v3008, %v1090
        %v3093 = vadd.f32 %v3011, %v1091
        %v3094 = vadd.f32 %v3014, %v1092
        %v3095 = vadd.f32 %v3017, %v1093
        %v3096 = vadd.f32 %v3020, %v1094
        %v3097 = vadd.f32 %v3023, %v1095
        %v3098 = vadd.f32 %v3026, %v1096
        %v3099 = vadd.f32 %v3029, %v1097
        %v3100 = vadd.f32 %v3032, %v1098
        %v3101 = vadd.f32 %v3035, %v1099
        %v3102 = vadd.f32 %v3038, %v1100
        %v3103 = vadd.f32 %v3041, %v1101
        %v3104 = vadd.f32 %v3044, %v1102
        %v3105 = vadd.f32 %v3047, %v1103
        %v3106 = vadd.f32 %v3050, %v1104
        %v3107 = vadd.f32 %v3053, %v1105
        %v3108 = vadd.f32 %v3056, %v1106
        %v3109 = vadd.f32 %v3059, %v1107
        %v3110 = vadd.f32 %v3062, %v1108
        %v3111 = vadd.f32 %v3065, %v1109
        %v3112 = vadd.f32 %v3068, %v1110
        %v3113 = vadd.f32 %v3071, %v1111
        %v3114 = vadd.f32 %v3074, %v1112
        %v3115 = vadd.f32 %v3077, %v1113
        %v3116 = vadd.f32 %v3080, %v1114
        %v3117 = vadd.f32 %v3083, %v1115
        %v3118 = vadd.f32 %v3086, %v1116
        %v3119 = vtanh.pop %v3087
        %v3120 = vtanh.pop %v3088
        %v3121 = vtanh.pop %v3089
        %v3122 = vtanh.pop %v3090
        %v3123 = vtanh.pop %v3091
        %v3124 = vtanh.pop %v3092
        %v3125 = vtanh.pop %v3093
        %v3126 = vtanh.pop %v3094
        %v3127 = vtanh.pop %v3095
        %v3128 = vtanh.pop %v3096
        %v3129 = vtanh.pop %v3097
        %v3130 = vtanh.pop %v3098
        %v3131 = vtanh.pop %v3099
        %v3132 = vtanh.pop %v3100
        %v3133 = vtanh.pop %v3101
        %v3134 = vtanh.pop %v3102
        %v3135 = vtanh.pop %v3103
        %v3136 = vtanh.pop %v3104
        %v3137 = vtanh.pop %v3105
        %v3138 = vtanh.pop %v3106
        %v3139 = vtanh.pop %v3107
        %v3140 = vtanh.pop %v3108
        %v3141 = vtanh.pop %v3109
        %v3142 = vtanh.pop %v3110
        %v3143 = vtanh.pop %v3111
        %v3144 = vtanh.pop %v3112
        %v3145 = vtanh.pop %v3113
        %v3146 = vtanh.pop %v3114
        %v3147 = vtanh.pop %v3115
        %v3148 = vtanh.pop %v3116
        %v3149 = vtanh.pop %v3117
        %v3150 = vtanh.pop %v3118
        %v3151 = vmul.f32 %v3119, 1.442695
        %v3152 = vpow.pop %v3151
        %v3153 = vmul.f32 %v3120, 1.442695
        %v3154 = vpow.pop %v3153
        %v3155 = vmul.f32 %v3121, 1.442695
        %v3156 = vpow.pop %v3155
        %v3157 = vmul.f32 %v3122, 1.442695
        %v3158 = vpow.pop %v3157
        %v3159 = vmul.f32 %v3123, 1.442695
        %v3160 = vpow.pop %v3159
        %v3161 = vmul.f32 %v3124, 1.442695
        %v3162 = vpow.pop %v3161
        %v3163 = vmul.f32 %v3125, 1.442695
        %v3164 = vpow.pop %v3163
        %v3165 = vmul.f32 %v3126, 1.442695
        %v3166 = vpow.pop %v3165
        %v3167 = vmul.f32 %v3127, 1.442695
        %v3168 = vpow.pop %v3167
        %v3169 = vmul.f32 %v3128, 1.442695
        %v3170 = vpow.pop %v3169
        %v3171 = vmul.f32 %v3129, 1.442695
        %v3172 = vpow.pop %v3171
        %v3173 = vmul.f32 %v3130, 1.442695
        %v3174 = vpow.pop %v3173
        %v3175 = vmul.f32 %v3131, 1.442695
        %v3176 = vpow.pop %v3175
        %v3177 = vmul.f32 %v3132, 1.442695
        %v3178 = vpow.pop %v3177
        %v3179 = vmul.f32 %v3133, 1.442695
        %v3180 = vpow.pop %v3179
        %v3181 = vmul.f32 %v3134, 1.442695
        %v3182 = vpow.pop %v3181
        %v3183 = vmul.f32 %v3135, 1.442695
        %v3184 = vpow.pop %v3183
        %v3185 = vmul.f32 %v3136, 1.442695
        %v3186 = vpow.pop %v3185
        %v3187 = vmul.f32 %v3137, 1.442695
        %v3188 = vpow.pop %v3187
        %v3189 = vmul.f32 %v3138, 1.442695
        %v3190 = vpow.pop %v3189
        %v3191 = vmul.f32 %v3139, 1.442695
        %v3192 = vpow.pop %v3191
        %v3193 = vmul.f32 %v3140, 1.442695
        %v3194 = vpow.pop %v3193
        %v3195 = vmul.f32 %v3141, 1.442695
        %v3196 = vpow.pop %v3195
        %v3197 = vmul.f32 %v3142, 1.442695
        %v3198 = vpow.pop %v3197
        %v3199 = vmul.f32 %v3143, 1.442695
        %v3200 = vpow.pop %v3199
        %v3201 = vmul.f32 %v3144, 1.442695
        %v3202 = vpow.pop %v3201
        %v3203 = vmul.f32 %v3145, 1.442695
        %v3204 = vpow.pop %v3203
        %v3205 = vmul.f32 %v3146, 1.442695
        %v3206 = vpow.pop %v3205
        %v3207 = vmul.f32 %v3147, 1.442695
        %v3208 = vpow.pop %v3207
        %v3209 = vmul.f32 %v3148, 1.442695
        %v3210 = vpow.pop %v3209
        %v3211 = vmul.f32 %v3149, 1.442695
        %v3212 = vpow.pop %v3211
        %v3213 = vmul.f32 %v3150, 1.442695
        %v3214 = vpow.pop %v3213
        %v3215 = vmax.bf16 %v2895, 0
        %v3216 = vmax.bf16 %v2896, 0
        %v3217 = vmax.bf16 %v2897, 0
        %v3218 = vmax.bf16 %v2898, 0
        %v3219 = vmax.bf16 %v2899, 0
        %v3220 = vmax.bf16 %v2900, 0
        %v3221 = vmax.bf16 %v2901, 0
        %v3222 = vmax.bf16 %v2902, 0
        %v3223 = vmax.bf16 %v2903, 0
        %v3224 = vmax.bf16 %v2904, 0
        %v3225 = vmax.bf16 %v2905, 0
        %v3226 = vmax.bf16 %v2906, 0
        %v3227 = vmax.bf16 %v2907, 0
        %v3228 = vmax.bf16 %v2908, 0
        %v3229 = vmax.bf16 %v2909, 0
        %v3230 = vmax.bf16 %v2910, 0
        %v3231 = vmax.bf16 %v2911, 0
        %v3232 = vmax.bf16 %v2912, 0
        %v3233 = vmax.bf16 %v2913, 0
        %v3234 = vmax.bf16 %v2914, 0
        %v3235 = vmax.bf16 %v2915, 0
        %v3236 = vmax.bf16 %v2916, 0
        %v3237 = vmax.bf16 %v2917, 0
        %v3238 = vmax.bf16 %v2918, 0
        %v3239 = vmax.bf16 %v2919, 0
        %v3240 = vmax.bf16 %v2920, 0
        %v3241 = vmax.bf16 %v2921, 0
        %v3242 = vmax.bf16 %v2922, 0
        %v3243 = vmax.bf16 %v2923, 0
        %v3244 = vmax.bf16 %v2924, 0
        %v3245 = vmax.bf16 %v2925, 0
        %v3246 = vmax.bf16 %v2926, 0
        %v3279 = vunpack.c.l.b16 %v3215
        %v3280 = vunpack.c.l.b16 %v3216
        %v3281 = vunpack.c.l.b16 %v3217
        %v3282 = vunpack.c.l.b16 %v3218
        %v3283 = vunpack.c.l.b16 %v3219
        %v3284 = vunpack.c.l.b16 %v3220
        %v3285 = vunpack.c.l.b16 %v3221
        %v3286 = vunpack.c.l.b16 %v3222
        %v3287 = vunpack.c.l.b16 %v3223
        %v3288 = vunpack.c.l.b16 %v3224
        %v3289 = vunpack.c.l.b16 %v3225
        %v3290 = vunpack.c.l.b16 %v3226
        %v3291 = vunpack.c.l.b16 %v3227
        %v3292 = vunpack.c.l.b16 %v3228
        %v3293 = vunpack.c.l.b16 %v3229
        %v3294 = vunpack.c.l.b16 %v3230
        %v3295 = vunpack.c.l.b16 %v3231
        %v3296 = vunpack.c.l.b16 %v3232
        %v3297 = vunpack.c.l.b16 %v3233
        %v3298 = vunpack.c.l.b16 %v3234
        %v3299 = vunpack.c.l.b16 %v3235
        %v3300 = vunpack.c.l.b16 %v3236
        %v3301 = vunpack.c.l.b16 %v3237
        %v3302 = vunpack.c.l.b16 %v3238
        %v3303 = vunpack.c.l.b16 %v3239
        %v3304 = vunpack.c.l.b16 %v3240
        %v3305 = vunpack.c.l.b16 %v3241
        %v3306 = vunpack.c.l.b16 %v3242
        %v3307 = vunpack.c.l.b16 %v3243
        %v3308 = vunpack.c.l.b16 %v3244
        %v3309 = vunpack.c.l.b16 %v3245
        %v3310 = vunpack.c.l.b16 %v3246
        %v3311 = vpack.c.b16 %v3280, %v3279
        %v3312 = vpack.c.b16 %v3282, %v3281
        %v3313 = vpack.c.b16 %v3284, %v3283
        %v3314 = vpack.c.b16 %v3286, %v3285
        %v3315 = vpack.c.b16 %v3288, %v3287
        %v3316 = vpack.c.b16 %v3290, %v3289
        %v3317 = vpack.c.b16 %v3292, %v3291
        %v3318 = vpack.c.b16 %v3294, %v3293
        %v3319 = vpack.c.b16 %v3296, %v3295
        %v3320 = vpack.c.b16 %v3298, %v3297
        %v3321 = vpack.c.b16 %v3300, %v3299
        %v3322 = vpack.c.b16 %v3302, %v3301
        %v3323 = vpack.c.b16 %v3304, %v3303
        %v3324 = vpack.c.b16 %v3306, %v3305
        %v3325 = vpack.c.b16 %v3308, %v3307
        %v3326 = vpack.c.b16 %v3310, %v3309
        %v3328 = vsel %vm987, %v3311, 0
        %v3331 = vsel %vm987, %v3312, 0
        %v3334 = vsel %vm987, %v3313, 0
        %v3337 = vsel %vm987, %v3314, 0
        %v3340 = vsel %vm987, %v3315, 0
        %v3343 = vsel %vm987, %v3316, 0
        %v3346 = vsel %vm987, %v3317, 0
        %v3349 = vsel %vm987, %v3318, 0
        %v3352 = vsel %vm987, %v3319, 0
        %v3355 = vsel %vm987, %v3320, 0
        %v3358 = vsel %vm987, %v3321, 0
        %v3361 = vsel %vm987, %v3322, 0
        %v3364 = vsel %vm987, %v3323, 0
        %v3367 = vsel %vm987, %v3324, 0
        %v3370 = vsel %vm987, %v3325, 0
        %v3373 = vsel %vm987, %v3326, 0
        %3375 = vmatprep.subr.bf16.mxu0 0
        %3376 = vmatpush1.bf16.msra.mxu0 %v1911
        %3377 = vmatprep.subr.bf16.mxu0 0
        %3378 = vmatpush1.bf16.msra.mxu0 %v1912
        %3379 = vmatprep.subr.bf16.mxu0 0
        %3380 = vmatpush1.bf16.msra.mxu0 0
        %3381 = vmatprep.subr.bf16.mxu0 0
        %3382 = vmatpush1.bf16.msra.mxu0 0
        %3383 = vmatprep.subr.bf16.mxu0 0
        %3384 = vmatpush1.bf16.msra.mxu0 0
        %3385 = vmatprep.subr.bf16.mxu0 0
        %3386 = vmatpush1.bf16.msra.mxu0 0
        %3387 = vmatprep.subr.bf16.mxu0 0
        %3388 = vmatpush1.bf16.msra.mxu0 0
        %3389 = vmatprep.subr.bf16.mxu0 0
        %3390 = vmatpush1.bf16.msra.mxu0 0
        %3391 = vmatprep.subr.bf16.mxu0 0
        %3392 = vmatpush1.bf16.msra.mxu0 0
        %3393 = vmatprep.subr.bf16.mxu0 0
        %3394 = vmatpush1.bf16.msra.mxu0 0
        %3395 = vmatprep.subr.bf16.mxu0 0
        %3396 = vmatpush1.bf16.msra.mxu0 0
        %3397 = vmatprep.subr.bf16.mxu0 0
        %3398 = vmatpush1.bf16.msra.mxu0 0
        %3399 = vmatprep.subr.bf16.mxu0 0
        %3400 = vmatpush1.bf16.msra.mxu0 0
        %3401 = vmatprep.subr.bf16.mxu0 0
        %3402 = vmatpush1.bf16.msra.mxu0 0
        %3403 = vmatprep.subr.bf16.mxu0 0
        %3404 = vmatpush1.bf16.msra.mxu0 0
        %3405 = vmatprep.subr.bf16.mxu0 0
        %3406 = vmatpush1.bf16.msra.mxu0 0
        %3407 = vmatprep.mubr.bf16.mxu0 0
        %3408 = vmatmul.mubr.bf16.gmra.mrb[0].mxu0 %v3328
        %v3409 = vpop.f32.mrb[0].mxu0
        %v3410 = vadd.f32 %v1335, %v3409
        %v3411 = vpop.f32.mrb[0].mxu0
        %v3412 = vpop.f32.mrb[0].mxu0
        %v3413 = vadd.f32 %v1338, %v3412
        %v3414 = vpop.f32.mrb[0].mxu0
        %3415 = vmatprep.mubr.bf16.mxu0 0
        %3416 = vmatmul.mubr.bf16.gmra.mrb[0].mxu0 %v3331
        %v3417 = vpop.f32.mrb[0].mxu0
        %v3418 = vadd.f32 %v1343, %v3417
        %v3419 = vpop.f32.mrb[0].mxu0
        %v3420 = vpop.f32.mrb[0].mxu0
        %v3421 = vadd.f32 %v1346, %v3420
        %v3422 = vpop.f32.mrb[0].mxu0
        %3423 = vmatprep.mubr.bf16.mxu0 0
        %3424 = vmatmul.mubr.bf16.gmra.mrb[0].mxu0 %v3334
        %v3425 = vpop.f32.mrb[0].mxu0
        %v3426 = vadd.f32 %v1351, %v3425
        %v3427 = vpop.f32.mrb[0].mxu0
        %v3428 = vpop.f32.mrb[0].mxu0
        %v3429 = vadd.f32 %v1354, %v3428
        %v3430 = vpop.f32.mrb[0].mxu0
        %3431 = vmatprep.mubr.bf16.mxu0 0
        %3432 = vmatmul.mubr.bf16.gmra.mrb[0].mxu0 %v3337
        %v3433 = vpop.f32.mrb[0].mxu0
        %v3434 = vadd.f32 %v1359, %v3433
        %v3435 = vpop.f32.mrb[0].mxu0
        %v3436 = vpop.f32.mrb[0].mxu0
        %v3437 = vadd.f32 %v1362, %v3436
        %v3438 = vpop.f32.mrb[0].mxu0
        %3439 = vmatprep.mubr.bf16.mxu0 0
        %3440 = vmatmul.mubr.bf16.gmra.mrb[0].mxu0 %v3340
        %v3441 = vpop.f32.mrb[0].mxu0
        %v3442 = vadd.f32 %v1367, %v3441
        %v3443 = vpop.f32.mrb[0].mxu0
        %v3444 = vpop.f32.mrb[0].mxu0
        %v3445 = vadd.f32 %v1370, %v3444
        %v3446 = vpop.f32.mrb[0].mxu0
        %3447 = vmatprep.mubr.bf16.mxu0 0
        %3448 = vmatmul.mubr.bf16.gmra.mrb[0].mxu0 %v3343
        %v3449 = vpop.f32.mrb[0].mxu0
        %v3450 = vadd.f32 %v1375, %v3449
        %v3451 = vpop.f32.mrb[0].mxu0
        %v3452 = vpop.f32.mrb[0].mxu0
        %v3453 = vadd.f32 %v1378, %v3452
        %v3454 = vpop.f32.mrb[0].mxu0
        %3455 = vmatprep.mubr.bf16.mxu0 0
        %3456 = vmatmul.mubr.bf16.gmra.mrb[0].mxu0 %v3346
        %v3457 = vpop.f32.mrb[0].mxu0
        %v3458 = vadd.f32 %v1383, %v3457
        %v3459 = vpop.f32.mrb[0].mxu0
        %v3460 = vpop.f32.mrb[0].mxu0
        %v3461 = vadd.f32 %v1386, %v3460
        %v3462 = vpop.f32.mrb[0].mxu0
        %3463 = vmatprep.mubr.bf16.mxu0 0
        %3464 = vmatmul.mubr.bf16.gmra.mrb[0].mxu0 %v3349
        %v3465 = vpop.f32.mrb[0].mxu0
        %v3466 = vadd.f32 %v1391, %v3465
        %v3467 = vpop.f32.mrb[0].mxu0
        %v3468 = vpop.f32.mrb[0].mxu0
        %v3469 = vadd.f32 %v1394, %v3468
        %v3470 = vpop.f32.mrb[0].mxu0
        %3471 = vmatprep.mubr.bf16.mxu0 0
        %3472 = vmatmul.mubr.bf16.gmra.mrb[0].mxu0 %v3352
        %v3473 = vpop.f32.mrb[0].mxu0
        %v3474 = vadd.f32 %v1399, %v3473
        %v3475 = vpop.f32.mrb[0].mxu0
        %v3476 = vpop.f32.mrb[0].mxu0
        %v3477 = vadd.f32 %v1402, %v3476
        %v3478 = vpop.f32.mrb[0].mxu0
        %3479 = vmatprep.mubr.bf16.mxu0 0
        %3480 = vmatmul.mubr.bf16.gmra.mrb[0].mxu0 %v3355
        %v3481 = vpop.f32.mrb[0].mxu0
        %v3482 = vadd.f32 %v1407, %v3481
        %v3483 = vpop.f32.mrb[0].mxu0
        %v3484 = vpop.f32.mrb[0].mxu0
        %v3485 = vadd.f32 %v1410, %v3484
        %v3486 = vpop.f32.mrb[0].mxu0
        %3487 = vmatprep.mubr.bf16.mxu0 0
        %3488 = vmatmul.mubr.bf16.gmra.mrb[0].mxu0 %v3358
        %v3489 = vpop.f32.mrb[0].mxu0
        %v3490 = vadd.f32 %v1415, %v3489
        %v3491 = vpop.f32.mrb[0].mxu0
        %v3492 = vpop.f32.mrb[0].mxu0
        %v3493 = vadd.f32 %v1418, %v3492
        %v3494 = vpop.f32.mrb[0].mxu0
        %3495 = vmatprep.mubr.bf16.mxu0 0
        %3496 = vmatmul.mubr.bf16.gmra.mrb[0].mxu0 %v3361
        %v3497 = vpop.f32.mrb[0].mxu0
        %v3498 = vadd.f32 %v1423, %v3497
        %v3499 = vpop.f32.mrb[0].mxu0
        %v3500 = vpop.f32.mrb[0].mxu0
        %v3501 = vadd.f32 %v1426, %v3500
        %v3502 = vpop.f32.mrb[0].mxu0
        %3503 = vmatprep.mubr.bf16.mxu0 0
        %3504 = vmatmul.mubr.bf16.gmra.mrb[0].mxu0 %v3364
        %v3505 = vpop.f32.mrb[0].mxu0
        %v3506 = vadd.f32 %v1431, %v3505
        %v3507 = vpop.f32.mrb[0].mxu0
        %v3508 = vpop.f32.mrb[0].mxu0
        %v3509 = vadd.f32 %v1434, %v3508
        %v3510 = vpop.f32.mrb[0].mxu0
        %3511 = vmatprep.mubr.bf16.mxu0 0
        %3512 = vmatmul.mubr.bf16.gmra.mrb[0].mxu0 %v3367
        %v3513 = vpop.f32.mrb[0].mxu0
        %v3514 = vadd.f32 %v1439, %v3513
        %v3515 = vpop.f32.mrb[0].mxu0
        %v3516 = vpop.f32.mrb[0].mxu0
        %v3517 = vadd.f32 %v1442, %v3516
        %v3518 = vpop.f32.mrb[0].mxu0
        %3519 = vmatprep.mubr.bf16.mxu0 0
        %3520 = vmatmul.mubr.bf16.gmra.mrb[0].mxu0 %v3370
        %v3521 = vpop.f32.mrb[0].mxu0
        %v3522 = vadd.f32 %v1447, %v3521
        %v3523 = vpop.f32.mrb[0].mxu0
        %v3524 = vpop.f32.mrb[0].mxu0
        %v3525 = vadd.f32 %v1450, %v3524
        %v3526 = vpop.f32.mrb[0].mxu0
        %3527 = vmatprep.mubr.bf16.mxu0 0
        %3528 = vmatmul.mubr.bf16.gmra.mrb[0].mxu0 %v3373
        %v3529 = vpop.f32.mrb[0].mxu0
        %v3530 = vadd.f32 %v1455, %v3529
        %v3531 = vpop.f32.mrb[0].mxu0
        %v3532 = vpop.f32.mrb[0].mxu0
        %v3533 = vadd.f32 %v1458, %v3532
        %v3534 = vpop.f32.mrb[0].mxu0
        %3535 = vdwg.mxu0
        %v3536 = vmul.f32 %v3152, %v3410
        %v3537 = vmul.f32 %v3154, %v3413
        %v3538 = vmul.f32 %v3156, %v3418
        %v3539 = vmul.f32 %v3158, %v3421
        %v3540 = vmul.f32 %v3160, %v3426
        %v3541 = vmul.f32 %v3162, %v3429
        %v3542 = vmul.f32 %v3164, %v3434
        %v3543 = vmul.f32 %v3166, %v3437
        %v3544 = vmul.f32 %v3168, %v3442
        %v3545 = vmul.f32 %v3170, %v3445
        %v3546 = vmul.f32 %v3172, %v3450
        %v3547 = vmul.f32 %v3174, %v3453
        %v3548 = vmul.f32 %v3176, %v3458
        %v3549 = vmul.f32 %v3178, %v3461
        %v3550 = vmul.f32 %v3180, %v3466
        %v3551 = vmul.f32 %v3182, %v3469
        %v3552 = vmul.f32 %v3184, %v3474
        %v3553 = vmul.f32 %v3186, %v3477
        %v3554 = vmul.f32 %v3188, %v3482
        %v3555 = vmul.f32 %v3190, %v3485
        %v3556 = vmul.f32 %v3192, %v3490
        %v3557 = vmul.f32 %v3194, %v3493
        %v3558 = vmul.f32 %v3196, %v3498
        %v3559 = vmul.f32 %v3198, %v3501
        %v3560 = vmul.f32 %v3200, %v3506
        %v3561 = vmul.f32 %v3202, %v3509
        %v3562 = vmul.f32 %v3204, %v3514
        %v3563 = vmul.f32 %v3206, %v3517
        %v3564 = vmul.f32 %v3208, %v3522
        %v3565 = vmul.f32 %v3210, %v3525
        %v3566 = vmul.f32 %v3212, %v3530
        %v3567 = vmul.f32 %v3214, %v3533
        %v3568 = vadd.f32 %v2830, %v3536
        %v3569 = vadd.f32 %v2831, %v3537
        %v3570 = vadd.f32 %v2832, %v3538
        %v3571 = vadd.f32 %v2833, %v3539
        %v3572 = vadd.f32 %v2834, %v3540
        %v3573 = vadd.f32 %v2835, %v3541
        %v3574 = vadd.f32 %v2836, %v3542
        %v3575 = vadd.f32 %v2837, %v3543
        %v3576 = vadd.f32 %v2838, %v3544
        %v3577 = vadd.f32 %v2839, %v3545
        %v3578 = vadd.f32 %v2840, %v3546
        %v3579 = vadd.f32 %v2841, %v3547
        %v3580 = vadd.f32 %v2842, %v3548
        %v3581 = vadd.f32 %v2843, %v3549
        %v3582 = vadd.f32 %v2844, %v3550
        %v3583 = vadd.f32 %v2845, %v3551
        %v3584 = vadd.f32 %v2846, %v3552
        %v3585 = vadd.f32 %v2847, %v3553
        %v3586 = vadd.f32 %v2848, %v3554
        %v3587 = vadd.f32 %v2849, %v3555
        %v3588 = vadd.f32 %v2850, %v3556
        %v3589 = vadd.f32 %v2851, %v3557
        %v3590 = vadd.f32 %v2852, %v3558
        %v3591 = vadd.f32 %v2853, %v3559
        %v3592 = vadd.f32 %v2854, %v3560
        %v3593 = vadd.f32 %v2855, %v3561
        %v3594 = vadd.f32 %v2856, %v3562
        %v3595 = vadd.f32 %v2857, %v3563
        %v3596 = vadd.f32 %v2858, %v3564
        %v3597 = vadd.f32 %v2859, %v3565
        %v3598 = vadd.f32 %v2860, %v3566
        %v3599 = vadd.f32 %v2861, %v3567
        %v3600 = vadd.f32 %v2862, %v3152
        %v3601 = vadd.f32 %v2863, %v3154
        %v3602 = vadd.f32 %v2864, %v3156
        %v3603 = vadd.f32 %v2865, %v3158
        %v3604 = vadd.f32 %v2866, %v3160
        %v3605 = vadd.f32 %v2867, %v3162
        %v3606 = vadd.f32 %v2868, %v3164
        %v3607 = vadd.f32 %v2869, %v3166
        %v3608 = vadd.f32 %v2870, %v3168
        %v3609 = vadd.f32 %v2871, %v3170
        %v3610 = vadd.f32 %v2872, %v3172
        %v3611 = vadd.f32 %v2873, %v3174
        %v3612 = vadd.f32 %v2874, %v3176
        %v3613 = vadd.f32 %v2875, %v3178
        %v3614 = vadd.f32 %v2876, %v3180
        %v3615 = vadd.f32 %v2877, %v3182
        %v3616 = vadd.f32 %v2878, %v3184
        %v3617 = vadd.f32 %v2879, %v3186
        %v3618 = vadd.f32 %v2880, %v3188
        %v3619 = vadd.f32 %v2881, %v3190
        %v3620 = vadd.f32 %v2882, %v3192
        %v3621 = vadd.f32 %v2883, %v3194
        %v3622 = vadd.f32 %v2884, %v3196
        %v3623 = vadd.f32 %v2885, %v3198
        %v3624 = vadd.f32 %v2886, %v3200
        %v3625 = vadd.f32 %v2887, %v3202
        %v3626 = vadd.f32 %v2888, %v3204
        %v3627 = vadd.f32 %v2889, %v3206
        %v3628 = vadd.f32 %v2890, %v3208
        %v3629 = vadd.f32 %v2891, %v3210
        %v3630 = vadd.f32 %v2892, %v3212
        %v3631 = vadd.f32 %v2893, %v3214
        %s3632 = scalar_lea.vmem %s832, 384 [#allocation3]
        %v3633 = vld [vmem:[%s3632] sm:$0xf]
        %v3634 = vld [vmem:[%s3632 + $0x4] sm:$0xf]
        %v3635 = vld [vmem:[%s3632 + $0x8] sm:$0xf]
        %v3636 = vld [vmem:[%s3632 + $0xc] sm:$0xf]
        %v3637 = vld [vmem:[%s3632 + $0x10] sm:$0xf]
        %v3638 = vld [vmem:[%s3632 + $0x14] sm:$0xf]
        %v3639 = vld [vmem:[%s3632 + $0x18] sm:$0xf]
        %v3640 = vld [vmem:[%s3632 + $0x1c] sm:$0xf]
        %v3641 = vld [vmem:[%s3632 + $0x20] sm:$0xf]
        %v3642 = vld [vmem:[%s3632 + $0x24] sm:$0xf]
        %v3643 = vld [vmem:[%s3632 + $0x28] sm:$0xf]
        %v3644 = vld [vmem:[%s3632 + $0x2c] sm:$0xf]
        %v3645 = vld [vmem:[%s3632 + $0x30] sm:$0xf]
        %v3646 = vld [vmem:[%s3632 + $0x34] sm:$0xf]
        %v3647 = vld [vmem:[%s3632 + $0x38] sm:$0xf]
        %v3648 = vld [vmem:[%s3632 + $0x3c] sm:$0xf]
        %v3649 = vld [vmem:[%s3632 + $0x40] sm:$0xf]
        %v3650 = vld [vmem:[%s3632 + $0x44] sm:$0xf]
        %v3651 = vld [vmem:[%s3632 + $0x48] sm:$0xf]
        %v3652 = vld [vmem:[%s3632 + $0x4c] sm:$0xf]
        %v3653 = vld [vmem:[%s3632 + $0x50] sm:$0xf]
        %v3654 = vld [vmem:[%s3632 + $0x54] sm:$0xf]
        %v3655 = vld [vmem:[%s3632 + $0x58] sm:$0xf]
        %v3656 = vld [vmem:[%s3632 + $0x5c] sm:$0xf]
        %v3657 = vld [vmem:[%s3632 + $0x60] sm:$0xf]
        %v3658 = vld [vmem:[%s3632 + $0x64] sm:$0xf]
        %v3659 = vld [vmem:[%s3632 + $0x68] sm:$0xf]
        %v3660 = vld [vmem:[%s3632 + $0x6c] sm:$0xf]
        %v3661 = vld [vmem:[%s3632 + $0x70] sm:$0xf]
        %v3662 = vld [vmem:[%s3632 + $0x74] sm:$0xf]
        %v3663 = vld [vmem:[%s3632 + $0x78] sm:$0xf]
        %v3664 = vld [vmem:[%s3632 + $0x7c] sm:$0xf]
        %v3665 = vunpack.c.l.bf16 %v3633
        %v3666 = vunpack.c.l.bf16 %v3634
        %v3667 = vunpack.c.l.bf16 %v3635
        %v3668 = vunpack.c.l.bf16 %v3636
        %v3669 = vunpack.c.l.bf16 %v3637
        %v3670 = vunpack.c.l.bf16 %v3638
        %v3671 = vunpack.c.l.bf16 %v3639
        %v3672 = vunpack.c.l.bf16 %v3640
        %v3673 = vunpack.c.l.bf16 %v3641
        %v3674 = vunpack.c.l.bf16 %v3642
        %v3675 = vunpack.c.l.bf16 %v3643
        %v3676 = vunpack.c.l.bf16 %v3644
        %v3677 = vunpack.c.l.bf16 %v3645
        %v3678 = vunpack.c.l.bf16 %v3646
        %v3679 = vunpack.c.l.bf16 %v3647
        %v3680 = vunpack.c.l.bf16 %v3648
        %v3681 = vunpack.c.l.bf16 %v3649
        %v3682 = vunpack.c.l.bf16 %v3650
        %v3683 = vunpack.c.l.bf16 %v3651
        %v3684 = vunpack.c.l.bf16 %v3652
        %v3685 = vunpack.c.l.bf16 %v3653
        %v3686 = vunpack.c.l.bf16 %v3654
        %v3687 = vunpack.c.l.bf16 %v3655
        %v3688 = vunpack.c.l.bf16 %v3656
        %v3689 = vunpack.c.l.bf16 %v3657
        %v3690 = vunpack.c.l.bf16 %v3658
        %v3691 = vunpack.c.l.bf16 %v3659
        %v3692 = vunpack.c.l.bf16 %v3660
        %v3693 = vunpack.c.l.bf16 %v3661
        %v3694 = vunpack.c.l.bf16 %v3662
        %v3695 = vunpack.c.l.bf16 %v3663
        %v3696 = vunpack.c.l.bf16 %v3664
        %v3697 = vmul.f32 %v3665, %v1529
        %v3698 = vmul.f32 %v3666, %v1529
        %v3699 = vmul.f32 %v3667, %v1529
        %v3700 = vmul.f32 %v3668, %v1529
        %v3701 = vmul.f32 %v3669, %v1529
        %v3702 = vmul.f32 %v3670, %v1529
        %v3703 = vmul.f32 %v3671, %v1529
        %v3704 = vmul.f32 %v3672, %v1529
        %v3705 = vmul.f32 %v3673, %v1529
        %v3706 = vmul.f32 %v3674, %v1529
        %v3707 = vmul.f32 %v3675, %v1529
        %v3708 = vmul.f32 %v3676, %v1529
        %v3709 = vmul.f32 %v3677, %v1529
        %v3710 = vmul.f32 %v3678, %v1529
        %v3711 = vmul.f32 %v3679, %v1529
        %v3712 = vmul.f32 %v3680, %v1529
        %v3713 = vmul.f32 %v3681, %v1529
        %v3714 = vmul.f32 %v3682, %v1529
        %v3715 = vmul.f32 %v3683, %v1529
        %v3716 = vmul.f32 %v3684, %v1529
        %v3717 = vmul.f32 %v3685, %v1529
        %v3718 = vmul.f32 %v3686, %v1529
        %v3719 = vmul.f32 %v3687, %v1529
        %v3720 = vmul.f32 %v3688, %v1529
        %v3721 = vmul.f32 %v3689, %v1529
        %v3722 = vmul.f32 %v3690, %v1529
        %v3723 = vmul.f32 %v3691, %v1529
        %v3724 = vmul.f32 %v3692, %v1529
        %v3725 = vmul.f32 %v3693, %v1529
        %v3726 = vmul.f32 %v3694, %v1529
        %v3727 = vmul.f32 %v3695, %v1529
        %v3728 = vmul.f32 %v3696, %v1529
        %v3729 = vsel %vm987, %v3697, 0.0
        %3730 = vadd.xlane.f32.xlu0 %v3729
        %v3731 = vpop.xlane.xlu0 %3730
        %v3732 = vsel %vm987, %v3698, 0.0
        %3733 = vadd.xlane.f32.xlu0 %v3732
        %v3734 = vpop.xlane.xlu0 %3733
        %v3735 = vsel %vm987, %v3699, 0.0
        %3736 = vadd.xlane.f32.xlu0 %v3735
        %v3737 = vpop.xlane.xlu0 %3736
        %v3738 = vsel %vm987, %v3700, 0.0
        %3739 = vadd.xlane.f32.xlu0 %v3738
        %v3740 = vpop.xlane.xlu0 %3739
        %v3741 = vsel %vm987, %v3701, 0.0
        %3742 = vadd.xlane.f32.xlu0 %v3741
        %v3743 = vpop.xlane.xlu0 %3742
        %v3744 = vsel %vm987, %v3702, 0.0
        %3745 = vadd.xlane.f32.xlu0 %v3744
        %v3746 = vpop.xlane.xlu0 %3745
        %v3747 = vsel %vm987, %v3703, 0.0
        %3748 = vadd.xlane.f32.xlu0 %v3747
        %v3749 = vpop.xlane.xlu0 %3748
        %v3750 = vsel %vm987, %v3704, 0.0
        %3751 = vadd.xlane.f32.xlu0 %v3750
        %v3752 = vpop.xlane.xlu0 %3751
        %v3753 = vsel %vm987, %v3705, 0.0
        %3754 = vadd.xlane.f32.xlu0 %v3753
        %v3755 = vpop.xlane.xlu0 %3754
        %v3756 = vsel %vm987, %v3706, 0.0
        %3757 = vadd.xlane.f32.xlu0 %v3756
        %v3758 = vpop.xlane.xlu0 %3757
        %v3759 = vsel %vm987, %v3707, 0.0
        %3760 = vadd.xlane.f32.xlu0 %v3759
        %v3761 = vpop.xlane.xlu0 %3760
        %v3762 = vsel %vm987, %v3708, 0.0
        %3763 = vadd.xlane.f32.xlu0 %v3762
        %v3764 = vpop.xlane.xlu0 %3763
        %v3765 = vsel %vm987, %v3709, 0.0
        %3766 = vadd.xlane.f32.xlu0 %v3765
        %v3767 = vpop.xlane.xlu0 %3766
        %v3768 = vsel %vm987, %v3710, 0.0
        %3769 = vadd.xlane.f32.xlu0 %v3768
        %v3770 = vpop.xlane.xlu0 %3769
        %v3771 = vsel %vm987, %v3711, 0.0
        %3772 = vadd.xlane.f32.xlu0 %v3771
        %v3773 = vpop.xlane.xlu0 %3772
        %v3774 = vsel %vm987, %v3712, 0.0
        %3775 = vadd.xlane.f32.xlu0 %v3774
        %v3776 = vpop.xlane.xlu0 %3775
        %v3777 = vsel %vm987, %v3713, 0.0
        %3778 = vadd.xlane.f32.xlu0 %v3777
        %v3779 = vpop.xlane.xlu0 %3778
        %v3780 = vsel %vm987, %v3714, 0.0
        %3781 = vadd.xlane.f32.xlu0 %v3780
        %v3782 = vpop.xlane.xlu0 %3781
        %v3783 = vsel %vm987, %v3715, 0.0
        %3784 = vadd.xlane.f32.xlu0 %v3783
        %v3785 = vpop.xlane.xlu0 %3784
        %v3786 = vsel %vm987, %v3716, 0.0
        %3787 = vadd.xlane.f32.xlu0 %v3786
        %v3788 = vpop.xlane.xlu0 %3787
        %v3789 = vsel %vm987, %v3717, 0.0
        %3790 = vadd.xlane.f32.xlu0 %v3789
        %v3791 = vpop.xlane.xlu0 %3790
        %v3792 = vsel %vm987, %v3718, 0.0
        %3793 = vadd.xlane.f32.xlu0 %v3792
        %v3794 = vpop.xlane.xlu0 %3793
        %v3795 = vsel %vm987, %v3719, 0.0
        %3796 = vadd.xlane.f32.xlu0 %v3795
        %v3797 = vpop.xlane.xlu0 %3796
        %v3798 = vsel %vm987, %v3720, 0.0
        %3799 = vadd.xlane.f32.xlu0 %v3798
        %v3800 = vpop.xlane.xlu0 %3799
        %v3801 = vsel %vm987, %v3721, 0.0
        %3802 = vadd.xlane.f32.xlu0 %v3801
        %v3803 = vpop.xlane.xlu0 %3802
        %v3804 = vsel %vm987, %v3722, 0.0
        %3805 = vadd.xlane.f32.xlu0 %v3804
        %v3806 = vpop.xlane.xlu0 %3805
        %v3807 = vsel %vm987, %v3723, 0.0
        %3808 = vadd.xlane.f32.xlu0 %v3807
        %v3809 = vpop.xlane.xlu0 %3808
        %v3810 = vsel %vm987, %v3724, 0.0
        %3811 = vadd.xlane.f32.xlu0 %v3810
        %v3812 = vpop.xlane.xlu0 %3811
        %v3813 = vsel %vm987, %v3725, 0.0
        %3814 = vadd.xlane.f32.xlu0 %v3813
        %v3815 = vpop.xlane.xlu0 %3814
        %v3816 = vsel %vm987, %v3726, 0.0
        %3817 = vadd.xlane.f32.xlu0 %v3816
        %v3818 = vpop.xlane.xlu0 %3817
        %v3819 = vsel %vm987, %v3727, 0.0
        %3820 = vadd.xlane.f32.xlu0 %v3819
        %v3821 = vpop.xlane.xlu0 %3820
        %v3822 = vsel %vm987, %v3728, 0.0
        %3823 = vadd.xlane.f32.xlu0 %v3822
        %v3824 = vpop.xlane.xlu0 %3823
        %v3825 = vadd.f32 %v3731, %v1085
        %v3826 = vadd.f32 %v3734, %v1086
        %v3827 = vadd.f32 %v3737, %v1087
        %v3828 = vadd.f32 %v3740, %v1088
        %v3829 = vadd.f32 %v3743, %v1089
        %v3830 = vadd.f32 %v3746, %v1090
        %v3831 = vadd.f32 %v3749, %v1091
        %v3832 = vadd.f32 %v3752, %v1092
        %v3833 = vadd.f32 %v3755, %v1093
        %v3834 = vadd.f32 %v3758, %v1094
        %v3835 = vadd.f32 %v3761, %v1095
        %v3836 = vadd.f32 %v3764, %v1096
        %v3837 = vadd.f32 %v3767, %v1097
        %v3838 = vadd.f32 %v3770, %v1098
        %v3839 = vadd.f32 %v3773, %v1099
        %v3840 = vadd.f32 %v3776, %v1100
        %v3841 = vadd.f32 %v3779, %v1101
        %v3842 = vadd.f32 %v3782, %v1102
        %v3843 = vadd.f32 %v3785, %v1103
        %v3844 = vadd.f32 %v3788, %v1104
        %v3845 = vadd.f32 %v3791, %v1105
        %v3846 = vadd.f32 %v3794, %v1106
        %v3847 = vadd.f32 %v3797, %v1107
        %v3848 = vadd.f32 %v3800, %v1108
        %v3849 = vadd.f32 %v3803, %v1109
        %v3850 = vadd.f32 %v3806, %v1110
        %v3851 = vadd.f32 %v3809, %v1111
        %v3852 = vadd.f32 %v3812, %v1112
        %v3853 = vadd.f32 %v3815, %v1113
        %v3854 = vadd.f32 %v3818, %v1114
        %v3855 = vadd.f32 %v3821, %v1115
        %v3856 = vadd.f32 %v3824, %v1116
        %v3857 = vtanh.pop %v3825
        %v3858 = vtanh.pop %v3826
        %v3859 = vtanh.pop %v3827
        %v3860 = vtanh.pop %v3828
        %v3861 = vtanh.pop %v3829
        %v3862 = vtanh.pop %v3830
        %v3863 = vtanh.pop %v3831
        %v3864 = vtanh.pop %v3832
        %v3865 = vtanh.pop %v3833
        %v3866 = vtanh.pop %v3834
        %v3867 = vtanh.pop %v3835
        %v3868 = vtanh.pop %v3836
        %v3869 = vtanh.pop %v3837
        %v3870 = vtanh.pop %v3838
        %v3871 = vtanh.pop %v3839
        %v3872 = vtanh.pop %v3840
        %v3873 = vtanh.pop %v3841
        %v3874 = vtanh.pop %v3842
        %v3875 = vtanh.pop %v3843
        %v3876 = vtanh.pop %v3844
        %v3877 = vtanh.pop %v3845
        %v3878 = vtanh.pop %v3846
        %v3879 = vtanh.pop %v3847
        %v3880 = vtanh.pop %v3848
        %v3881 = vtanh.pop %v3849
        %v3882 = vtanh.pop %v3850
        %v3883 = vtanh.pop %v3851
        %v3884 = vtanh.pop %v3852
        %v3885 = vtanh.pop %v3853
        %v3886 = vtanh.pop %v3854
        %v3887 = vtanh.pop %v3855
        %v3888 = vtanh.pop %v3856
        %v3889 = vmul.f32 %v3857, 1.442695
        %v3890 = vpow.pop %v3889
        %v3891 = vmul.f32 %v3858, 1.442695
        %v3892 = vpow.pop %v3891
        %v3893 = vmul.f32 %v3859, 1.442695
        %v3894 = vpow.pop %v3893
        %v3895 = vmul.f32 %v3860, 1.442695
        %v3896 = vpow.pop %v3895
        %v3897 = vmul.f32 %v3861, 1.442695
        %v3898 = vpow.pop %v3897
        %v3899 = vmul.f32 %v3862, 1.442695
        %v3900 = vpow.pop %v3899
        %v3901 = vmul.f32 %v3863, 1.442695
        %v3902 = vpow.pop %v3901
        %v3903 = vmul.f32 %v3864, 1.442695
        %v3904 = vpow.pop %v3903
        %v3905 = vmul.f32 %v3865, 1.442695
        %v3906 = vpow.pop %v3905
        %v3907 = vmul.f32 %v3866, 1.442695
        %v3908 = vpow.pop %v3907
        %v3909 = vmul.f32 %v3867, 1.442695
        %v3910 = vpow.pop %v3909
        %v3911 = vmul.f32 %v3868, 1.442695
        %v3912 = vpow.pop %v3911
        %v3913 = vmul.f32 %v3869, 1.442695
        %v3914 = vpow.pop %v3913
        %v3915 = vmul.f32 %v3870, 1.442695
        %v3916 = vpow.pop %v3915
        %v3917 = vmul.f32 %v3871, 1.442695
        %v3918 = vpow.pop %v3917
        %v3919 = vmul.f32 %v3872, 1.442695
        %v3920 = vpow.pop %v3919
        %v3921 = vmul.f32 %v3873, 1.442695
        %v3922 = vpow.pop %v3921
        %v3923 = vmul.f32 %v3874, 1.442695
        %v3924 = vpow.pop %v3923
        %v3925 = vmul.f32 %v3875, 1.442695
        %v3926 = vpow.pop %v3925
        %v3927 = vmul.f32 %v3876, 1.442695
        %v3928 = vpow.pop %v3927
        %v3929 = vmul.f32 %v3877, 1.442695
        %v3930 = vpow.pop %v3929
        %v3931 = vmul.f32 %v3878, 1.442695
        %v3932 = vpow.pop %v3931
        %v3933 = vmul.f32 %v3879, 1.442695
        %v3934 = vpow.pop %v3933
        %v3935 = vmul.f32 %v3880, 1.442695
        %v3936 = vpow.pop %v3935
        %v3937 = vmul.f32 %v3881, 1.442695
        %v3938 = vpow.pop %v3937
        %v3939 = vmul.f32 %v3882, 1.442695
        %v3940 = vpow.pop %v3939
        %v3941 = vmul.f32 %v3883, 1.442695
        %v3942 = vpow.pop %v3941
        %v3943 = vmul.f32 %v3884, 1.442695
        %v3944 = vpow.pop %v3943
        %v3945 = vmul.f32 %v3885, 1.442695
        %v3946 = vpow.pop %v3945
        %v3947 = vmul.f32 %v3886, 1.442695
        %v3948 = vpow.pop %v3947
        %v3949 = vmul.f32 %v3887, 1.442695
        %v3950 = vpow.pop %v3949
        %v3951 = vmul.f32 %v3888, 1.442695
        %v3952 = vpow.pop %v3951
        %v3953 = vmax.bf16 %v3633, 0
        %v3954 = vmax.bf16 %v3634, 0
        %v3955 = vmax.bf16 %v3635, 0
        %v3956 = vmax.bf16 %v3636, 0
        %v3957 = vmax.bf16 %v3637, 0
        %v3958 = vmax.bf16 %v3638, 0
        %v3959 = vmax.bf16 %v3639, 0
        %v3960 = vmax.bf16 %v3640, 0
        %v3961 = vmax.bf16 %v3641, 0
        %v3962 = vmax.bf16 %v3642, 0
        %v3963 = vmax.bf16 %v3643, 0
        %v3964 = vmax.bf16 %v3644, 0
        %v3965 = vmax.bf16 %v3645, 0
        %v3966 = vmax.bf16 %v3646, 0
        %v3967 = vmax.bf16 %v3647, 0
        %v3968 = vmax.bf16 %v3648, 0
        %v3969 = vmax.bf16 %v3649, 0
        %v3970 = vmax.bf16 %v3650, 0
        %v3971 = vmax.bf16 %v3651, 0
        %v3972 = vmax.bf16 %v3652, 0
        %v3973 = vmax.bf16 %v3653, 0
        %v3974 = vmax.bf16 %v3654, 0
        %v3975 = vmax.bf16 %v3655, 0
        %v3976 = vmax.bf16 %v3656, 0
        %v3977 = vmax.bf16 %v3657, 0
        %v3978 = vmax.bf16 %v3658, 0
        %v3979 = vmax.bf16 %v3659, 0
        %v3980 = vmax.bf16 %v3660, 0
        %v3981 = vmax.bf16 %v3661, 0
        %v3982 = vmax.bf16 %v3662, 0
        %v3983 = vmax.bf16 %v3663, 0
        %v3984 = vmax.bf16 %v3664, 0
        %v4017 = vunpack.c.l.b16 %v3953
        %v4018 = vunpack.c.l.b16 %v3954
        %v4019 = vunpack.c.l.b16 %v3955
        %v4020 = vunpack.c.l.b16 %v3956
        %v4021 = vunpack.c.l.b16 %v3957
        %v4022 = vunpack.c.l.b16 %v3958
        %v4023 = vunpack.c.l.b16 %v3959
        %v4024 = vunpack.c.l.b16 %v3960
        %v4025 = vunpack.c.l.b16 %v3961
        %v4026 = vunpack.c.l.b16 %v3962
        %v4027 = vunpack.c.l.b16 %v3963
        %v4028 = vunpack.c.l.b16 %v3964
        %v4029 = vunpack.c.l.b16 %v3965
        %v4030 = vunpack.c.l.b16 %v3966
        %v4031 = vunpack.c.l.b16 %v3967
        %v4032 = vunpack.c.l.b16 %v3968
        %v4033 = vunpack.c.l.b16 %v3969
        %v4034 = vunpack.c.l.b16 %v3970
        %v4035 = vunpack.c.l.b16 %v3971
        %v4036 = vunpack.c.l.b16 %v3972
        %v4037 = vunpack.c.l.b16 %v3973
        %v4038 = vunpack.c.l.b16 %v3974
        %v4039 = vunpack.c.l.b16 %v3975
        %v4040 = vunpack.c.l.b16 %v3976
        %v4041 = vunpack.c.l.b16 %v3977
        %v4042 = vunpack.c.l.b16 %v3978
        %v4043 = vunpack.c.l.b16 %v3979
        %v4044 = vunpack.c.l.b16 %v3980
        %v4045 = vunpack.c.l.b16 %v3981
        %v4046 = vunpack.c.l.b16 %v3982
        %v4047 = vunpack.c.l.b16 %v3983
        %v4048 = vunpack.c.l.b16 %v3984
        %v4049 = vpack.c.b16 %v4018, %v4017
        %v4050 = vpack.c.b16 %v4020, %v4019
        %v4051 = vpack.c.b16 %v4022, %v4021
        %v4052 = vpack.c.b16 %v4024, %v4023
        %v4053 = vpack.c.b16 %v4026, %v4025
        %v4054 = vpack.c.b16 %v4028, %v4027
        %v4055 = vpack.c.b16 %v4030, %v4029
        %v4056 = vpack.c.b16 %v4032, %v4031
        %v4057 = vpack.c.b16 %v4034, %v4033
        %v4058 = vpack.c.b16 %v4036, %v4035
        %v4059 = vpack.c.b16 %v4038, %v4037
        %v4060 = vpack.c.b16 %v4040, %v4039
        %v4061 = vpack.c.b16 %v4042, %v4041
        %v4062 = vpack.c.b16 %v4044, %v4043
        %v4063 = vpack.c.b16 %v4046, %v4045
        %v4064 = vpack.c.b16 %v4048, %v4047
        %v4066 = vsel %vm987, %v4049, 0
        %v4069 = vsel %vm987, %v4050, 0
        %v4072 = vsel %vm987, %v4051, 0
        %v4075 = vsel %vm987, %v4052, 0
        %v4078 = vsel %vm987, %v4053, 0
        %v4081 = vsel %vm987, %v4054, 0
        %v4084 = vsel %vm987, %v4055, 0
        %v4087 = vsel %vm987, %v4056, 0
        %v4090 = vsel %vm987, %v4057, 0
        %v4093 = vsel %vm987, %v4058, 0
        %v4096 = vsel %vm987, %v4059, 0
        %v4099 = vsel %vm987, %v4060, 0
        %v4102 = vsel %vm987, %v4061, 0
        %v4105 = vsel %vm987, %v4062, 0
        %v4108 = vsel %vm987, %v4063, 0
        %v4111 = vsel %vm987, %v4064, 0
        %4113 = vmatprep.subr.bf16.mxu0 0
        %4114 = vmatpush1.bf16.msra.mxu0 %v1911
        %4115 = vmatprep.subr.bf16.mxu0 0
        %4116 = vmatpush1.bf16.msra.mxu0 %v1912
        %4117 = vmatprep.subr.bf16.mxu0 0
        %4118 = vmatpush1.bf16.msra.mxu0 0
        %4119 = vmatprep.subr.bf16.mxu0 0
        %4120 = vmatpush1.bf16.msra.mxu0 0
        %4121 = vmatprep.subr.bf16.mxu0 0
        %4122 = vmatpush1.bf16.msra.mxu0 0
        %4123 = vmatprep.subr.bf16.mxu0 0
        %4124 = vmatpush1.bf16.msra.mxu0 0
        %4125 = vmatprep.subr.bf16.mxu0 0
        %4126 = vmatpush1.bf16.msra.mxu0 0
        %4127 = vmatprep.subr.bf16.mxu0 0
        %4128 = vmatpush1.bf16.msra.mxu0 0
        %4129 = vmatprep.subr.bf16.mxu0 0
        %4130 = vmatpush1.bf16.msra.mxu0 0
        %4131 = vmatprep.subr.bf16.mxu0 0
        %4132 = vmatpush1.bf16.msra.mxu0 0
        %4133 = vmatprep.subr.bf16.mxu0 0
        %4134 = vmatpush1.bf16.msra.mxu0 0
        %4135 = vmatprep.subr.bf16.mxu0 0
        %4136 = vmatpush1.bf16.msra.mxu0 0
        %4137 = vmatprep.subr.bf16.mxu0 0
        %4138 = vmatpush1.bf16.msra.mxu0 0
        %4139 = vmatprep.subr.bf16.mxu0 0
        %4140 = vmatpush1.bf16.msra.mxu0 0
        %4141 = vmatprep.subr.bf16.mxu0 0
        %4142 = vmatpush1.bf16.msra.mxu0 0
        %4143 = vmatprep.subr.bf16.mxu0 0
        %4144 = vmatpush1.bf16.msra.mxu0 0
        %4145 = vmatprep.mubr.bf16.mxu0 0
        %4146 = vmatmul.mubr.bf16.gmra.mrb[0].mxu0 %v4066
        %v4147 = vpop.f32.mrb[0].mxu0
        %v4148 = vadd.f32 %v1335, %v4147
        %v4149 = vpop.f32.mrb[0].mxu0
        %v4150 = vpop.f32.mrb[0].mxu0
        %v4151 = vadd.f32 %v1338, %v4150
        %v4152 = vpop.f32.mrb[0].mxu0
        %4153 = vmatprep.mubr.bf16.mxu0 0
        %4154 = vmatmul.mubr.bf16.gmra.mrb[0].mxu0 %v4069
        %v4155 = vpop.f32.mrb[0].mxu0
        %v4156 = vadd.f32 %v1343, %v4155
        %v4157 = vpop.f32.mrb[0].mxu0
        %v4158 = vpop.f32.mrb[0].mxu0
        %v4159 = vadd.f32 %v1346, %v4158
        %v4160 = vpop.f32.mrb[0].mxu0
        %4161 = vmatprep.mubr.bf16.mxu0 0
        %4162 = vmatmul.mubr.bf16.gmra.mrb[0].mxu0 %v4072
        %v4163 = vpop.f32.mrb[0].mxu0
        %v4164 = vadd.f32 %v1351, %v4163
        %v4165 = vpop.f32.mrb[0].mxu0
        %v4166 = vpop.f32.mrb[0].mxu0
        %v4167 = vadd.f32 %v1354, %v4166
        %v4168 = vpop.f32.mrb[0].mxu0
        %4169 = vmatprep.mubr.bf16.mxu0 0
        %4170 = vmatmul.mubr.bf16.gmra.mrb[0].mxu0 %v4075
        %v4171 = vpop.f32.mrb[0].mxu0
        %v4172 = vadd.f32 %v1359, %v4171
        %v4173 = vpop.f32.mrb[0].mxu0
        %v4174 = vpop.f32.mrb[0].mxu0
        %v4175 = vadd.f32 %v1362, %v4174
        %v4176 = vpop.f32.mrb[0].mxu0
        %4177 = vmatprep.mubr.bf16.mxu0 0
        %4178 = vmatmul.mubr.bf16.gmra.mrb[0].mxu0 %v4078
        %v4179 = vpop.f32.mrb[0].mxu0
        %v4180 = vadd.f32 %v1367, %v4179
        %v4181 = vpop.f32.mrb[0].mxu0
        %v4182 = vpop.f32.mrb[0].mxu0
        %v4183 = vadd.f32 %v1370, %v4182
        %v4184 = vpop.f32.mrb[0].mxu0
        %4185 = vmatprep.mubr.bf16.mxu0 0
        %4186 = vmatmul.mubr.bf16.gmra.mrb[0].mxu0 %v4081
        %v4187 = vpop.f32.mrb[0].mxu0
        %v4188 = vadd.f32 %v1375, %v4187
        %v4189 = vpop.f32.mrb[0].mxu0
        %v4190 = vpop.f32.mrb[0].mxu0
        %v4191 = vadd.f32 %v1378, %v4190
        %v4192 = vpop.f32.mrb[0].mxu0
        %4193 = vmatprep.mubr.bf16.mxu0 0
        %4194 = vmatmul.mubr.bf16.gmra.mrb[0].mxu0 %v4084
        %v4195 = vpop.f32.mrb[0].mxu0
        %v4196 = vadd.f32 %v1383, %v4195
        %v4197 = vpop.f32.mrb[0].mxu0
        %v4198 = vpop.f32.mrb[0].mxu0
        %v4199 = vadd.f32 %v1386, %v4198
        %v4200 = vpop.f32.mrb[0].mxu0
        %4201 = vmatprep.mubr.bf16.mxu0 0
        %4202 = vmatmul.mubr.bf16.gmra.mrb[0].mxu0 %v4087
        %v4203 = vpop.f32.mrb[0].mxu0
        %v4204 = vadd.f32 %v1391, %v4203
        %v4205 = vpop.f32.mrb[0].mxu0
        %v4206 = vpop.f32.mrb[0].mxu0
        %v4207 = vadd.f32 %v1394, %v4206
        %v4208 = vpop.f32.mrb[0].mxu0
        %4209 = vmatprep.mubr.bf16.mxu0 0
        %4210 = vmatmul.mubr.bf16.gmra.mrb[0].mxu0 %v4090
        %v4211 = vpop.f32.mrb[0].mxu0
        %v4212 = vadd.f32 %v1399, %v4211
        %v4213 = vpop.f32.mrb[0].mxu0
        %v4214 = vpop.f32.mrb[0].mxu0
        %v4215 = vadd.f32 %v1402, %v4214
        %v4216 = vpop.f32.mrb[0].mxu0
        %4217 = vmatprep.mubr.bf16.mxu0 0
        %4218 = vmatmul.mubr.bf16.gmra.mrb[0].mxu0 %v4093
        %v4219 = vpop.f32.mrb[0].mxu0
        %v4220 = vadd.f32 %v1407, %v4219
        %v4221 = vpop.f32.mrb[0].mxu0
        %v4222 = vpop.f32.mrb[0].mxu0
        %v4223 = vadd.f32 %v1410, %v4222
        %v4224 = vpop.f32.mrb[0].mxu0
        %4225 = vmatprep.mubr.bf16.mxu0 0
        %4226 = vmatmul.mubr.bf16.gmra.mrb[0].mxu0 %v4096
        %v4227 = vpop.f32.mrb[0].mxu0
        %v4228 = vadd.f32 %v1415, %v4227
        %v4229 = vpop.f32.mrb[0].mxu0
        %v4230 = vpop.f32.mrb[0].mxu0
        %v4231 = vadd.f32 %v1418, %v4230
        %v4232 = vpop.f32.mrb[0].mxu0
        %4233 = vmatprep.mubr.bf16.mxu0 0
        %4234 = vmatmul.mubr.bf16.gmra.mrb[0].mxu0 %v4099
        %v4235 = vpop.f32.mrb[0].mxu0
        %v4236 = vadd.f32 %v1423, %v4235
        %v4237 = vpop.f32.mrb[0].mxu0
        %v4238 = vpop.f32.mrb[0].mxu0
        %v4239 = vadd.f32 %v1426, %v4238
        %v4240 = vpop.f32.mrb[0].mxu0
        %4241 = vmatprep.mubr.bf16.mxu0 0
        %4242 = vmatmul.mubr.bf16.gmra.mrb[0].mxu0 %v4102
        %v4243 = vpop.f32.mrb[0].mxu0
        %v4244 = vadd.f32 %v1431, %v4243
        %v4245 = vpop.f32.mrb[0].mxu0
        %v4246 = vpop.f32.mrb[0].mxu0
        %v4247 = vadd.f32 %v1434, %v4246
        %v4248 = vpop.f32.mrb[0].mxu0
        %4249 = vmatprep.mubr.bf16.mxu0 0
        %4250 = vmatmul.mubr.bf16.gmra.mrb[0].mxu0 %v4105
        %v4251 = vpop.f32.mrb[0].mxu0
        %v4252 = vadd.f32 %v1439, %v4251
        %v4253 = vpop.f32.mrb[0].mxu0
        %v4254 = vpop.f32.mrb[0].mxu0
        %v4255 = vadd.f32 %v1442, %v4254
        %v4256 = vpop.f32.mrb[0].mxu0
        %4257 = vmatprep.mubr.bf16.mxu0 0
        %4258 = vmatmul.mubr.bf16.gmra.mrb[0].mxu0 %v4108
        %v4259 = vpop.f32.mrb[0].mxu0
        %v4260 = vadd.f32 %v1447, %v4259
        %v4261 = vpop.f32.mrb[0].mxu0
        %v4262 = vpop.f32.mrb[0].mxu0
        %v4263 = vadd.f32 %v1450, %v4262
        %v4264 = vpop.f32.mrb[0].mxu0
        %4265 = vmatprep.mubr.bf16.mxu0 0
        %4266 = vmatmul.mubr.bf16.gmra.mrb[0].mxu0 %v4111
        %v4267 = vpop.f32.mrb[0].mxu0
        %v4268 = vadd.f32 %v1455, %v4267
        %v4269 = vpop.f32.mrb[0].mxu0
        %v4270 = vpop.f32.mrb[0].mxu0
        %v4271 = vadd.f32 %v1458, %v4270
        %v4272 = vpop.f32.mrb[0].mxu0
        %4273 = vdwg.mxu0
        %v4274 = vmul.f32 %v3890, %v4148
        %v4275 = vmul.f32 %v3892, %v4151
        %v4276 = vmul.f32 %v3894, %v4156
        %v4277 = vmul.f32 %v3896, %v4159
        %v4278 = vmul.f32 %v3898, %v4164
        %v4279 = vmul.f32 %v3900, %v4167
        %v4280 = vmul.f32 %v3902, %v4172
        %v4281 = vmul.f32 %v3904, %v4175
        %v4282 = vmul.f32 %v3906, %v4180
        %v4283 = vmul.f32 %v3908, %v4183
        %v4284 = vmul.f32 %v3910, %v4188
        %v4285 = vmul.f32 %v3912, %v4191
        %v4286 = vmul.f32 %v3914, %v4196
        %v4287 = vmul.f32 %v3916, %v4199
        %v4288 = vmul.f32 %v3918, %v4204
        %v4289 = vmul.f32 %v3920, %v4207
        %v4290 = vmul.f32 %v3922, %v4212
        %v4291 = vmul.f32 %v3924, %v4215
        %v4292 = vmul.f32 %v3926, %v4220
        %v4293 = vmul.f32 %v3928, %v4223
        %v4294 = vmul.f32 %v3930, %v4228
        %v4295 = vmul.f32 %v3932, %v4231
        %v4296 = vmul.f32 %v3934, %v4236
        %v4297 = vmul.f32 %v3936, %v4239
        %v4298 = vmul.f32 %v3938, %v4244
        %v4299 = vmul.f32 %v3940, %v4247
        %v4300 = vmul.f32 %v3942, %v4252
        %v4301 = vmul.f32 %v3944, %v4255
        %v4302 = vmul.f32 %v3946, %v4260
        %v4303 = vmul.f32 %v3948, %v4263
        %v4304 = vmul.f32 %v3950, %v4268
        %v4305 = vmul.f32 %v3952, %v4271
        %v4306 = vadd.f32 %v3568, %v4274
        %v4307 = vadd.f32 %v3569, %v4275
        %v4308 = vadd.f32 %v3570, %v4276
        %v4309 = vadd.f32 %v3571, %v4277
        %v4310 = vadd.f32 %v3572, %v4278
        %v4311 = vadd.f32 %v3573, %v4279
        %v4312 = vadd.f32 %v3574, %v4280
        %v4313 = vadd.f32 %v3575, %v4281
        %v4314 = vadd.f32 %v3576, %v4282
        %v4315 = vadd.f32 %v3577, %v4283
        %v4316 = vadd.f32 %v3578, %v4284
        %v4317 = vadd.f32 %v3579, %v4285
        %v4318 = vadd.f32 %v3580, %v4286
        %v4319 = vadd.f32 %v3581, %v4287
        %v4320 = vadd.f32 %v3582, %v4288
        %v4321 = vadd.f32 %v3583, %v4289
        %v4322 = vadd.f32 %v3584, %v4290
        %v4323 = vadd.f32 %v3585, %v4291
        %v4324 = vadd.f32 %v3586, %v4292
        %v4325 = vadd.f32 %v3587, %v4293
        %v4326 = vadd.f32 %v3588, %v4294
        %v4327 = vadd.f32 %v3589, %v4295
        %v4328 = vadd.f32 %v3590, %v4296
        %v4329 = vadd.f32 %v3591, %v4297
        %v4330 = vadd.f32 %v3592, %v4298
        %v4331 = vadd.f32 %v3593, %v4299
        %v4332 = vadd.f32 %v3594, %v4300
        %v4333 = vadd.f32 %v3595, %v4301
        %v4334 = vadd.f32 %v3596, %v4302
        %v4335 = vadd.f32 %v3597, %v4303
        %v4336 = vadd.f32 %v3598, %v4304
        %v4337 = vadd.f32 %v3599, %v4305
        %v4338 = vadd.f32 %v3600, %v3890
        %v4339 = vadd.f32 %v3601, %v3892
        %v4340 = vadd.f32 %v3602, %v3894
        %v4341 = vadd.f32 %v3603, %v3896
        %v4342 = vadd.f32 %v3604, %v3898
        %v4343 = vadd.f32 %v3605, %v3900
        %v4344 = vadd.f32 %v3606, %v3902
        %v4345 = vadd.f32 %v3607, %v3904
        %v4346 = vadd.f32 %v3608, %v3906
        %v4347 = vadd.f32 %v3609, %v3908
        %v4348 = vadd.f32 %v3610, %v3910
        %v4349 = vadd.f32 %v3611, %v3912
        %v4350 = vadd.f32 %v3612, %v3914
        %v4351 = vadd.f32 %v3613, %v3916
        %v4352 = vadd.f32 %v3614, %v3918
        %v4353 = vadd.f32 %v3615, %v3920
        %v4354 = vadd.f32 %v3616, %v3922
        %v4355 = vadd.f32 %v3617, %v3924
        %v4356 = vadd.f32 %v3618, %v3926
        %v4357 = vadd.f32 %v3619, %v3928
        %v4358 = vadd.f32 %v3620, %v3930
        %v4359 = vadd.f32 %v3621, %v3932
        %v4360 = vadd.f32 %v3622, %v3934
        %v4361 = vadd.f32 %v3623, %v3936
        %v4362 = vadd.f32 %v3624, %v3938
        %v4363 = vadd.f32 %v3625, %v3940
        %v4364 = vadd.f32 %v3626, %v3942
        %v4365 = vadd.f32 %v3627, %v3944
        %v4366 = vadd.f32 %v3628, %v3946
        %v4367 = vadd.f32 %v3629, %v3948
        %v4368 = vadd.f32 %v3630, %v3950
        %v4369 = vadd.f32 %v3631, %v3952
        %v4370 = vrcp.pop %v4338
        %v4371 = vrcp.pop %v4339
        %v4372 = vrcp.pop %v4340
        %v4373 = vrcp.pop %v4341
        %v4374 = vrcp.pop %v4342
        %v4375 = vrcp.pop %v4343
        %v4376 = vrcp.pop %v4344
        %v4377 = vrcp.pop %v4345
        %v4378 = vrcp.pop %v4346
        %v4379 = vrcp.pop %v4347
        %v4380 = vrcp.pop %v4348
        %v4381 = vrcp.pop %v4349
        %v4382 = vrcp.pop %v4350
        %v4383 = vrcp.pop %v4351
        %v4384 = vrcp.pop %v4352
        %v4385 = vrcp.pop %v4353
        %v4386 = vrcp.pop %v4354
        %v4387 = vrcp.pop %v4355
        %v4388 = vrcp.pop %v4356
        %v4389 = vrcp.pop %v4357
        %v4390 = vrcp.pop %v4358
        %v4391 = vrcp.pop %v4359
        %v4392 = vrcp.pop %v4360
        %v4393 = vrcp.pop %v4361
        %v4394 = vrcp.pop %v4362
        %v4395 = vrcp.pop %v4363
        %v4396 = vrcp.pop %v4364
        %v4397 = vrcp.pop %v4365
        %v4398 = vrcp.pop %v4366
        %v4399 = vrcp.pop %v4367
        %v4400 = vrcp.pop %v4368
        %v4401 = vrcp.pop %v4369
        %v4402 = vmul.f32 %v4306, %v4370
        %v4403 = vmul.f32 %v4307, %v4371
        %v4404 = vmul.f32 %v4308, %v4372
        %v4405 = vmul.f32 %v4309, %v4373
        %v4406 = vmul.f32 %v4310, %v4374
        %v4407 = vmul.f32 %v4311, %v4375
        %v4408 = vmul.f32 %v4312, %v4376
        %v4409 = vmul.f32 %v4313, %v4377
        %v4410 = vmul.f32 %v4314, %v4378
        %v4411 = vmul.f32 %v4315, %v4379
        %v4412 = vmul.f32 %v4316, %v4380
        %v4413 = vmul.f32 %v4317, %v4381
        %v4414 = vmul.f32 %v4318, %v4382
        %v4415 = vmul.f32 %v4319, %v4383
        %v4416 = vmul.f32 %v4320, %v4384
        %v4417 = vmul.f32 %v4321, %v4385
        %v4418 = vmul.f32 %v4322, %v4386
        %v4419 = vmul.f32 %v4323, %v4387
        %v4420 = vmul.f32 %v4324, %v4388
        %v4421 = vmul.f32 %v4325, %v4389
        %v4422 = vmul.f32 %v4326, %v4390
        %v4423 = vmul.f32 %v4327, %v4391
        %v4424 = vmul.f32 %v4328, %v4392
        %v4425 = vmul.f32 %v4329, %v4393
        %v4426 = vmul.f32 %v4330, %v4394
        %v4427 = vmul.f32 %v4331, %v4395
        %v4428 = vmul.f32 %v4332, %v4396
        %v4429 = vmul.f32 %v4333, %v4397
        %v4430 = vmul.f32 %v4334, %v4398
        %v4431 = vmul.f32 %v4335, %v4399
        %v4432 = vmul.f32 %v4336, %v4400
        %v4433 = vmul.f32 %v4337, %v4401
        %4434 = vst [vmem:[%s879] sm:$0xff] %v4402
        %4435 = vst [vmem:[%s879 + $0x8] sm:$0xff] %v4403
        %4436 = vst [vmem:[%s879 + $0x10] sm:$0xff] %v4404
        %4437 = vst [vmem:[%s879 + $0x18] sm:$0xff] %v4405
        %4438 = vst [vmem:[%s879 + $0x20] sm:$0xff] %v4406
        %4439 = vst [vmem:[%s879 + $0x28] sm:$0xff] %v4407
        %4440 = vst [vmem:[%s879 + $0x30] sm:$0xff] %v4408
        %4441 = vst [vmem:[%s879 + $0x38] sm:$0xff] %v4409
        %4442 = vst [vmem:[%s879 + $0x40] sm:$0xff] %v4410
        %4443 = vst [vmem:[%s879 + $0x48] sm:$0xff] %v4411
        %4444 = vst [vmem:[%s879 + $0x50] sm:$0xff] %v4412
        %4445 = vst [vmem:[%s879 + $0x58] sm:$0xff] %v4413
        %4446 = vst [vmem:[%s879 + $0x60] sm:$0xff] %v4414
        %4447 = vst [vmem:[%s879 + $0x68] sm:$0xff] %v4415
        %4448 = vst [vmem:[%s879 + $0x70] sm:$0xff] %v4416
        %4449 = vst [vmem:[%s879 + $0x78] sm:$0xff] %v4417
        %4450 = vst [vmem:[%s879 + $0x80] sm:$0xff] %v4418
        %4451 = vst [vmem:[%s879 + $0x88] sm:$0xff] %v4419
        %4452 = vst [vmem:[%s879 + $0x90] sm:$0xff] %v4420
        %4453 = vst [vmem:[%s879 + $0x98] sm:$0xff] %v4421
        %4454 = vst [vmem:[%s879 + $0xa0] sm:$0xff] %v4422
        %4455 = vst [vmem:[%s879 + $0xa8] sm:$0xff] %v4423
        %4456 = vst [vmem:[%s879 + $0xb0] sm:$0xff] %v4424
        %4457 = vst [vmem:[%s879 + $0xb8] sm:$0xff] %v4425
        %4458 = vst [vmem:[%s879 + $0xc0] sm:$0xff] %v4426
        %4459 = vst [vmem:[%s879 + $0xc8] sm:$0xff] %v4427
        %4460 = vst [vmem:[%s879 + $0xd0] sm:$0xff] %v4428
        %4461 = vst [vmem:[%s879 + $0xd8] sm:$0xff] %v4429
        %4462 = vst [vmem:[%s879 + $0xe0] sm:$0xff] %v4430
        %4463 = vst [vmem:[%s879 + $0xe8] sm:$0xff] %v4431
        %4464 = vst [vmem:[%s879 + $0xf0] sm:$0xff] %v4432
        %4465 = vst [vmem:[%s879 + $0xf8] sm:$0xff] %v4433
        %s4466 = smul.u32 32, %s20
        %p4467 = scmp.lt.s32.totalorder %s4466, 63
        %s4468 = scalar_select %p4467, %s4466, 63
        %s4469 = smul.addr %s4468, 8
        %s4470 = scalar_lea.vmem %s8, %s4469
        // Predicated region
        $region94: #{synthesizer_forward.1} parent=88 // pred_check
          %p4471 = pneg %p216
        $region95: #{synthesizer_forward.1} parent=88 // pred_check_branch
          %4473 = sbr.rel (%p4471) target = $region97
        $region96: #{synthesizer_forward.1} parent=88 // pred_region
          %s4474 = smul.u32 32, %s20
        $region97: #{synthesizer_forward.1} parent=88 // pred_fallthru
          _
      $region89: #{synthesizer_forward.1} parent=5 // pred_fallthru
        _
      %p4475 = scmp.le.s32.totalorder 2, %s15
      // Predicated region
      $region98: #{synthesizer_forward.1} parent=5 // pred_check
        %p4476 = pneg %p4475
      $region99: #{synthesizer_forward.1} parent=5 // pred_check_branch
        %4478 = sbr.rel (%p4476) target = $region101
      $region100: #{synthesizer_forward.1} parent=5 // pred_region
        %s4479 = ssub.s32 %s15, 2
        // Predicated region
        $region102: #{synthesizer_forward.1} parent=100 // pred_check
          %p4480 = pneg %p222
        $region103: #{synthesizer_forward.1} parent=100 // pred_check_branch
          %4482 = sbr.rel (%p4480) target = $region105
        $region104: #{synthesizer_forward.1} parent=100 // pred_region
          %s4483 = smul.u32 32, %s21
          %p4484 = scmp.lt.s32.totalorder %s4483, 63
          %s4485 = scalar_select %p4484, %s4483, 63
          %s4486 = smul.addr %s4485, 8
          %s4487 = scalar_lea.vmem %s8, %s4486
        $region105: #{synthesizer_forward.1} parent=100 // pred_fallthru
          _
      $region101: #{synthesizer_forward.1} parent=5 // pred_fallthru
        _
    $region6: #{synthesizer_forward.1} parent=1 // loop_footer
      %s19 = sadd.s32 1, %s15
    $region7: #{synthesizer_forward.1} parent=1 // loop_footer_branch
      %14 = sbr.rel target = $region3
    $region8: #{synthesizer_forward.1} parent=1 // loop_exit
      _

</llo_original>
